<compile_context>
chip_gen: v6e
topology: v6e:2x2x1
jax: 0.10.0
libtpu: 0.0.40
codegen_flags: <defaults>
</compile_context>

<pallas_src>
import math

import jax
import jax.numpy as jnp
from jax import lax
from jax.experimental import pallas as pl
from jax.experimental.pallas import tpu as pltpu


# ----------------------------------------------------------------------------
# Pallas kernel
# ----------------------------------------------------------------------------
def _make_kernel(L, T, B, H, Opad, n_x):
    """Builds the kernel closure for fixed static sizes.

    n_x: number of time-major layer-0 input streams (1 = pre-concatenated x,
         2 = separate enc / emb halves with split W_ih).
    """
    G = 4 * H
    # weights: [n_x layer-0 W_ih pieces, b0, W_hh0] + per layer>0 [W_ih, b, W_hh]
    #          + [W_out, b_out]
    n_w = n_x + 2 + 3 * (L - 1) + 2
    FULL_UNROLL_MAX_T = 32

    def kernel(*refs):
        x_refs = refs[0:n_x]
        h0_ref = refs[n_x]
        c0_ref = refs[n_x + 1]
        w_refs = refs[n_x + 2:n_x + 2 + n_w]
        y_ref, hT_ref, cT_ref = refs[n_x + 2 + n_w:n_x + 5 + n_w]
        gx_scr, seq_scr = refs[n_x + 5 + n_w:]

        def run_layer(l, whh):
            """Recurrent part only; gates_x for every t already sits in gx_scr."""

            def step(t, carry):
                h, c = carry
                # Only the h-dependent matmul stays on the serial path.
                # Kept f32: at small (B,H) it is pipeline-latency bound, so a
                # bf16 cast would just add a serial VPU op + sub-vreg repack.
                gates = gx_scr[t] + jnp.dot(
                    h, whh, preferred_element_type=jnp.float32)
                # Gate columns are pre-permuted to [i | f | o | g]:
                # one sigmoid over 3H + one tanh over H.
                sig = jax.nn.sigmoid(gates[:, 0:3 * H])
                g_g = jnp.tanh(gates[:, 3 * H:4 * H])
                i_g = sig[:, 0:H]
                f_g = sig[:, H:2 * H]
                o_g = sig[:, 2 * H:3 * H]
                c_new = f_g * c + i_g * g_g
                h_new = o_g * jnp.tanh(c_new)
                # seq_scr is bf16: only ever consumed as a bf16 matmul input
                # (next layer's hoisted projection / output Linear).
                seq_scr[t] = h_new.astype(seq_scr.dtype)
                return (h_new, c_new)

            carry = (h0_ref[l], c0_ref[l])
            if T <= FULL_UNROLL_MAX_T:
                # full static unroll: static indices + max scheduler visibility
                for t in range(T):
                    carry = step(t, carry)
                h_f, c_f = carry
            else:
                h_f, c_f = lax.fori_loop(0, T, step, carry, unroll=8)
            hT_ref[l] = h_f
            cT_ref[l] = c_f

        # --------------------------------------------------------------
        # Layer 0: hoisted input projection.  Inputs are already time-major
        # bf16 (wrapper), so gx comes out time-major for free: one dense store
        # into gx_scr, no per-timestep copies.  Bias folded in once.
        # --------------------------------------------------------------
        b0 = w_refs[n_x][...]             # (1, 4H) f32   (b_ih + b_hh, permuted)
        whh0 = w_refs[n_x + 1][...]       # (H, 4H) f32   (permuted)
        gx0 = b0
        for xi in range(n_x):
            x2d = x_refs[xi][...].reshape(T * B, x_refs[xi].shape[2])   # bf16
            gx0 = gx0 + jnp.dot(x2d, w_refs[xi][...],
                                preferred_element_type=jnp.float32)
        gx_scr[...] = gx0.reshape(T, B, G)

        run_layer(0, whh0)

        # --------------------------------------------------------------
        # Layers 1..L-1: hoisted input projection over the previous layer's
        # full time-major bf16 output, then the recurrence.
        # (seq_scr is fully read here BEFORE the next recurrence overwrites it.)
        # --------------------------------------------------------------
        for l in range(1, L):
            base = n_x + 2 + 3 * (l - 1)
            wih = w_refs[base][...]       # (H, 4H) bf16
            b = w_refs[base + 1][...]     # (1, 4H) f32
            whh = w_refs[base + 2][...]   # (H, 4H) f32
            seq2d = seq_scr[...].reshape(T * B, H)          # bf16, no cast
            gx = jnp.dot(seq2d, wih, preferred_element_type=jnp.float32) + b
            gx_scr[...] = gx.reshape(T, B, G)
            run_layer(l, whh)

        # --------------------------------------------------------------
        # Output Linear over the full last-layer sequence (one MXU matmul).
        # O is zero-padded to a multiple of 128 and the result is stored
        # time-major in one dense, lane-aligned store.
        # --------------------------------------------------------------
        wout = w_refs[-2][...]            # (H, Opad) bf16
        bout = w_refs[-1][...]            # (1, Opad) f32
        seq2d = seq_scr[...].reshape(T * B, H)
        y = jnp.dot(seq2d, wout, preferred_element_type=jnp.float32) + bout
        y_ref[...] = y.reshape(T, B, Opad)

    return kernel


# ----------------------------------------------------------------------------
# Parameter preparation (gate permutation / split / bf16 / pad)
# ----------------------------------------------------------------------------
def _gate_perm(H):
    # torch LSTM gate order is [i | f | g | o]; reorder columns to [i | f | o | g]
    # so the kernel can apply one sigmoid over the first 3H columns.
    return jnp.concatenate([jnp.arange(0, 2 * H),
                            jnp.arange(3 * H, 4 * H),
                            jnp.arange(2 * H, 3 * H)])


def _prepare_kernel_params(params, E, H, L, O, Opad, split_l0):
    perm = _gate_perm(H)
    kp = []
    wih_T, whh_T, b = params["lstm"][0]                 # (2E,4H), (H,4H), (1,4H)
    wih_p = wih_T[:, perm]
    if split_l0:
        kp += [wih_p[:E, :].astype(jnp.bfloat16),       # enc half
               wih_p[E:, :].astype(jnp.bfloat16)]       # emb half
    else:
        kp += [wih_p.astype(jnp.bfloat16)]              # fused (2E, 4H)
    kp += [b[:, perm],                                  # (1, 4H) f32
           whh_T[:, perm]]                              # (H, 4H) f32 (serial path)
    for l in range(1, L):
        wih_T, whh_T, b = params["lstm"][l]
        kp += [wih_T[:, perm].astype(jnp.bfloat16),
               b[:, perm],
               whh_T[:, perm]]
    wout_p = jnp.zeros((H, Opad), jnp.float32).at[:, :O].set(
        params["wout_t"]).astype(jnp.bfloat16)
    bout_p = jnp.zeros((1, Opad), jnp.float32).at[:, :O].set(params["bout"])
    kp += [wout_p, bout_p]
    return kp


# ----------------------------------------------------------------------------
# Wrapper (glue: layout/cast prep + pallas_call + un-pad)
# ----------------------------------------------------------------------------
def decoder_with_elmo_forward(enc_rep, emb_tensor, h0, c0, params):
    """enc_rep/emb_tensor: (B, T, E) batch_first.  h0/c0: (L, B, H)."""
    B, T, E = enc_rep.shape
    L, _, H = h0.shape
    O = params["bout"].shape[-1]
    Opad = ((O + 127) // 128) * 128

    # Small E: fold the two layer-0 matmuls into one K=2E matmul (single XLA
    # concat in the wrapper); production E (>=128): keep the concat-free split.
    split_l0 = E >= 128
    if split_l0:
        x_inputs = [jnp.transpose(enc_rep, (1, 0, 2)).astype(jnp.bfloat16),
                    jnp.transpose(emb_tensor, (1, 0, 2)).astype(jnp.bfloat16)]
    else:
        x = jnp.concatenate([enc_rep, emb_tensor], axis=2)
        x_inputs = [jnp.transpose(x, (1, 0, 2)).astype(jnp.bfloat16)]

    kparams = _prepare_kernel_params(params, E, H, L, O, Opad, split_l0)
    inputs = x_inputs + [h0, c0] + kparams
    n_in = len(inputs)

    out_shapes = (
        jax.ShapeDtypeStruct((T, B, Opad), jnp.float32),   # y (time-major, padded O)
        jax.ShapeDtypeStruct((L, B, H), jnp.float32),      # h_T
        jax.ShapeDtypeStruct((L, B, H), jnp.float32),      # c_T
    )

    # VMEM limit sized to actual buffer usage (+2x headroom), capped at the
    # v7x physical limit of 64 MiB; default scoped limit is well below physical.
    scratch_bytes = T * B * 4 * H * 4 + T * B * H * 2
    buf_bytes = sum(int(a.size) * a.dtype.itemsize for a in inputs)
    buf_bytes += sum(math.prod(s.shape) * jnp.dtype(s.dtype).itemsize
                     for s in out_shapes)
    vmem_limit = int(min(64 * 1024 * 1024,
                         max(16 * 1024 * 1024,
                             2 * (buf_bytes + scratch_bytes) + (2 << 20))))

    vmem_spec = pl.BlockSpec(memory_space=pltpu.MemorySpace.VMEM)
    y_tm, hT, cT = pl.pallas_call(
        _make_kernel(L, T, B, H, Opad, n_x=len(x_inputs)),
        out_shape=out_shapes,
        in_specs=[vmem_spec] * n_in,
        out_specs=(vmem_spec, vmem_spec, vmem_spec),
        scratch_shapes=[
            pltpu.VMEM((T, B, 4 * H), jnp.float32),   # hoisted gates_x (time-major)
            pltpu.VMEM((T, B, H), jnp.bfloat16),      # per-layer hidden sequence
        ],
        compiler_params=pltpu.CompilerParams(vmem_limit_bytes=vmem_limit),
    )(*inputs)

    # time-major -> batch_first and un-pad O (cheap XLA ops outside the kernel).
    return jnp.transpose(y_tm, (1, 0, 2))[:, :, :O], (hT, cT)


# ----------------------------------------------------------------------------
# Deterministic parameter init (PyTorch-style uniform(-1/sqrt(H), 1/sqrt(H)))
# ----------------------------------------------------------------------------
def init_params(key, E, H, L, O):
    params = {"lstm": []}
    k = 1.0 / math.sqrt(H)
    for l in range(L):
        in_dim = 2 * E if l == 0 else H
        key, k1, k2, k3, k4 = jax.random.split(key, 5)
        w_ih = jax.random.uniform(k1, (4 * H, in_dim), jnp.float32, -k, k)
        w_hh = jax.random.uniform(k2, (4 * H, H), jnp.float32, -k, k)
        b_ih = jax.random.uniform(k3, (4 * H,), jnp.float32, -k, k)
        b_hh = jax.random.uniform(k4, (4 * H,), jnp.float32, -k, k)
        params["lstm"].append(
            (w_ih.T, w_hh.T, (b_ih + b_hh).reshape(1, 4 * H)))
    key, k1, k2 = jax.random.split(key, 3)
    w_out = jax.random.uniform(k1, (O, H), jnp.float32, -k, k)
    b_out = jax.random.uniform(k2, (O,), jnp.float32, -k, k)
    params["wout_t"] = w_out.T
    params["bout"] = b_out.reshape(1, O)
    return params


# ----------------------------------------------------------------------------
# Pure-JAX reference (mirrors torch.nn.LSTM + Linear semantics, full f32)
# ----------------------------------------------------------------------------
def reference_forward(enc_rep, emb_tensor, h0, c0, params):
    B, T, E = enc_rep.shape
    L, _, H = h0.shape
    x = jnp.concatenate([enc_rep, emb_tensor], axis=2)
    layer_in = x
    h_fin, c_fin = [], []
    for l in range(L):
        wih, whh, b = params["lstm"][l]
        h, c = h0[l], c0[l]
        outs = []
        for t in range(T):
            g = layer_in[:, t, :] @ wih + h @ whh + b
            i_g = jax.nn.sigmoid(g[:, 0:H])
            f_g = jax.nn.sigmoid(g[:, H:2 * H])
            g_g = jnp.tanh(g[:, 2 * H:3 * H])
            o_g = jax.nn.sigmoid(g[:, 3 * H:4 * H])
            c = f_g * c + i_g * g_g
            h = o_g * jnp.tanh(c)
            outs.append(h)
        layer_in = jnp.stack(outs, axis=1)
        h_fin.append(h)
        c_fin.append(c)
    y = layer_in @ params["wout_t"] + params["bout"]
    return y, (jnp.stack(h_fin), jnp.stack(c_fin))


# ----------------------------------------------------------------------------
if __name__ == "__main__":
    B, T = 8, 8          # batch (8 -> full f32 sublane usage), sequence length
    E = 16               # emb_dimension (ELMo / encoder feature size)
    H = 32               # hidden_size
    L = 2                # num_layer
    O = 16               # output_size

    key = jax.random.PRNGKey(0)
    key, k_enc, k_emb, k_h, k_c, k_p = jax.random.split(key, 6)

    enc_rep = jax.random.normal(k_enc, (B, T, E), jnp.float32)
    # TODO(synk): `emb_tensor` stands in for elmo(batch_to_ids(token))
    # ['elmo_representations'][-1]; the pretrained ELMo module itself has no
    # Pallas equivalent, so its output is synthesized as an input.
    emb_tensor = jax.random.normal(k_emb, (B, T, E), jnp.float32)
    h0 = jax.random.normal(k_h, (L, B, H), jnp.float32)
    c0 = jax.random.normal(k_c, (L, B, H), jnp.float32)

    params = init_params(k_p, E, H, L, O)

    results, (hT, cT) = decoder_with_elmo_forward(enc_rep, emb_tensor, h0, c0, params)
    jax.block_until_ready((results, hT, cT))

    ref_y, (ref_h, ref_c) = reference_forward(enc_rep, emb_tensor, h0, c0, params)
    assert results.shape == (B, T, O)
    assert hT.shape == (L, B, H) and cT.shape == (L, B, H)
    # bf16 matmul inputs (f32 accumulation) + bf16 hidden-sequence scratch ->
    # relaxed tolerance vs. the pure-f32 reference.
    assert jnp.allclose(results, ref_y, rtol=2e-2, atol=2e-2)
    assert jnp.allclose(hT, ref_h, rtol=2e-2, atol=2e-2)
    assert jnp.allclose(cT, ref_c, rtol=2e-2, atol=2e-2)

    print("KERNEL_OK")
</pallas_src>

<mosaic_0001>
module attributes {stable_mosaic.version = 11 : i64} {
  func.func @kernel(%arg0: memref<8x8x32xbf16, #tpu.memory_space<vmem>>, %arg1: memref<2x8x32xf32, #tpu.memory_space<vmem>>, %arg2: memref<2x8x32xf32, #tpu.memory_space<vmem>>, %arg3: memref<32x128xbf16, #tpu.memory_space<vmem>>, %arg4: memref<1x128xf32, #tpu.memory_space<vmem>>, %arg5: memref<32x128xf32, #tpu.memory_space<vmem>>, %arg6: memref<32x128xbf16, #tpu.memory_space<vmem>>, %arg7: memref<1x128xf32, #tpu.memory_space<vmem>>, %arg8: memref<32x128xf32, #tpu.memory_space<vmem>>, %arg9: memref<32x128xbf16, #tpu.memory_space<vmem>>, %arg10: memref<1x128xf32, #tpu.memory_space<vmem>>, %arg11: memref<8x8x128xf32, #tpu.memory_space<vmem>>, %arg12: memref<2x8x32xf32, #tpu.memory_space<vmem>>, %arg13: memref<2x8x32xf32, #tpu.memory_space<vmem>>, %arg14: memref<8x8x128xf32, #tpu.memory_space<vmem>>, %arg15: memref<8x8x32xbf16, #tpu.memory_space<vmem>>) attributes {dimension_semantics = [], scalar_prefetch = 0 : i64, scratch_operands = 2 : i64, tpu.core_type = #tpu.core_type<tc>} {
    %c0 = arith.constant 0 : index
    %c0_0 = arith.constant 0 : index
    %0 = vector.load %arg4[%c0, %c0_0] : memref<1x128xf32, #tpu.memory_space<vmem>>, vector<1x128xf32>
    %c0_1 = arith.constant 0 : index
    %c0_2 = arith.constant 0 : index
    %1 = vector.load %arg5[%c0_1, %c0_2] : memref<32x128xf32, #tpu.memory_space<vmem>>, vector<32x128xf32>
    %c0_3 = arith.constant 0 : index
    %c0_4 = arith.constant 0 : index
    %c0_5 = arith.constant 0 : index
    %2 = vector.load %arg0[%c0_3, %c0_4, %c0_5] : memref<8x8x32xbf16, #tpu.memory_space<vmem>>, vector<8x8x32xbf16>
    %3 = vector.shape_cast %2 : vector<8x8x32xbf16> to vector<64x32xbf16>
    %c0_6 = arith.constant 0 : index
    %c0_7 = arith.constant 0 : index
    %4 = vector.load %arg3[%c0_6, %c0_7] : memref<32x128xbf16, #tpu.memory_space<vmem>>, vector<32x128xbf16>
    %cst = arith.constant dense<0.000000e+00> : vector<64x128xf32>
    %5 = tpu.matmul %3, %4, %cst {dimension_numbers = #tpu.dot_dimension_numbers<[1], [0], [0], [1], [0, 0, 1, 1], [], []>} : vector<64x32xbf16>, vector<32x128xbf16>, vector<64x128xf32> -> vector<64x128xf32>
    %6 = vector.broadcast %0 : vector<1x128xf32> to vector<64x128xf32>
    %7 = arith.addf %6, %5 : vector<64x128xf32>
    %8 = vector.shape_cast %7 : vector<64x128xf32> to vector<8x8x128xf32>
    %c0_8 = arith.constant 0 : index
    %c0_9 = arith.constant 0 : index
    %c0_10 = arith.constant 0 : index
    %9 = vector.load %arg14[%c0_8, %c0_9, %c0_10] : memref<8x8x128xf32, #tpu.memory_space<vmem>>, vector<8x8x128xf32>
    tpu.vector_store %arg14[%c0_8, %c0_9, %c0_10], %8 {strides = array<i32>} : memref<8x8x128xf32, #tpu.memory_space<vmem>>, vector<8x8x128xf32>,
    %c0_11 = arith.constant 0 : index
    %c0_12 = arith.constant 0 : index
    %c0_13 = arith.constant 0 : index
    %10 = vector.load %arg1[%c0_11, %c0_12, %c0_13] : memref<2x8x32xf32, #tpu.memory_space<vmem>>, vector<1x8x32xf32>
    %11 = vector.shape_cast %10 : vector<1x8x32xf32> to vector<8x32xf32>
    %c0_14 = arith.constant 0 : index
    %c0_15 = arith.constant 0 : index
    %c0_16 = arith.constant 0 : index
    %12 = vector.load %arg2[%c0_14, %c0_15, %c0_16] : memref<2x8x32xf32, #tpu.memory_space<vmem>>, vector<1x8x32xf32>
    %13 = vector.shape_cast %12 : vector<1x8x32xf32> to vector<8x32xf32>
    %c0_17 = arith.constant 0 : index
    %c0_18 = arith.constant 0 : index
    %c0_19 = arith.constant 0 : index
    %14 = vector.load %arg14[%c0_17, %c0_18, %c0_19] : memref<8x8x128xf32, #tpu.memory_space<vmem>>, vector<1x8x128xf32>
    %15 = vector.shape_cast %14 : vector<1x8x128xf32> to vector<8x128xf32>
    %cst_20 = arith.constant dense<0.000000e+00> : vector<8x128xf32>
    %16 = tpu.matmul %11, %1, %cst_20 {dimension_numbers = #tpu.dot_dimension_numbers<[1], [0], [0], [1], [0, 0, 1, 1], [], []>} : vector<8x32xf32>, vector<32x128xf32>, vector<8x128xf32> -> vector<8x128xf32>
    %17 = arith.addf %15, %16 : vector<8x128xf32>
    %18 = vector.extract_strided_slice %17 {offsets = [0, 0], sizes = [8, 96], strides = [1, 1]} : vector<8x128xf32> to vector<8x96xf32>
    %19 = arith.negf %18 : vector<8x96xf32>
    %20 = math.exp %19 : vector<8x96xf32>
    %cst_21 = arith.constant 1.000000e+00 : f32
    %21 = vector.broadcast %cst_21 : f32 to vector<8x96xf32>
    %22 = arith.addf %21, %20 : vector<8x96xf32>
    %23 = arith.divf %21, %22 : vector<8x96xf32>
    %24 = vector.extract_strided_slice %17 {offsets = [0, 96], sizes = [8, 32], strides = [1, 1]} : vector<8x128xf32> to vector<8x32xf32>
    %25 = math.tanh %24 : vector<8x32xf32>
    %26 = vector.extract_strided_slice %23 {offsets = [0, 0], sizes = [8, 32], strides = [1, 1]} : vector<8x96xf32> to vector<8x32xf32>
    %27 = vector.extract_strided_slice %23 {offsets = [0, 32], sizes = [8, 32], strides = [1, 1]} : vector<8x96xf32> to vector<8x32xf32>
    %28 = vector.extract_strided_slice %23 {offsets = [0, 64], sizes = [8, 32], strides = [1, 1]} : vector<8x96xf32> to vector<8x32xf32>
    %29 = arith.mulf %27, %13 : vector<8x32xf32>
    %30 = arith.mulf %26, %25 : vector<8x32xf32>
    %31 = arith.addf %29, %30 : vector<8x32xf32>
    %32 = math.tanh %31 : vector<8x32xf32>
    %33 = arith.mulf %28, %32 : vector<8x32xf32>
    %34 = arith.truncf %33 : vector<8x32xf32> to vector<8x32xbf16>
    %c0_22 = arith.constant 0 : index
    %c0_23 = arith.constant 0 : index
    %c0_24 = arith.constant 0 : index
    %35 = vector.load %arg15[%c0_22, %c0_23, %c0_24] : memref<8x8x32xbf16, #tpu.memory_space<vmem>>, vector<1x8x32xbf16>
    %36 = vector.shape_cast %35 : vector<1x8x32xbf16> to vector<8x32xbf16>
    %37 = vector.shape_cast %34 : vector<8x32xbf16> to vector<1x8x32xbf16>
    tpu.vector_store %arg15[%c0_22, %c0_23, %c0_24], %37 {strides = array<i32>} : memref<8x8x32xbf16, #tpu.memory_space<vmem>>, vector<1x8x32xbf16>,
    %c1 = arith.constant 1 : index
    %c0_25 = arith.constant 0 : index
    %c0_26 = arith.constant 0 : index
    %38 = vector.load %arg14[%c1, %c0_25, %c0_26] : memref<8x8x128xf32, #tpu.memory_space<vmem>>, vector<1x8x128xf32>
    %39 = vector.shape_cast %38 : vector<1x8x128xf32> to vector<8x128xf32>
    %cst_27 = arith.constant dense<0.000000e+00> : vector<8x128xf32>
    %40 = tpu.matmul %33, %1, %cst_27 {dimension_numbers = #tpu.dot_dimension_numbers<[1], [0], [0], [1], [0, 0, 1, 1], [], []>} : vector<8x32xf32>, vector<32x128xf32>, vector<8x128xf32> -> vector<8x128xf32>
    %41 = arith.addf %39, %40 : vector<8x128xf32>
    %42 = vector.extract_strided_slice %41 {offsets = [0, 0], sizes = [8, 96], strides = [1, 1]} : vector<8x128xf32> to vector<8x96xf32>
    %43 = arith.negf %42 : vector<8x96xf32>
    %44 = math.exp %43 : vector<8x96xf32>
    %cst_28 = arith.constant 1.000000e+00 : f32
    %45 = vector.broadcast %cst_28 : f32 to vector<8x96xf32>
    %46 = arith.addf %45, %44 : vector<8x96xf32>
    %47 = arith.divf %45, %46 : vector<8x96xf32>
    %48 = vector.extract_strided_slice %41 {offsets = [0, 96], sizes = [8, 32], strides = [1, 1]} : vector<8x128xf32> to vector<8x32xf32>
    %49 = math.tanh %48 : vector<8x32xf32>
    %50 = vector.extract_strided_slice %47 {offsets = [0, 0], sizes = [8, 32], strides = [1, 1]} : vector<8x96xf32> to vector<8x32xf32>
    %51 = vector.extract_strided_slice %47 {offsets = [0, 32], sizes = [8, 32], strides = [1, 1]} : vector<8x96xf32> to vector<8x32xf32>
    %52 = vector.extract_strided_slice %47 {offsets = [0, 64], sizes = [8, 32], strides = [1, 1]} : vector<8x96xf32> to vector<8x32xf32>
    %53 = arith.mulf %51, %31 : vector<8x32xf32>
    %54 = arith.mulf %50, %49 : vector<8x32xf32>
    %55 = arith.addf %53, %54 : vector<8x32xf32>
    %56 = math.tanh %55 : vector<8x32xf32>
    %57 = arith.mulf %52, %56 : vector<8x32xf32>
    %58 = arith.truncf %57 : vector<8x32xf32> to vector<8x32xbf16>
    %c1_29 = arith.constant 1 : index
    %c0_30 = arith.constant 0 : index
    %c0_31 = arith.constant 0 : index
    %59 = vector.load %arg15[%c1_29, %c0_30, %c0_31] : memref<8x8x32xbf16, #tpu.memory_space<vmem>>, vector<1x8x32xbf16>
    %60 = vector.shape_cast %59 : vector<1x8x32xbf16> to vector<8x32xbf16>
    %61 = vector.shape_cast %58 : vector<8x32xbf16> to vector<1x8x32xbf16>
    tpu.vector_store %arg15[%c1_29, %c0_30, %c0_31], %61 {strides = array<i32>} : memref<8x8x32xbf16, #tpu.memory_space<vmem>>, vector<1x8x32xbf16>,
    %c2 = arith.constant 2 : index
    %c0_32 = arith.constant 0 : index
    %c0_33 = arith.constant 0 : index
    %62 = vector.load %arg14[%c2, %c0_32, %c0_33] : memref<8x8x128xf32, #tpu.memory_space<vmem>>, vector<1x8x128xf32>
    %63 = vector.shape_cast %62 : vector<1x8x128xf32> to vector<8x128xf32>
    %cst_34 = arith.constant dense<0.000000e+00> : vector<8x128xf32>
    %64 = tpu.matmul %57, %1, %cst_34 {dimension_numbers = #tpu.dot_dimension_numbers<[1], [0], [0], [1], [0, 0, 1, 1], [], []>} : vector<8x32xf32>, vector<32x128xf32>, vector<8x128xf32> -> vector<8x128xf32>
    %65 = arith.addf %63, %64 : vector<8x128xf32>
    %66 = vector.extract_strided_slice %65 {offsets = [0, 0], sizes = [8, 96], strides = [1, 1]} : vector<8x128xf32> to vector<8x96xf32>
    %67 = arith.negf %66 : vector<8x96xf32>
    %68 = math.exp %67 : vector<8x96xf32>
    %cst_35 = arith.constant 1.000000e+00 : f32
    %69 = vector.broadcast %cst_35 : f32 to vector<8x96xf32>
    %70 = arith.addf %69, %68 : vector<8x96xf32>
    %71 = arith.divf %69, %70 : vector<8x96xf32>
    %72 = vector.extract_strided_slice %65 {offsets = [0, 96], sizes = [8, 32], strides = [1, 1]} : vector<8x128xf32> to vector<8x32xf32>
    %73 = math.tanh %72 : vector<8x32xf32>
    %74 = vector.extract_strided_slice %71 {offsets = [0, 0], sizes = [8, 32], strides = [1, 1]} : vector<8x96xf32> to vector<8x32xf32>
    %75 = vector.extract_strided_slice %71 {offsets = [0, 32], sizes = [8, 32], strides = [1, 1]} : vector<8x96xf32> to vector<8x32xf32>
    %76 = vector.extract_strided_slice %71 {offsets = [0, 64], sizes = [8, 32], strides = [1, 1]} : vector<8x96xf32> to vector<8x32xf32>
    %77 = arith.mulf %75, %55 : vector<8x32xf32>
    %78 = arith.mulf %74, %73 : vector<8x32xf32>
    %79 = arith.addf %77, %78 : vector<8x32xf32>
    %80 = math.tanh %79 : vector<8x32xf32>
    %81 = arith.mulf %76, %80 : vector<8x32xf32>
    %82 = arith.truncf %81 : vector<8x32xf32> to vector<8x32xbf16>
    %c2_36 = arith.constant 2 : index
    %c0_37 = arith.constant 0 : index
    %c0_38 = arith.constant 0 : index
    %83 = vector.load %arg15[%c2_36, %c0_37, %c0_38] : memref<8x8x32xbf16, #tpu.memory_space<vmem>>, vector<1x8x32xbf16>
    %84 = vector.shape_cast %83 : vector<1x8x32xbf16> to vector<8x32xbf16>
    %85 = vector.shape_cast %82 : vector<8x32xbf16> to vector<1x8x32xbf16>
    tpu.vector_store %arg15[%c2_36, %c0_37, %c0_38], %85 {strides = array<i32>} : memref<8x8x32xbf16, #tpu.memory_space<vmem>>, vector<1x8x32xbf16>,
    %c3 = arith.constant 3 : index
    %c0_39 = arith.constant 0 : index
    %c0_40 = arith.constant 0 : index
    %86 = vector.load %arg14[%c3, %c0_39, %c0_40] : memref<8x8x128xf32, #tpu.memory_space<vmem>>, vector<1x8x128xf32>
    %87 = vector.shape_cast %86 : vector<1x8x128xf32> to vector<8x128xf32>
    %cst_41 = arith.constant dense<0.000000e+00> : vector<8x128xf32>
    %88 = tpu.matmul %81, %1, %cst_41 {dimension_numbers = #tpu.dot_dimension_numbers<[1], [0], [0], [1], [0, 0, 1, 1], [], []>} : vector<8x32xf32>, vector<32x128xf32>, vector<8x128xf32> -> vector<8x128xf32>
    %89 = arith.addf %87, %88 : vector<8x128xf32>
    %90 = vector.extract_strided_slice %89 {offsets = [0, 0], sizes = [8, 96], strides = [1, 1]} : vector<8x128xf32> to vector<8x96xf32>
    %91 = arith.negf %90 : vector<8x96xf32>
    %92 = math.exp %91 : vector<8x96xf32>
    %cst_42 = arith.constant 1.000000e+00 : f32
    %93 = vector.broadcast %cst_42 : f32 to vector<8x96xf32>
    %94 = arith.addf %93, %92 : vector<8x96xf32>
    %95 = arith.divf %93, %94 : vector<8x96xf32>
    %96 = vector.extract_strided_slice %89 {offsets = [0, 96], sizes = [8, 32], strides = [1, 1]} : vector<8x128xf32> to vector<8x32xf32>
    %97 = math.tanh %96 : vector<8x32xf32>
    %98 = vector.extract_strided_slice %95 {offsets = [0, 0], sizes = [8, 32], strides = [1, 1]} : vector<8x96xf32> to vector<8x32xf32>
    %99 = vector.extract_strided_slice %95 {offsets = [0, 32], sizes = [8, 32], strides = [1, 1]} : vector<8x96xf32> to vector<8x32xf32>
    %100 = vector.extract_strided_slice %95 {offsets = [0, 64], sizes = [8, 32], strides = [1, 1]} : vector<8x96xf32> to vector<8x32xf32>
    %101 = arith.mulf %99, %79 : vector<8x32xf32>
    %102 = arith.mulf %98, %97 : vector<8x32xf32>
    %103 = arith.addf %101, %102 : vector<8x32xf32>
    %104 = math.tanh %103 : vector<8x32xf32>
    %105 = arith.mulf %100, %104 : vector<8x32xf32>
    %106 = arith.truncf %105 : vector<8x32xf32> to vector<8x32xbf16>
    %c3_43 = arith.constant 3 : index
    %c0_44 = arith.constant 0 : index
    %c0_45 = arith.constant 0 : index
    %107 = vector.load %arg15[%c3_43, %c0_44, %c0_45] : memref<8x8x32xbf16, #tpu.memory_space<vmem>>, vector<1x8x32xbf16>
    %108 = vector.shape_cast %107 : vector<1x8x32xbf16> to vector<8x32xbf16>
    %109 = vector.shape_cast %106 : vector<8x32xbf16> to vector<1x8x32xbf16>
    tpu.vector_store %arg15[%c3_43, %c0_44, %c0_45], %109 {strides = array<i32>} : memref<8x8x32xbf16, #tpu.memory_space<vmem>>, vector<1x8x32xbf16>,
    %c4 = arith.constant 4 : index
    %c0_46 = arith.constant 0 : index
    %c0_47 = arith.constant 0 : index
    %110 = vector.load %arg14[%c4, %c0_46, %c0_47] : memref<8x8x128xf32, #tpu.memory_space<vmem>>, vector<1x8x128xf32>
    %111 = vector.shape_cast %110 : vector<1x8x128xf32> to vector<8x128xf32>
    %cst_48 = arith.constant dense<0.000000e+00> : vector<8x128xf32>
    %112 = tpu.matmul %105, %1, %cst_48 {dimension_numbers = #tpu.dot_dimension_numbers<[1], [0], [0], [1], [0, 0, 1, 1], [], []>} : vector<8x32xf32>, vector<32x128xf32>, vector<8x128xf32> -> vector<8x128xf32>
    %113 = arith.addf %111, %112 : vector<8x128xf32>
    %114 = vector.extract_strided_slice %113 {offsets = [0, 0], sizes = [8, 96], strides = [1, 1]} : vector<8x128xf32> to vector<8x96xf32>
    %115 = arith.negf %114 : vector<8x96xf32>
    %116 = math.exp %115 : vector<8x96xf32>
    %cst_49 = arith.constant 1.000000e+00 : f32
    %117 = vector.broadcast %cst_49 : f32 to vector<8x96xf32>
    %118 = arith.addf %117, %116 : vector<8x96xf32>
    %119 = arith.divf %117, %118 : vector<8x96xf32>
    %120 = vector.extract_strided_slice %113 {offsets = [0, 96], sizes = [8, 32], strides = [1, 1]} : vector<8x128xf32> to vector<8x32xf32>
    %121 = math.tanh %120 : vector<8x32xf32>
    %122 = vector.extract_strided_slice %119 {offsets = [0, 0], sizes = [8, 32], strides = [1, 1]} : vector<8x96xf32> to vector<8x32xf32>
    %123 = vector.extract_strided_slice %119 {offsets = [0, 32], sizes = [8, 32], strides = [1, 1]} : vector<8x96xf32> to vector<8x32xf32>
    %124 = vector.extract_strided_slice %119 {offsets = [0, 64], sizes = [8, 32], strides = [1, 1]} : vector<8x96xf32> to vector<8x32xf32>
    %125 = arith.mulf %123, %103 : vector<8x32xf32>
    %126 = arith.mulf %122, %121 : vector<8x32xf32>
    %127 = arith.addf %125, %126 : vector<8x32xf32>
    %128 = math.tanh %127 : vector<8x32xf32>
    %129 = arith.mulf %124, %128 : vector<8x32xf32>
    %130 = arith.truncf %129 : vector<8x32xf32> to vector<8x32xbf16>
    %c4_50 = arith.constant 4 : index
    %c0_51 = arith.constant 0 : index
    %c0_52 = arith.constant 0 : index
    %131 = vector.load %arg15[%c4_50, %c0_51, %c0_52] : memref<8x8x32xbf16, #tpu.memory_space<vmem>>, vector<1x8x32xbf16>
    %132 = vector.shape_cast %131 : vector<1x8x32xbf16> to vector<8x32xbf16>
    %133 = vector.shape_cast %130 : vector<8x32xbf16> to vector<1x8x32xbf16>
    tpu.vector_store %arg15[%c4_50, %c0_51, %c0_52], %133 {strides = array<i32>} : memref<8x8x32xbf16, #tpu.memory_space<vmem>>, vector<1x8x32xbf16>,
    %c5 = arith.constant 5 : index
    %c0_53 = arith.constant 0 : index
    %c0_54 = arith.constant 0 : index
    %134 = vector.load %arg14[%c5, %c0_53, %c0_54] : memref<8x8x128xf32, #tpu.memory_space<vmem>>, vector<1x8x128xf32>
    %135 = vector.shape_cast %134 : vector<1x8x128xf32> to vector<8x128xf32>
    %cst_55 = arith.constant dense<0.000000e+00> : vector<8x128xf32>
    %136 = tpu.matmul %129, %1, %cst_55 {dimension_numbers = #tpu.dot_dimension_numbers<[1], [0], [0], [1], [0, 0, 1, 1], [], []>} : vector<8x32xf32>, vector<32x128xf32>, vector<8x128xf32> -> vector<8x128xf32>
    %137 = arith.addf %135, %136 : vector<8x128xf32>
    %138 = vector.extract_strided_slice %137 {offsets = [0, 0], sizes = [8, 96], strides = [1, 1]} : vector<8x128xf32> to vector<8x96xf32>
    %139 = arith.negf %138 : vector<8x96xf32>
    %140 = math.exp %139 : vector<8x96xf32>
    %cst_56 = arith.constant 1.000000e+00 : f32
    %141 = vector.broadcast %cst_56 : f32 to vector<8x96xf32>
    %142 = arith.addf %141, %140 : vector<8x96xf32>
    %143 = arith.divf %141, %142 : vector<8x96xf32>
    %144 = vector.extract_strided_slice %137 {offsets = [0, 96], sizes = [8, 32], strides = [1, 1]} : vector<8x128xf32> to vector<8x32xf32>
    %145 = math.tanh %144 : vector<8x32xf32>
    %146 = vector.extract_strided_slice %143 {offsets = [0, 0], sizes = [8, 32], strides = [1, 1]} : vector<8x96xf32> to vector<8x32xf32>
    %147 = vector.extract_strided_slice %143 {offsets = [0, 32], sizes = [8, 32], strides = [1, 1]} : vector<8x96xf32> to vector<8x32xf32>
    %148 = vector.extract_strided_slice %143 {offsets = [0, 64], sizes = [8, 32], strides = [1, 1]} : vector<8x96xf32> to vector<8x32xf32>
    %149 = arith.mulf %147, %127 : vector<8x32xf32>
    %150 = arith.mulf %146, %145 : vector<8x32xf32>
    %151 = arith.addf %149, %150 : vector<8x32xf32>
    %152 = math.tanh %151 : vector<8x32xf32>
    %153 = arith.mulf %148, %152 : vector<8x32xf32>
    %154 = arith.truncf %153 : vector<8x32xf32> to vector<8x32xbf16>
    %c5_57 = arith.constant 5 : index
    %c0_58 = arith.constant 0 : index
    %c0_59 = arith.constant 0 : index
    %155 = vector.load %arg15[%c5_57, %c0_58, %c0_59] : memref<8x8x32xbf16, #tpu.memory_space<vmem>>, vector<1x8x32xbf16>
    %156 = vector.shape_cast %155 : vector<1x8x32xbf16> to vector<8x32xbf16>
    %157 = vector.shape_cast %154 : vector<8x32xbf16> to vector<1x8x32xbf16>
    tpu.vector_store %arg15[%c5_57, %c0_58, %c0_59], %157 {strides = array<i32>} : memref<8x8x32xbf16, #tpu.memory_space<vmem>>, vector<1x8x32xbf16>,
    %c6 = arith.constant 6 : index
    %c0_60 = arith.constant 0 : index
    %c0_61 = arith.constant 0 : index
    %158 = vector.load %arg14[%c6, %c0_60, %c0_61] : memref<8x8x128xf32, #tpu.memory_space<vmem>>, vector<1x8x128xf32>
    %159 = vector.shape_cast %158 : vector<1x8x128xf32> to vector<8x128xf32>
    %cst_62 = arith.constant dense<0.000000e+00> : vector<8x128xf32>
    %160 = tpu.matmul %153, %1, %cst_62 {dimension_numbers = #tpu.dot_dimension_numbers<[1], [0], [0], [1], [0, 0, 1, 1], [], []>} : vector<8x32xf32>, vector<32x128xf32>, vector<8x128xf32> -> vector<8x128xf32>
    %161 = arith.addf %159, %160 : vector<8x128xf32>
    %162 = vector.extract_strided_slice %161 {offsets = [0, 0], sizes = [8, 96], strides = [1, 1]} : vector<8x128xf32> to vector<8x96xf32>
    %163 = arith.negf %162 : vector<8x96xf32>
    %164 = math.exp %163 : vector<8x96xf32>
    %cst_63 = arith.constant 1.000000e+00 : f32
    %165 = vector.broadcast %cst_63 : f32 to vector<8x96xf32>
    %166 = arith.addf %165, %164 : vector<8x96xf32>
    %167 = arith.divf %165, %166 : vector<8x96xf32>
    %168 = vector.extract_strided_slice %161 {offsets = [0, 96], sizes = [8, 32], strides = [1, 1]} : vector<8x128xf32> to vector<8x32xf32>
    %169 = math.tanh %168 : vector<8x32xf32>
    %170 = vector.extract_strided_slice %167 {offsets = [0, 0], sizes = [8, 32], strides = [1, 1]} : vector<8x96xf32> to vector<8x32xf32>
    %171 = vector.extract_strided_slice %167 {offsets = [0, 32], sizes = [8, 32], strides = [1, 1]} : vector<8x96xf32> to vector<8x32xf32>
    %172 = vector.extract_strided_slice %167 {offsets = [0, 64], sizes = [8, 32], strides = [1, 1]} : vector<8x96xf32> to vector<8x32xf32>
    %173 = arith.mulf %171, %151 : vector<8x32xf32>
    %174 = arith.mulf %170, %169 : vector<8x32xf32>
    %175 = arith.addf %173, %174 : vector<8x32xf32>
    %176 = math.tanh %175 : vector<8x32xf32>
    %177 = arith.mulf %172, %176 : vector<8x32xf32>
    %178 = arith.truncf %177 : vector<8x32xf32> to vector<8x32xbf16>
    %c6_64 = arith.constant 6 : index
    %c0_65 = arith.constant 0 : index
    %c0_66 = arith.constant 0 : index
    %179 = vector.load %arg15[%c6_64, %c0_65, %c0_66] : memref<8x8x32xbf16, #tpu.memory_space<vmem>>, vector<1x8x32xbf16>
    %180 = vector.shape_cast %179 : vector<1x8x32xbf16> to vector<8x32xbf16>
    %181 = vector.shape_cast %178 : vector<8x32xbf16> to vector<1x8x32xbf16>
    tpu.vector_store %arg15[%c6_64, %c0_65, %c0_66], %181 {strides = array<i32>} : memref<8x8x32xbf16, #tpu.memory_space<vmem>>, vector<1x8x32xbf16>,
    %c7 = arith.constant 7 : index
    %c0_67 = arith.constant 0 : index
    %c0_68 = arith.constant 0 : index
    %182 = vector.load %arg14[%c7, %c0_67, %c0_68] : memref<8x8x128xf32, #tpu.memory_space<vmem>>, vector<1x8x128xf32>
    %183 = vector.shape_cast %182 : vector<1x8x128xf32> to vector<8x128xf32>
    %cst_69 = arith.constant dense<0.000000e+00> : vector<8x128xf32>
    %184 = tpu.matmul %177, %1, %cst_69 {dimension_numbers = #tpu.dot_dimension_numbers<[1], [0], [0], [1], [0, 0, 1, 1], [], []>} : vector<8x32xf32>, vector<32x128xf32>, vector<8x128xf32> -> vector<8x128xf32>
    %185 = arith.addf %183, %184 : vector<8x128xf32>
    %186 = vector.extract_strided_slice %185 {offsets = [0, 0], sizes = [8, 96], strides = [1, 1]} : vector<8x128xf32> to vector<8x96xf32>
    %187 = arith.negf %186 : vector<8x96xf32>
    %188 = math.exp %187 : vector<8x96xf32>
    %cst_70 = arith.constant 1.000000e+00 : f32
    %189 = vector.broadcast %cst_70 : f32 to vector<8x96xf32>
    %190 = arith.addf %189, %188 : vector<8x96xf32>
    %191 = arith.divf %189, %190 : vector<8x96xf32>
    %192 = vector.extract_strided_slice %185 {offsets = [0, 96], sizes = [8, 32], strides = [1, 1]} : vector<8x128xf32> to vector<8x32xf32>
    %193 = math.tanh %192 : vector<8x32xf32>
    %194 = vector.extract_strided_slice %191 {offsets = [0, 0], sizes = [8, 32], strides = [1, 1]} : vector<8x96xf32> to vector<8x32xf32>
    %195 = vector.extract_strided_slice %191 {offsets = [0, 32], sizes = [8, 32], strides = [1, 1]} : vector<8x96xf32> to vector<8x32xf32>
    %196 = vector.extract_strided_slice %191 {offsets = [0, 64], sizes = [8, 32], strides = [1, 1]} : vector<8x96xf32> to vector<8x32xf32>
    %197 = arith.mulf %195, %175 : vector<8x32xf32>
    %198 = arith.mulf %194, %193 : vector<8x32xf32>
    %199 = arith.addf %197, %198 : vector<8x32xf32>
    %200 = math.tanh %199 : vector<8x32xf32>
    %201 = arith.mulf %196, %200 : vector<8x32xf32>
    %202 = arith.truncf %201 : vector<8x32xf32> to vector<8x32xbf16>
    %c7_71 = arith.constant 7 : index
    %c0_72 = arith.constant 0 : index
    %c0_73 = arith.constant 0 : index
    %203 = vector.load %arg15[%c7_71, %c0_72, %c0_73] : memref<8x8x32xbf16, #tpu.memory_space<vmem>>, vector<1x8x32xbf16>
    %204 = vector.shape_cast %203 : vector<1x8x32xbf16> to vector<8x32xbf16>
    %205 = vector.shape_cast %202 : vector<8x32xbf16> to vector<1x8x32xbf16>
    tpu.vector_store %arg15[%c7_71, %c0_72, %c0_73], %205 {strides = array<i32>} : memref<8x8x32xbf16, #tpu.memory_space<vmem>>, vector<1x8x32xbf16>,
    %c0_74 = arith.constant 0 : index
    %c0_75 = arith.constant 0 : index
    %c0_76 = arith.constant 0 : index
    %206 = vector.load %arg12[%c0_74, %c0_75, %c0_76] : memref<2x8x32xf32, #tpu.memory_space<vmem>>, vector<1x8x32xf32>
    %207 = vector.shape_cast %206 : vector<1x8x32xf32> to vector<8x32xf32>
    %208 = vector.shape_cast %201 : vector<8x32xf32> to vector<1x8x32xf32>
    tpu.vector_store %arg12[%c0_74, %c0_75, %c0_76], %208 {strides = array<i32>} : memref<2x8x32xf32, #tpu.memory_space<vmem>>, vector<1x8x32xf32>,
    %c0_77 = arith.constant 0 : index
    %c0_78 = arith.constant 0 : index
    %c0_79 = arith.constant 0 : index
    %209 = vector.load %arg13[%c0_77, %c0_78, %c0_79] : memref<2x8x32xf32, #tpu.memory_space<vmem>>, vector<1x8x32xf32>
    %210 = vector.shape_cast %209 : vector<1x8x32xf32> to vector<8x32xf32>
    %211 = vector.shape_cast %199 : vector<8x32xf32> to vector<1x8x32xf32>
    tpu.vector_store %arg13[%c0_77, %c0_78, %c0_79], %211 {strides = array<i32>} : memref<2x8x32xf32, #tpu.memory_space<vmem>>, vector<1x8x32xf32>,
    %c0_80 = arith.constant 0 : index
    %c0_81 = arith.constant 0 : index
    %212 = vector.load %arg6[%c0_80, %c0_81] : memref<32x128xbf16, #tpu.memory_space<vmem>>, vector<32x128xbf16>
    %c0_82 = arith.constant 0 : index
    %c0_83 = arith.constant 0 : index
    %213 = vector.load %arg7[%c0_82, %c0_83] : memref<1x128xf32, #tpu.memory_space<vmem>>, vector<1x128xf32>
    %c0_84 = arith.constant 0 : index
    %c0_85 = arith.constant 0 : index
    %214 = vector.load %arg8[%c0_84, %c0_85] : memref<32x128xf32, #tpu.memory_space<vmem>>, vector<32x128xf32>
    %c0_86 = arith.constant 0 : index
    %c0_87 = arith.constant 0 : index
    %c0_88 = arith.constant 0 : index
    %215 = vector.load %arg15[%c0_86, %c0_87, %c0_88] : memref<8x8x32xbf16, #tpu.memory_space<vmem>>, vector<8x8x32xbf16>
    %216 = vector.shape_cast %215 : vector<8x8x32xbf16> to vector<64x32xbf16>
    %cst_89 = arith.constant dense<0.000000e+00> : vector<64x128xf32>
    %217 = tpu.matmul %216, %212, %cst_89 {dimension_numbers = #tpu.dot_dimension_numbers<[1], [0], [0], [1], [0, 0, 1, 1], [], []>} : vector<64x32xbf16>, vector<32x128xbf16>, vector<64x128xf32> -> vector<64x128xf32>
    %218 = vector.broadcast %213 : vector<1x128xf32> to vector<64x128xf32>
    %219 = arith.addf %217, %218 : vector<64x128xf32>
    %220 = vector.shape_cast %219 : vector<64x128xf32> to vector<8x8x128xf32>
    %c0_90 = arith.constant 0 : index
    %c0_91 = arith.constant 0 : index
    %c0_92 = arith.constant 0 : index
    %221 = vector.load %arg14[%c0_90, %c0_91, %c0_92] : memref<8x8x128xf32, #tpu.memory_space<vmem>>, vector<8x8x128xf32>
    tpu.vector_store %arg14[%c0_90, %c0_91, %c0_92], %220 {strides = array<i32>} : memref<8x8x128xf32, #tpu.memory_space<vmem>>, vector<8x8x128xf32>,
    %c1_93 = arith.constant 1 : index
    %c0_94 = arith.constant 0 : index
    %c0_95 = arith.constant 0 : index
    %222 = vector.load %arg1[%c1_93, %c0_94, %c0_95] : memref<2x8x32xf32, #tpu.memory_space<vmem>>, vector<1x8x32xf32>
    %223 = vector.shape_cast %222 : vector<1x8x32xf32> to vector<8x32xf32>
    %c1_96 = arith.constant 1 : index
    %c0_97 = arith.constant 0 : index
    %c0_98 = arith.constant 0 : index
    %224 = vector.load %arg2[%c1_96, %c0_97, %c0_98] : memref<2x8x32xf32, #tpu.memory_space<vmem>>, vector<1x8x32xf32>
    %225 = vector.shape_cast %224 : vector<1x8x32xf32> to vector<8x32xf32>
    %c0_99 = arith.constant 0 : index
    %c0_100 = arith.constant 0 : index
    %c0_101 = arith.constant 0 : index
    %226 = vector.load %arg14[%c0_99, %c0_100, %c0_101] : memref<8x8x128xf32, #tpu.memory_space<vmem>>, vector<1x8x128xf32>
    %227 = vector.shape_cast %226 : vector<1x8x128xf32> to vector<8x128xf32>
    %cst_102 = arith.constant dense<0.000000e+00> : vector<8x128xf32>
    %228 = tpu.matmul %223, %214, %cst_102 {dimension_numbers = #tpu.dot_dimension_numbers<[1], [0], [0], [1], [0, 0, 1, 1], [], []>} : vector<8x32xf32>, vector<32x128xf32>, vector<8x128xf32> -> vector<8x128xf32>
    %229 = arith.addf %227, %228 : vector<8x128xf32>
    %230 = vector.extract_strided_slice %229 {offsets = [0, 0], sizes = [8, 96], strides = [1, 1]} : vector<8x128xf32> to vector<8x96xf32>
    %231 = arith.negf %230 : vector<8x96xf32>
    %232 = math.exp %231 : vector<8x96xf32>
    %cst_103 = arith.constant 1.000000e+00 : f32
    %233 = vector.broadcast %cst_103 : f32 to vector<8x96xf32>
    %234 = arith.addf %233, %232 : vector<8x96xf32>
    %235 = arith.divf %233, %234 : vector<8x96xf32>
    %236 = vector.extract_strided_slice %229 {offsets = [0, 96], sizes = [8, 32], strides = [1, 1]} : vector<8x128xf32> to vector<8x32xf32>
    %237 = math.tanh %236 : vector<8x32xf32>
    %238 = vector.extract_strided_slice %235 {offsets = [0, 0], sizes = [8, 32], strides = [1, 1]} : vector<8x96xf32> to vector<8x32xf32>
    %239 = vector.extract_strided_slice %235 {offsets = [0, 32], sizes = [8, 32], strides = [1, 1]} : vector<8x96xf32> to vector<8x32xf32>
    %240 = vector.extract_strided_slice %235 {offsets = [0, 64], sizes = [8, 32], strides = [1, 1]} : vector<8x96xf32> to vector<8x32xf32>
    %241 = arith.mulf %239, %225 : vector<8x32xf32>
    %242 = arith.mulf %238, %237 : vector<8x32xf32>
    %243 = arith.addf %241, %242 : vector<8x32xf32>
    %244 = math.tanh %243 : vector<8x32xf32>
    %245 = arith.mulf %240, %244 : vector<8x32xf32>
    %246 = arith.truncf %245 : vector<8x32xf32> to vector<8x32xbf16>
    %c0_104 = arith.constant 0 : index
    %c0_105 = arith.constant 0 : index
    %c0_106 = arith.constant 0 : index
    %247 = vector.load %arg15[%c0_104, %c0_105, %c0_106] : memref<8x8x32xbf16, #tpu.memory_space<vmem>>, vector<1x8x32xbf16>
    %248 = vector.shape_cast %247 : vector<1x8x32xbf16> to vector<8x32xbf16>
    %249 = vector.shape_cast %246 : vector<8x32xbf16> to vector<1x8x32xbf16>
    tpu.vector_store %arg15[%c0_104, %c0_105, %c0_106], %249 {strides = array<i32>} : memref<8x8x32xbf16, #tpu.memory_space<vmem>>, vector<1x8x32xbf16>,
    %c1_107 = arith.constant 1 : index
    %c0_108 = arith.constant 0 : index
    %c0_109 = arith.constant 0 : index
    %250 = vector.load %arg14[%c1_107, %c0_108, %c0_109] : memref<8x8x128xf32, #tpu.memory_space<vmem>>, vector<1x8x128xf32>
    %251 = vector.shape_cast %250 : vector<1x8x128xf32> to vector<8x128xf32>
    %cst_110 = arith.constant dense<0.000000e+00> : vector<8x128xf32>
    %252 = tpu.matmul %245, %214, %cst_110 {dimension_numbers = #tpu.dot_dimension_numbers<[1], [0], [0], [1], [0, 0, 1, 1], [], []>} : vector<8x32xf32>, vector<32x128xf32>, vector<8x128xf32> -> vector<8x128xf32>
    %253 = arith.addf %251, %252 : vector<8x128xf32>
    %254 = vector.extract_strided_slice %253 {offsets = [0, 0], sizes = [8, 96], strides = [1, 1]} : vector<8x128xf32> to vector<8x96xf32>
    %255 = arith.negf %254 : vector<8x96xf32>
    %256 = math.exp %255 : vector<8x96xf32>
    %cst_111 = arith.constant 1.000000e+00 : f32
    %257 = vector.broadcast %cst_111 : f32 to vector<8x96xf32>
    %258 = arith.addf %257, %256 : vector<8x96xf32>
    %259 = arith.divf %257, %258 : vector<8x96xf32>
    %260 = vector.extract_strided_slice %253 {offsets = [0, 96], sizes = [8, 32], strides = [1, 1]} : vector<8x128xf32> to vector<8x32xf32>
    %261 = math.tanh %260 : vector<8x32xf32>
    %262 = vector.extract_strided_slice %259 {offsets = [0, 0], sizes = [8, 32], strides = [1, 1]} : vector<8x96xf32> to vector<8x32xf32>
    %263 = vector.extract_strided_slice %259 {offsets = [0, 32], sizes = [8, 32], strides = [1, 1]} : vector<8x96xf32> to vector<8x32xf32>
    %264 = vector.extract_strided_slice %259 {offsets = [0, 64], sizes = [8, 32], strides = [1, 1]} : vector<8x96xf32> to vector<8x32xf32>
    %265 = arith.mulf %263, %243 : vector<8x32xf32>
    %266 = arith.mulf %262, %261 : vector<8x32xf32>
    %267 = arith.addf %265, %266 : vector<8x32xf32>
    %268 = math.tanh %267 : vector<8x32xf32>
    %269 = arith.mulf %264, %268 : vector<8x32xf32>
    %270 = arith.truncf %269 : vector<8x32xf32> to vector<8x32xbf16>
    %c1_112 = arith.constant 1 : index
    %c0_113 = arith.constant 0 : index
    %c0_114 = arith.constant 0 : index
    %271 = vector.load %arg15[%c1_112, %c0_113, %c0_114] : memref<8x8x32xbf16, #tpu.memory_space<vmem>>, vector<1x8x32xbf16>
    %272 = vector.shape_cast %271 : vector<1x8x32xbf16> to vector<8x32xbf16>
    %273 = vector.shape_cast %270 : vector<8x32xbf16> to vector<1x8x32xbf16>
    tpu.vector_store %arg15[%c1_112, %c0_113, %c0_114], %273 {strides = array<i32>} : memref<8x8x32xbf16, #tpu.memory_space<vmem>>, vector<1x8x32xbf16>,
    %c2_115 = arith.constant 2 : index
    %c0_116 = arith.constant 0 : index
    %c0_117 = arith.constant 0 : index
    %274 = vector.load %arg14[%c2_115, %c0_116, %c0_117] : memref<8x8x128xf32, #tpu.memory_space<vmem>>, vector<1x8x128xf32>
    %275 = vector.shape_cast %274 : vector<1x8x128xf32> to vector<8x128xf32>
    %cst_118 = arith.constant dense<0.000000e+00> : vector<8x128xf32>
    %276 = tpu.matmul %269, %214, %cst_118 {dimension_numbers = #tpu.dot_dimension_numbers<[1], [0], [0], [1], [0, 0, 1, 1], [], []>} : vector<8x32xf32>, vector<32x128xf32>, vector<8x128xf32> -> vector<8x128xf32>
    %277 = arith.addf %275, %276 : vector<8x128xf32>
    %278 = vector.extract_strided_slice %277 {offsets = [0, 0], sizes = [8, 96], strides = [1, 1]} : vector<8x128xf32> to vector<8x96xf32>
    %279 = arith.negf %278 : vector<8x96xf32>
    %280 = math.exp %279 : vector<8x96xf32>
    %cst_119 = arith.constant 1.000000e+00 : f32
    %281 = vector.broadcast %cst_119 : f32 to vector<8x96xf32>
    %282 = arith.addf %281, %280 : vector<8x96xf32>
    %283 = arith.divf %281, %282 : vector<8x96xf32>
    %284 = vector.extract_strided_slice %277 {offsets = [0, 96], sizes = [8, 32], strides = [1, 1]} : vector<8x128xf32> to vector<8x32xf32>
    %285 = math.tanh %284 : vector<8x32xf32>
    %286 = vector.extract_strided_slice %283 {offsets = [0, 0], sizes = [8, 32], strides = [1, 1]} : vector<8x96xf32> to vector<8x32xf32>
    %287 = vector.extract_strided_slice %283 {offsets = [0, 32], sizes = [8, 32], strides = [1, 1]} : vector<8x96xf32> to vector<8x32xf32>
    %288 = vector.extract_strided_slice %283 {offsets = [0, 64], sizes = [8, 32], strides = [1, 1]} : vector<8x96xf32> to vector<8x32xf32>
    %289 = arith.mulf %287, %267 : vector<8x32xf32>
    %290 = arith.mulf %286, %285 : vector<8x32xf32>
    %291 = arith.addf %289, %290 : vector<8x32xf32>
    %292 = math.tanh %291 : vector<8x32xf32>
    %293 = arith.mulf %288, %292 : vector<8x32xf32>
    %294 = arith.truncf %293 : vector<8x32xf32> to vector<8x32xbf16>
    %c2_120 = arith.constant 2 : index
    %c0_121 = arith.constant 0 : index
    %c0_122 = arith.constant 0 : index
    %295 = vector.load %arg15[%c2_120, %c0_121, %c0_122] : memref<8x8x32xbf16, #tpu.memory_space<vmem>>, vector<1x8x32xbf16>
    %296 = vector.shape_cast %295 : vector<1x8x32xbf16> to vector<8x32xbf16>
    %297 = vector.shape_cast %294 : vector<8x32xbf16> to vector<1x8x32xbf16>
    tpu.vector_store %arg15[%c2_120, %c0_121, %c0_122], %297 {strides = array<i32>} : memref<8x8x32xbf16, #tpu.memory_space<vmem>>, vector<1x8x32xbf16>,
    %c3_123 = arith.constant 3 : index
    %c0_124 = arith.constant 0 : index
    %c0_125 = arith.constant 0 : index
    %298 = vector.load %arg14[%c3_123, %c0_124, %c0_125] : memref<8x8x128xf32, #tpu.memory_space<vmem>>, vector<1x8x128xf32>
    %299 = vector.shape_cast %298 : vector<1x8x128xf32> to vector<8x128xf32>
    %cst_126 = arith.constant dense<0.000000e+00> : vector<8x128xf32>
    %300 = tpu.matmul %293, %214, %cst_126 {dimension_numbers = #tpu.dot_dimension_numbers<[1], [0], [0], [1], [0, 0, 1, 1], [], []>} : vector<8x32xf32>, vector<32x128xf32>, vector<8x128xf32> -> vector<8x128xf32>
    %301 = arith.addf %299, %300 : vector<8x128xf32>
    %302 = vector.extract_strided_slice %301 {offsets = [0, 0], sizes = [8, 96], strides = [1, 1]} : vector<8x128xf32> to vector<8x96xf32>
    %303 = arith.negf %302 : vector<8x96xf32>
    %304 = math.exp %303 : vector<8x96xf32>
    %cst_127 = arith.constant 1.000000e+00 : f32
    %305 = vector.broadcast %cst_127 : f32 to vector<8x96xf32>
    %306 = arith.addf %305, %304 : vector<8x96xf32>
    %307 = arith.divf %305, %306 : vector<8x96xf32>
    %308 = vector.extract_strided_slice %301 {offsets = [0, 96], sizes = [8, 32], strides = [1, 1]} : vector<8x128xf32> to vector<8x32xf32>
    %309 = math.tanh %308 : vector<8x32xf32>
    %310 = vector.extract_strided_slice %307 {offsets = [0, 0], sizes = [8, 32], strides = [1, 1]} : vector<8x96xf32> to vector<8x32xf32>
    %311 = vector.extract_strided_slice %307 {offsets = [0, 32], sizes = [8, 32], strides = [1, 1]} : vector<8x96xf32> to vector<8x32xf32>
    %312 = vector.extract_strided_slice %307 {offsets = [0, 64], sizes = [8, 32], strides = [1, 1]} : vector<8x96xf32> to vector<8x32xf32>
    %313 = arith.mulf %311, %291 : vector<8x32xf32>
    %314 = arith.mulf %310, %309 : vector<8x32xf32>
    %315 = arith.addf %313, %314 : vector<8x32xf32>
    %316 = math.tanh %315 : vector<8x32xf32>
    %317 = arith.mulf %312, %316 : vector<8x32xf32>
    %318 = arith.truncf %317 : vector<8x32xf32> to vector<8x32xbf16>
    %c3_128 = arith.constant 3 : index
    %c0_129 = arith.constant 0 : index
    %c0_130 = arith.constant 0 : index
    %319 = vector.load %arg15[%c3_128, %c0_129, %c0_130] : memref<8x8x32xbf16, #tpu.memory_space<vmem>>, vector<1x8x32xbf16>
    %320 = vector.shape_cast %319 : vector<1x8x32xbf16> to vector<8x32xbf16>
    %321 = vector.shape_cast %318 : vector<8x32xbf16> to vector<1x8x32xbf16>
    tpu.vector_store %arg15[%c3_128, %c0_129, %c0_130], %321 {strides = array<i32>} : memref<8x8x32xbf16, #tpu.memory_space<vmem>>, vector<1x8x32xbf16>,
    %c4_131 = arith.constant 4 : index
    %c0_132 = arith.constant 0 : index
    %c0_133 = arith.constant 0 : index
    %322 = vector.load %arg14[%c4_131, %c0_132, %c0_133] : memref<8x8x128xf32, #tpu.memory_space<vmem>>, vector<1x8x128xf32>
    %323 = vector.shape_cast %322 : vector<1x8x128xf32> to vector<8x128xf32>
    %cst_134 = arith.constant dense<0.000000e+00> : vector<8x128xf32>
    %324 = tpu.matmul %317, %214, %cst_134 {dimension_numbers = #tpu.dot_dimension_numbers<[1], [0], [0], [1], [0, 0, 1, 1], [], []>} : vector<8x32xf32>, vector<32x128xf32>, vector<8x128xf32> -> vector<8x128xf32>
    %325 = arith.addf %323, %324 : vector<8x128xf32>
    %326 = vector.extract_strided_slice %325 {offsets = [0, 0], sizes = [8, 96], strides = [1, 1]} : vector<8x128xf32> to vector<8x96xf32>
    %327 = arith.negf %326 : vector<8x96xf32>
    %328 = math.exp %327 : vector<8x96xf32>
    %cst_135 = arith.constant 1.000000e+00 : f32
    %329 = vector.broadcast %cst_135 : f32 to vector<8x96xf32>
    %330 = arith.addf %329, %328 : vector<8x96xf32>
    %331 = arith.divf %329, %330 : vector<8x96xf32>
    %332 = vector.extract_strided_slice %325 {offsets = [0, 96], sizes = [8, 32], strides = [1, 1]} : vector<8x128xf32> to vector<8x32xf32>
    %333 = math.tanh %332 : vector<8x32xf32>
    %334 = vector.extract_strided_slice %331 {offsets = [0, 0], sizes = [8, 32], strides = [1, 1]} : vector<8x96xf32> to vector<8x32xf32>
    %335 = vector.extract_strided_slice %331 {offsets = [0, 32], sizes = [8, 32], strides = [1, 1]} : vector<8x96xf32> to vector<8x32xf32>
    %336 = vector.extract_strided_slice %331 {offsets = [0, 64], sizes = [8, 32], strides = [1, 1]} : vector<8x96xf32> to vector<8x32xf32>
    %337 = arith.mulf %335, %315 : vector<8x32xf32>
    %338 = arith.mulf %334, %333 : vector<8x32xf32>
    %339 = arith.addf %337, %338 : vector<8x32xf32>
    %340 = math.tanh %339 : vector<8x32xf32>
    %341 = arith.mulf %336, %340 : vector<8x32xf32>
    %342 = arith.truncf %341 : vector<8x32xf32> to vector<8x32xbf16>
    %c4_136 = arith.constant 4 : index
    %c0_137 = arith.constant 0 : index
    %c0_138 = arith.constant 0 : index
    %343 = vector.load %arg15[%c4_136, %c0_137, %c0_138] : memref<8x8x32xbf16, #tpu.memory_space<vmem>>, vector<1x8x32xbf16>
    %344 = vector.shape_cast %343 : vector<1x8x32xbf16> to vector<8x32xbf16>
    %345 = vector.shape_cast %342 : vector<8x32xbf16> to vector<1x8x32xbf16>
    tpu.vector_store %arg15[%c4_136, %c0_137, %c0_138], %345 {strides = array<i32>} : memref<8x8x32xbf16, #tpu.memory_space<vmem>>, vector<1x8x32xbf16>,
    %c5_139 = arith.constant 5 : index
    %c0_140 = arith.constant 0 : index
    %c0_141 = arith.constant 0 : index
    %346 = vector.load %arg14[%c5_139, %c0_140, %c0_141] : memref<8x8x128xf32, #tpu.memory_space<vmem>>, vector<1x8x128xf32>
    %347 = vector.shape_cast %346 : vector<1x8x128xf32> to vector<8x128xf32>
    %cst_142 = arith.constant dense<0.000000e+00> : vector<8x128xf32>
    %348 = tpu.matmul %341, %214, %cst_142 {dimension_numbers = #tpu.dot_dimension_numbers<[1], [0], [0], [1], [0, 0, 1, 1], [], []>} : vector<8x32xf32>, vector<32x128xf32>, vector<8x128xf32> -> vector<8x128xf32>
    %349 = arith.addf %347, %348 : vector<8x128xf32>
    %350 = vector.extract_strided_slice %349 {offsets = [0, 0], sizes = [8, 96], strides = [1, 1]} : vector<8x128xf32> to vector<8x96xf32>
    %351 = arith.negf %350 : vector<8x96xf32>
    %352 = math.exp %351 : vector<8x96xf32>
    %cst_143 = arith.constant 1.000000e+00 : f32
    %353 = vector.broadcast %cst_143 : f32 to vector<8x96xf32>
    %354 = arith.addf %353, %352 : vector<8x96xf32>
    %355 = arith.divf %353, %354 : vector<8x96xf32>
    %356 = vector.extract_strided_slice %349 {offsets = [0, 96], sizes = [8, 32], strides = [1, 1]} : vector<8x128xf32> to vector<8x32xf32>
    %357 = math.tanh %356 : vector<8x32xf32>
    %358 = vector.extract_strided_slice %355 {offsets = [0, 0], sizes = [8, 32], strides = [1, 1]} : vector<8x96xf32> to vector<8x32xf32>
    %359 = vector.extract_strided_slice %355 {offsets = [0, 32], sizes = [8, 32], strides = [1, 1]} : vector<8x96xf32> to vector<8x32xf32>
    %360 = vector.extract_strided_slice %355 {offsets = [0, 64], sizes = [8, 32], strides = [1, 1]} : vector<8x96xf32> to vector<8x32xf32>
    %361 = arith.mulf %359, %339 : vector<8x32xf32>
    %362 = arith.mulf %358, %357 : vector<8x32xf32>
    %363 = arith.addf %361, %362 : vector<8x32xf32>
    %364 = math.tanh %363 : vector<8x32xf32>
    %365 = arith.mulf %360, %364 : vector<8x32xf32>
    %366 = arith.truncf %365 : vector<8x32xf32> to vector<8x32xbf16>
    %c5_144 = arith.constant 5 : index
    %c0_145 = arith.constant 0 : index
    %c0_146 = arith.constant 0 : index
    %367 = vector.load %arg15[%c5_144, %c0_145, %c0_146] : memref<8x8x32xbf16, #tpu.memory_space<vmem>>, vector<1x8x32xbf16>
    %368 = vector.shape_cast %367 : vector<1x8x32xbf16> to vector<8x32xbf16>
    %369 = vector.shape_cast %366 : vector<8x32xbf16> to vector<1x8x32xbf16>
    tpu.vector_store %arg15[%c5_144, %c0_145, %c0_146], %369 {strides = array<i32>} : memref<8x8x32xbf16, #tpu.memory_space<vmem>>, vector<1x8x32xbf16>,
    %c6_147 = arith.constant 6 : index
    %c0_148 = arith.constant 0 : index
    %c0_149 = arith.constant 0 : index
    %370 = vector.load %arg14[%c6_147, %c0_148, %c0_149] : memref<8x8x128xf32, #tpu.memory_space<vmem>>, vector<1x8x128xf32>
    %371 = vector.shape_cast %370 : vector<1x8x128xf32> to vector<8x128xf32>
    %cst_150 = arith.constant dense<0.000000e+00> : vector<8x128xf32>
    %372 = tpu.matmul %365, %214, %cst_150 {dimension_numbers = #tpu.dot_dimension_numbers<[1], [0], [0], [1], [0, 0, 1, 1], [], []>} : vector<8x32xf32>, vector<32x128xf32>, vector<8x128xf32> -> vector<8x128xf32>
    %373 = arith.addf %371, %372 : vector<8x128xf32>
    %374 = vector.extract_strided_slice %373 {offsets = [0, 0], sizes = [8, 96], strides = [1, 1]} : vector<8x128xf32> to vector<8x96xf32>
    %375 = arith.negf %374 : vector<8x96xf32>
    %376 = math.exp %375 : vector<8x96xf32>
    %cst_151 = arith.constant 1.000000e+00 : f32
    %377 = vector.broadcast %cst_151 : f32 to vector<8x96xf32>
    %378 = arith.addf %377, %376 : vector<8x96xf32>
    %379 = arith.divf %377, %378 : vector<8x96xf32>
    %380 = vector.extract_strided_slice %373 {offsets = [0, 96], sizes = [8, 32], strides = [1, 1]} : vector<8x128xf32> to vector<8x32xf32>
    %381 = math.tanh %380 : vector<8x32xf32>
    %382 = vector.extract_strided_slice %379 {offsets = [0, 0], sizes = [8, 32], strides = [1, 1]} : vector<8x96xf32> to vector<8x32xf32>
    %383 = vector.extract_strided_slice %379 {offsets = [0, 32], sizes = [8, 32], strides = [1, 1]} : vector<8x96xf32> to vector<8x32xf32>
    %384 = vector.extract_strided_slice %379 {offsets = [0, 64], sizes = [8, 32], strides = [1, 1]} : vector<8x96xf32> to vector<8x32xf32>
    %385 = arith.mulf %383, %363 : vector<8x32xf32>
    %386 = arith.mulf %382, %381 : vector<8x32xf32>
    %387 = arith.addf %385, %386 : vector<8x32xf32>
    %388 = math.tanh %387 : vector<8x32xf32>
    %389 = arith.mulf %384, %388 : vector<8x32xf32>
    %390 = arith.truncf %389 : vector<8x32xf32> to vector<8x32xbf16>
    %c6_152 = arith.constant 6 : index
    %c0_153 = arith.constant 0 : index
    %c0_154 = arith.constant 0 : index
    %391 = vector.load %arg15[%c6_152, %c0_153, %c0_154] : memref<8x8x32xbf16, #tpu.memory_space<vmem>>, vector<1x8x32xbf16>
    %392 = vector.shape_cast %391 : vector<1x8x32xbf16> to vector<8x32xbf16>
    %393 = vector.shape_cast %390 : vector<8x32xbf16> to vector<1x8x32xbf16>
    tpu.vector_store %arg15[%c6_152, %c0_153, %c0_154], %393 {strides = array<i32>} : memref<8x8x32xbf16, #tpu.memory_space<vmem>>, vector<1x8x32xbf16>,
    %c7_155 = arith.constant 7 : index
    %c0_156 = arith.constant 0 : index
    %c0_157 = arith.constant 0 : index
    %394 = vector.load %arg14[%c7_155, %c0_156, %c0_157] : memref<8x8x128xf32, #tpu.memory_space<vmem>>, vector<1x8x128xf32>
    %395 = vector.shape_cast %394 : vector<1x8x128xf32> to vector<8x128xf32>
    %cst_158 = arith.constant dense<0.000000e+00> : vector<8x128xf32>
    %396 = tpu.matmul %389, %214, %cst_158 {dimension_numbers = #tpu.dot_dimension_numbers<[1], [0], [0], [1], [0, 0, 1, 1], [], []>} : vector<8x32xf32>, vector<32x128xf32>, vector<8x128xf32> -> vector<8x128xf32>
    %397 = arith.addf %395, %396 : vector<8x128xf32>
    %398 = vector.extract_strided_slice %397 {offsets = [0, 0], sizes = [8, 96], strides = [1, 1]} : vector<8x128xf32> to vector<8x96xf32>
    %399 = arith.negf %398 : vector<8x96xf32>
    %400 = math.exp %399 : vector<8x96xf32>
    %cst_159 = arith.constant 1.000000e+00 : f32
    %401 = vector.broadcast %cst_159 : f32 to vector<8x96xf32>
    %402 = arith.addf %401, %400 : vector<8x96xf32>
    %403 = arith.divf %401, %402 : vector<8x96xf32>
    %404 = vector.extract_strided_slice %397 {offsets = [0, 96], sizes = [8, 32], strides = [1, 1]} : vector<8x128xf32> to vector<8x32xf32>
    %405 = math.tanh %404 : vector<8x32xf32>
    %406 = vector.extract_strided_slice %403 {offsets = [0, 0], sizes = [8, 32], strides = [1, 1]} : vector<8x96xf32> to vector<8x32xf32>
    %407 = vector.extract_strided_slice %403 {offsets = [0, 32], sizes = [8, 32], strides = [1, 1]} : vector<8x96xf32> to vector<8x32xf32>
    %408 = vector.extract_strided_slice %403 {offsets = [0, 64], sizes = [8, 32], strides = [1, 1]} : vector<8x96xf32> to vector<8x32xf32>
    %409 = arith.mulf %407, %387 : vector<8x32xf32>
    %410 = arith.mulf %406, %405 : vector<8x32xf32>
    %411 = arith.addf %409, %410 : vector<8x32xf32>
    %412 = math.tanh %411 : vector<8x32xf32>
    %413 = arith.mulf %408, %412 : vector<8x32xf32>
    %414 = arith.truncf %413 : vector<8x32xf32> to vector<8x32xbf16>
    %c7_160 = arith.constant 7 : index
    %c0_161 = arith.constant 0 : index
    %c0_162 = arith.constant 0 : index
    %415 = vector.load %arg15[%c7_160, %c0_161, %c0_162] : memref<8x8x32xbf16, #tpu.memory_space<vmem>>, vector<1x8x32xbf16>
    %416 = vector.shape_cast %415 : vector<1x8x32xbf16> to vector<8x32xbf16>
    %417 = vector.shape_cast %414 : vector<8x32xbf16> to vector<1x8x32xbf16>
    tpu.vector_store %arg15[%c7_160, %c0_161, %c0_162], %417 {strides = array<i32>} : memref<8x8x32xbf16, #tpu.memory_space<vmem>>, vector<1x8x32xbf16>,
    %c1_163 = arith.constant 1 : index
    %c0_164 = arith.constant 0 : index
    %c0_165 = arith.constant 0 : index
    %418 = vector.load %arg12[%c1_163, %c0_164, %c0_165] : memref<2x8x32xf32, #tpu.memory_space<vmem>>, vector<1x8x32xf32>
    %419 = vector.shape_cast %418 : vector<1x8x32xf32> to vector<8x32xf32>
    %420 = vector.shape_cast %413 : vector<8x32xf32> to vector<1x8x32xf32>
    tpu.vector_store %arg12[%c1_163, %c0_164, %c0_165], %420 {strides = array<i32>} : memref<2x8x32xf32, #tpu.memory_space<vmem>>, vector<1x8x32xf32>,
    %c1_166 = arith.constant 1 : index
    %c0_167 = arith.constant 0 : index
    %c0_168 = arith.constant 0 : index
    %421 = vector.load %arg13[%c1_166, %c0_167, %c0_168] : memref<2x8x32xf32, #tpu.memory_space<vmem>>, vector<1x8x32xf32>
    %422 = vector.shape_cast %421 : vector<1x8x32xf32> to vector<8x32xf32>
    %423 = vector.shape_cast %411 : vector<8x32xf32> to vector<1x8x32xf32>
    tpu.vector_store %arg13[%c1_166, %c0_167, %c0_168], %423 {strides = array<i32>} : memref<2x8x32xf32, #tpu.memory_space<vmem>>, vector<1x8x32xf32>,
    %c0_169 = arith.constant 0 : index
    %c0_170 = arith.constant 0 : index
    %424 = vector.load %arg9[%c0_169, %c0_170] : memref<32x128xbf16, #tpu.memory_space<vmem>>, vector<32x128xbf16>
    %c0_171 = arith.constant 0 : index
    %c0_172 = arith.constant 0 : index
    %425 = vector.load %arg10[%c0_171, %c0_172] : memref<1x128xf32, #tpu.memory_space<vmem>>, vector<1x128xf32>
    %c0_173 = arith.constant 0 : index
    %c0_174 = arith.constant 0 : index
    %c0_175 = arith.constant 0 : index
    %426 = vector.load %arg15[%c0_173, %c0_174, %c0_175] : memref<8x8x32xbf16, #tpu.memory_space<vmem>>, vector<8x8x32xbf16>
    %427 = vector.shape_cast %426 : vector<8x8x32xbf16> to vector<64x32xbf16>
    %cst_176 = arith.constant dense<0.000000e+00> : vector<64x128xf32>
    %428 = tpu.matmul %427, %424, %cst_176 {dimension_numbers = #tpu.dot_dimension_numbers<[1], [0], [0], [1], [0, 0, 1, 1], [], []>} : vector<64x32xbf16>, vector<32x128xbf16>, vector<64x128xf32> -> vector<64x128xf32>
    %429 = vector.broadcast %425 : vector<1x128xf32> to vector<64x128xf32>
    %430 = arith.addf %428, %429 : vector<64x128xf32>
    %431 = vector.shape_cast %430 : vector<64x128xf32> to vector<8x8x128xf32>
    %c0_177 = arith.constant 0 : index
    %c0_178 = arith.constant 0 : index
    %c0_179 = arith.constant 0 : index
    %432 = vector.load %arg11[%c0_177, %c0_178, %c0_179] : memref<8x8x128xf32, #tpu.memory_space<vmem>>, vector<8x8x128xf32>
    tpu.vector_store %arg11[%c0_177, %c0_178, %c0_179], %431 {strides = array<i32>} : memref<8x8x128xf32, #tpu.memory_space<vmem>>, vector<8x8x128xf32>,
    return
  }
}

</mosaic_0001>

<llo_original>
// kernel: tpu_custom_call.1
$region0: #{tpu_custom_call.1}
  #allocation0 [shape = 'u32[]', space=smem, size = 0x4, offset = 0x4, fixed_abs, tag = 'smem constant byte address 0x4 - core index']
  #allocation1 [shape = 'u32[144,128]{1,0:T(1,128)}', space=vmem, size = 0x12000, scoped, tag = 'internal scratch']
  #allocation2 [shape = 'f32[8,8,128]{2,1,0:T(8,128)}', space=vmem, size = 0x8000, scoped, tag = 'scratch operand']
  #allocation3 [shape = 'bf16[8,8,32]{2,1,0:T(8,128)(2,1)}', space=vmem, size = 0x4000, scoped, tag = 'scratch operand']
  %s0 = inlined_call_operand.hbm [shape: bf16[8,8,32], index: 0, kind: input, shape index: {}]
  %s1 = inlined_call_operand.hbm [shape: f32[2,8,32], index: 1, kind: input, shape index: {}]
  %s2 = inlined_call_operand.hbm [shape: f32[2,8,32], index: 2, kind: input, shape index: {}]
  %s3 = inlined_call_operand.hbm [shape: bf16[32,128], index: 3, kind: input, shape index: {}]
  %s4 = inlined_call_operand.hbm [shape: f32[1,128], index: 4, kind: input, shape index: {}]
  %s5 = inlined_call_operand.hbm [shape: f32[32,128], index: 5, kind: input, shape index: {}]
  %s6 = inlined_call_operand.hbm [shape: bf16[32,128], index: 6, kind: input, shape index: {}]
  %s7 = inlined_call_operand.hbm [shape: f32[1,128], index: 7, kind: input, shape index: {}]
  %s8 = inlined_call_operand.hbm [shape: f32[32,128], index: 8, kind: input, shape index: {}]
  %s9 = inlined_call_operand.vmem [shape: bf16[32,128], index: 9, kind: input, shape index: {}]
  %s10 = inlined_call_operand.vmem [shape: f32[1,128], index: 10, kind: input, shape index: {}]
  %s11 = inlined_call_operand.hbm [shape: f32[8,8,128], index: 11, kind: output, shape index: {0}]
  %s12 = inlined_call_operand.hbm [shape: f32[2,8,32], index: 12, kind: output, shape index: {1}]
  %s13 = inlined_call_operand.hbm [shape: f32[2,8,32], index: 13, kind: output, shape index: {2}]
  %14 = xla_tuple %s11, %s12, %s13
  %s15 = sld [smem:[#allocation0]]
  $region106: #{tpu_custom_call.1} parent=0
    _
  %s17 = ssub.s32 1, %s15
  %s18 = scalar_select 0, %s17, %s15
  $region1: #{tpu_custom_call.1} parent=0
    #allocation4 [shape = 'u8[16384]{0}', space=vmem, size = 0x4000, scoped, tag = 'input window, operand 0, single buffered']
    #allocation5 [shape = 's32[1]{0}', space=sflag, size = 0x4, scoped, tag = 'scoped memory for tpu_custom_call.1']
    #allocation6 [shape = 's32[1]{0}', space=sflag, size = 0x4, scoped, tag = 'scoped memory for tpu_custom_call.1']
    #allocation7 [shape = 'u8[8192]{0}', space=vmem, size = 0x2000, scoped, tag = 'input window, operand 1, single buffered']
    #allocation8 [shape = 's32[1]{0}', space=sflag, size = 0x4, scoped, tag = 'scoped memory for tpu_custom_call.1']
    #allocation9 [shape = 'u8[8192]{0}', space=vmem, size = 0x2000, scoped, tag = 'input window, operand 2, single buffered']
    #allocation10 [shape = 'u8[8192]{0}', space=vmem, size = 0x2000, scoped, tag = 'input window, operand 3, single buffered']
    #allocation11 [shape = 's32[1]{0}', space=sflag, size = 0x4, scoped, tag = 'scoped memory for tpu_custom_call.1']
    #allocation12 [shape = 'u8[512]{0}', space=vmem, size = 0x400, scoped, tag = 'input window, operand 4, single buffered']
    #allocation13 [shape = 'u8[16384]{0}', space=vmem, size = 0x4000, scoped, tag = 'input window, operand 5, single buffered']
    #allocation14 [shape = 's32[1]{0}', space=sflag, size = 0x4, scoped, tag = 'scoped memory for tpu_custom_call.1']
    #allocation15 [shape = 'u8[8192]{0}', space=vmem, size = 0x2000, scoped, tag = 'input window, operand 6, single buffered']
    #allocation16 [shape = 'u8[512]{0}', space=vmem, size = 0x400, scoped, tag = 'input window, operand 7, single buffered']
    #allocation17 [shape = 's32[1]{0}', space=sflag, size = 0x4, scoped, tag = 'scoped memory for tpu_custom_call.1']
    #allocation18 [shape = 'u8[16384]{0}', space=vmem, size = 0x4000, scoped, tag = 'input window, operand 8, single buffered']
    #allocation19 [shape = 'u8[32768]{0}', space=vmem, size = 0x8000, scoped, tag = 'output window, operand 0, single buffered']
    #allocation20 [shape = 'u8[8192]{0}', space=vmem, size = 0x2000, scoped, tag = 'output window, operand 1, single buffered']
    #allocation21 [shape = 's32[1]{0}', space=sflag, size = 0x4, scoped, tag = 'scoped memory for tpu_custom_call.1']
    #allocation22 [shape = 'u8[8192]{0}', space=vmem, size = 0x2000, scoped, tag = 'output window, operand 2, single buffered']
    %19 = vsyncpa [#allocation5], 0
    %20 = vsyncpa [#allocation8], 0
    %21 = vsyncpa [#allocation11], 0
    %22 = vsyncpa [#allocation14], 0
    %23 = vsyncpa [#allocation17], 0
    %24 = vsyncpa [#allocation6], 0
    %25 = vsyncpa [#allocation21], 0
    // Predicated region
    $region2: #{tpu_custom_call.1} parent=1 // pred_check
      _
    $region3: #{tpu_custom_call.1} parent=1 // pred_check_branch
      %27 = sbr.rel (0) target = $region5
    $region4: #{tpu_custom_call.1} parent=1 // pred_region
      %s29 = ssub.s32 512, 512
      %30 = vsyncadd [#allocation5], %s29
      %s31 = sshll.u32 [#allocation4], 4
      %s32 = int_to_ptr.vmem [resolvable:$true] %s31
      %37 = dma.hbm_to_vmem [thread:$0]  %s0, 512, %s32, [#allocation5], 64, 64, 4
    $region5: #{tpu_custom_call.1} parent=1 // pred_fallthru
      _
    // Predicated region
    $region6: #{tpu_custom_call.1} parent=1 // pred_check
      _
    $region7: #{tpu_custom_call.1} parent=1 // pred_check_branch
      %39 = sbr.rel (0) target = $region9
    $region8: #{tpu_custom_call.1} parent=1 // pred_region
      %s41 = ssub.s32 256, 256
      %42 = vsyncadd [#allocation8], %s41
      %s43 = sshll.u32 [#allocation7], 4
      %s44 = int_to_ptr.vmem [resolvable:$true] %s43
      %49 = dma.hbm_to_vmem [thread:$0]  %s1, 256, %s44, [#allocation8], 128, 128, 8
    $region9: #{tpu_custom_call.1} parent=1 // pred_fallthru
      _
    // Predicated region
    $region10: #{tpu_custom_call.1} parent=1 // pred_check
      _
    $region11: #{tpu_custom_call.1} parent=1 // pred_check_branch
      %51 = sbr.rel (0) target = $region13
    $region12: #{tpu_custom_call.1} parent=1 // pred_region
      %s53 = ssub.s32 256, 256
      %54 = vsyncadd [#allocation8], %s53
      %s55 = sshll.u32 [#allocation9], 4
      %s56 = int_to_ptr.vmem [resolvable:$true] %s55
      %61 = dma.hbm_to_vmem [thread:$0]  %s2, 256, %s56, [#allocation8], 128, 128, 8
    $region13: #{tpu_custom_call.1} parent=1 // pred_fallthru
      _
    // Predicated region
    $region14: #{tpu_custom_call.1} parent=1 // pred_check
      _
    $region15: #{tpu_custom_call.1} parent=1 // pred_check_branch
      %63 = sbr.rel (0) target = $region17
    $region16: #{tpu_custom_call.1} parent=1 // pred_region
      %s65 = ssub.s32 256, 256
      %66 = vsyncadd [#allocation11], %s65
      %s67 = sshll.u32 [#allocation10], 4
      %s68 = int_to_ptr.vmem [resolvable:$true] %s67
      %73 = dma.hbm_to_vmem [thread:$0]  %s3, 256, %s68, [#allocation11], 64, 64, 4
    $region17: #{tpu_custom_call.1} parent=1 // pred_fallthru
      _
    // Predicated region
    $region18: #{tpu_custom_call.1} parent=1 // pred_check
      _
    $region19: #{tpu_custom_call.1} parent=1 // pred_check_branch
      %75 = sbr.rel (0) target = $region21
    $region20: #{tpu_custom_call.1} parent=1 // pred_region
      %s77 = ssub.s32 16, 16
      %78 = vsyncadd [#allocation11], %s77
      %s80 = sshll.u32 [#allocation12], 4
      %s81 = int_to_ptr.vmem [resolvable:$true] %s80
      %83 = dma.hbm_to_vmem [thread:$0]  %s4, 16, %s81, [#allocation11]
    $region21: #{tpu_custom_call.1} parent=1 // pred_fallthru
      _
    // Predicated region
    $region22: #{tpu_custom_call.1} parent=1 // pred_check
      _
    $region23: #{tpu_custom_call.1} parent=1 // pred_check_branch
      %85 = sbr.rel (0) target = $region25
    $region24: #{tpu_custom_call.1} parent=1 // pred_region
      %s87 = ssub.s32 512, 512
      %88 = vsyncadd [#allocation14], %s87
      %s89 = sshll.u32 [#allocation13], 4
      %s90 = int_to_ptr.vmem [resolvable:$true] %s89
      %95 = dma.hbm_to_vmem [thread:$0]  %s5, 512, %s90, [#allocation14], 128, 128, 8
    $region25: #{tpu_custom_call.1} parent=1 // pred_fallthru
      _
    // Predicated region
    $region26: #{tpu_custom_call.1} parent=1 // pred_check
      _
    $region27: #{tpu_custom_call.1} parent=1 // pred_check_branch
      %97 = sbr.rel (0) target = $region29
    $region28: #{tpu_custom_call.1} parent=1 // pred_region
      %s99 = ssub.s32 256, 256
      %100 = vsyncadd [#allocation14], %s99
      %s101 = sshll.u32 [#allocation15], 4
      %s102 = int_to_ptr.vmem [resolvable:$true] %s101
      %107 = dma.hbm_to_vmem [thread:$0]  %s6, 256, %s102, [#allocation14], 64, 64, 4
    $region29: #{tpu_custom_call.1} parent=1 // pred_fallthru
      _
    // Predicated region
    $region30: #{tpu_custom_call.1} parent=1 // pred_check
      _
    $region31: #{tpu_custom_call.1} parent=1 // pred_check_branch
      %109 = sbr.rel (0) target = $region33
    $region32: #{tpu_custom_call.1} parent=1 // pred_region
      %s111 = ssub.s32 16, 16
      %112 = vsyncadd [#allocation17], %s111
      %s114 = sshll.u32 [#allocation16], 4
      %s115 = int_to_ptr.vmem [resolvable:$true] %s114
      %117 = dma.hbm_to_vmem [thread:$0]  %s7, 16, %s115, [#allocation17]
    $region33: #{tpu_custom_call.1} parent=1 // pred_fallthru
      _
    // Predicated region
    $region34: #{tpu_custom_call.1} parent=1 // pred_check
      _
    $region35: #{tpu_custom_call.1} parent=1 // pred_check_branch
      %119 = sbr.rel (0) target = $region37
    $region36: #{tpu_custom_call.1} parent=1 // pred_region
      %s121 = ssub.s32 512, 512
      %122 = vsyncadd [#allocation17], %s121
      %s123 = sshll.u32 [#allocation18], 4
      %s124 = int_to_ptr.vmem [resolvable:$true] %s123
      %129 = dma.hbm_to_vmem [thread:$0]  %s8, 512, %s124, [#allocation17], 128, 128, 8
    $region37: #{tpu_custom_call.1} parent=1 // pred_fallthru
      _
    // Predicated region
    $region38: #{tpu_custom_call.1} parent=1 // pred_check
      _
    $region39: #{tpu_custom_call.1} parent=1 // pred_check_branch
      %131 = sbr.rel (0) target = $region41
    $region40: #{tpu_custom_call.1} parent=1 // pred_region
      _
    $region41: #{tpu_custom_call.1} parent=1 // pred_fallthru
      _
    // Predicated region
    $region42: #{tpu_custom_call.1} parent=1 // pred_check
      _
    $region43: #{tpu_custom_call.1} parent=1 // pred_check_branch
      %133 = sbr.rel (0) target = $region45
    $region44: #{tpu_custom_call.1} parent=1 // pred_region
      _
    $region45: #{tpu_custom_call.1} parent=1 // pred_fallthru
      _
    // Predicated region
    $region46: #{tpu_custom_call.1} parent=1 // pred_check
      _
    $region47: #{tpu_custom_call.1} parent=1 // pred_check_branch
      %135 = sbr.rel (0) target = $region49
    $region48: #{tpu_custom_call.1} parent=1 // pred_region
      %136 = dma.done [#allocation5], 512
    $region49: #{tpu_custom_call.1} parent=1 // pred_fallthru
      _
    // Predicated region
    $region50: #{tpu_custom_call.1} parent=1 // pred_check
      _
    $region51: #{tpu_custom_call.1} parent=1 // pred_check_branch
      %138 = sbr.rel (0) target = $region53
    $region52: #{tpu_custom_call.1} parent=1 // pred_region
      %139 = dma.done [#allocation8], 256
    $region53: #{tpu_custom_call.1} parent=1 // pred_fallthru
      _
    // Predicated region
    $region54: #{tpu_custom_call.1} parent=1 // pred_check
      _
    $region55: #{tpu_custom_call.1} parent=1 // pred_check_branch
      %141 = sbr.rel (0) target = $region57
    $region56: #{tpu_custom_call.1} parent=1 // pred_region
      %142 = dma.done [#allocation8], 256
    $region57: #{tpu_custom_call.1} parent=1 // pred_fallthru
      _
    // Predicated region
    $region58: #{tpu_custom_call.1} parent=1 // pred_check
      _
    $region59: #{tpu_custom_call.1} parent=1 // pred_check_branch
      %144 = sbr.rel (0) target = $region61
    $region60: #{tpu_custom_call.1} parent=1 // pred_region
      %145 = dma.done [#allocation11], 256
    $region61: #{tpu_custom_call.1} parent=1 // pred_fallthru
      _
    // Predicated region
    $region62: #{tpu_custom_call.1} parent=1 // pred_check
      _
    $region63: #{tpu_custom_call.1} parent=1 // pred_check_branch
      %147 = sbr.rel (0) target = $region65
    $region64: #{tpu_custom_call.1} parent=1 // pred_region
      %148 = dma.done [#allocation11], 16
    $region65: #{tpu_custom_call.1} parent=1 // pred_fallthru
      _
    // Predicated region
    $region66: #{tpu_custom_call.1} parent=1 // pred_check
      _
    $region67: #{tpu_custom_call.1} parent=1 // pred_check_branch
      %150 = sbr.rel (0) target = $region69
    $region68: #{tpu_custom_call.1} parent=1 // pred_region
      %151 = dma.done [#allocation14], 512
    $region69: #{tpu_custom_call.1} parent=1 // pred_fallthru
      _
    // Predicated region
    $region70: #{tpu_custom_call.1} parent=1 // pred_check
      _
    $region71: #{tpu_custom_call.1} parent=1 // pred_check_branch
      %153 = sbr.rel (0) target = $region73
    $region72: #{tpu_custom_call.1} parent=1 // pred_region
      %154 = dma.done [#allocation14], 256
    $region73: #{tpu_custom_call.1} parent=1 // pred_fallthru
      _
    // Predicated region
    $region74: #{tpu_custom_call.1} parent=1 // pred_check
      _
    $region75: #{tpu_custom_call.1} parent=1 // pred_check_branch
      %156 = sbr.rel (0) target = $region77
    $region76: #{tpu_custom_call.1} parent=1 // pred_region
      %157 = dma.done [#allocation17], 16
    $region77: #{tpu_custom_call.1} parent=1 // pred_fallthru
      _
    // Predicated region
    $region78: #{tpu_custom_call.1} parent=1 // pred_check
      _
    $region79: #{tpu_custom_call.1} parent=1 // pred_check_branch
      %159 = sbr.rel (0) target = $region81
    $region80: #{tpu_custom_call.1} parent=1 // pred_region
      %160 = dma.done [#allocation17], 512
    $region81: #{tpu_custom_call.1} parent=1 // pred_fallthru
      _
    %v162 = vld [vmem:[#allocation12] sm:$0x1]
    %v163 = vld [vmem:[#allocation13] sm:$0xff]
    %v164 = vld [vmem:[#allocation13 + $0x8] sm:$0xff]
    %v165 = vld [vmem:[#allocation13 + $0x10] sm:$0xff]
    %v166 = vld [vmem:[#allocation13 + $0x18] sm:$0xff]
    %v167 = vld [vmem:[#allocation4] sm:$0xf]
    %v168 = vld [vmem:[#allocation4 + $0x4] sm:$0xf]
    %v169 = vld [vmem:[#allocation4 + $0x8] sm:$0xf]
    %v170 = vld [vmem:[#allocation4 + $0xc] sm:$0xf]
    %v171 = vld [vmem:[#allocation4 + $0x10] sm:$0xf]
    %v172 = vld [vmem:[#allocation4 + $0x14] sm:$0xf]
    %v173 = vld [vmem:[#allocation4 + $0x18] sm:$0xf]
    %v174 = vld [vmem:[#allocation4 + $0x1c] sm:$0xf]
    %v175 = vld [vmem:[#allocation10] sm:$0xf]
    %v176 = vld [vmem:[#allocation10 + $0x4] sm:$0xf]
    %v177 = vld [vmem:[#allocation10 + $0x8] sm:$0xf]
    %v178 = vld [vmem:[#allocation10 + $0xc] sm:$0xf]
    %v187 = vunpack.c.l.b16 %v167
    %v188 = vunpack.c.l.b16 %v168
    %v189 = vunpack.c.l.b16 %v169
    %v190 = vunpack.c.l.b16 %v170
    %v191 = vunpack.c.l.b16 %v171
    %v192 = vunpack.c.l.b16 %v172
    %v193 = vunpack.c.l.b16 %v173
    %v194 = vunpack.c.l.b16 %v174
    %v195 = vpack.c.b16 %v188, %v187
    %v196 = vpack.c.b16 %v190, %v189
    %v197 = vpack.c.b16 %v192, %v191
    %v198 = vpack.c.b16 %v194, %v193
    %v203 = vunpack.c.l.b16 %v175
    %v204 = vunpack.c.l.b16 %v176
    %v205 = vunpack.c.l.b16 %v177
    %v206 = vunpack.c.l.b16 %v178
    %v207 = vpack.c.b16 %v204, %v203
    %v208 = vpack.c.b16 %v206, %v205
    %vm211 = vcmask 261120
    %v213 = vsel %vm211, %v195, 0
    %v216 = vsel %vm211, %v196, 0
    %v219 = vsel %vm211, %v197, 0
    %v222 = vsel %vm211, %v198, 0
    %224 = vmatprep.subr.bf16.mxu0 0
    %225 = vmatpush1.bf16.msra.mxu0 0
    %226 = vmatprep.subr.bf16.mxu0 0
    %227 = vmatpush1.bf16.msra.mxu0 0
    %228 = vmatprep.subr.bf16.mxu0 0
    %229 = vmatpush1.bf16.msra.mxu0 0
    %230 = vmatprep.subr.bf16.mxu0 0
    %231 = vmatpush1.bf16.msra.mxu0 0
    %232 = vmatprep.subr.bf16.mxu0 0
    %233 = vmatpush1.bf16.msra.mxu0 0
    %234 = vmatprep.subr.bf16.mxu0 0
    %235 = vmatpush1.bf16.msra.mxu0 0
    %236 = vmatprep.subr.bf16.mxu0 0
    %237 = vmatpush1.bf16.msra.mxu0 %v208
    %238 = vmatprep.subr.bf16.mxu0 0
    %239 = vmatpush1.bf16.msra.mxu0 %v207
    %240 = vmatprep.subr.bf16.mxu0 0
    %241 = vmatpush2.bf16.msra.mxu0 0
    %242 = vmatprep.subr.bf16.mxu0 0
    %243 = vmatpush2.bf16.msra.mxu0 0
    %244 = vmatprep.subr.bf16.mxu0 0
    %245 = vmatpush2.bf16.msra.mxu0 0
    %246 = vmatprep.subr.bf16.mxu0 0
    %247 = vmatpush2.bf16.msra.mxu0 0
    %248 = vmatprep.subr.bf16.mxu0 0
    %249 = vmatpush2.bf16.msra.mxu0 0
    %250 = vmatprep.subr.bf16.mxu0 0
    %251 = vmatpush2.bf16.msra.mxu0 0
    %252 = vmatprep.subr.bf16.mxu0 0
    %253 = vmatpush2.bf16.msra.mxu0 0
    %254 = vmatprep.subr.bf16.mxu0 0
    %255 = vmatpush2.bf16.msra.mxu0 0
    %256 = vmatprep.mubr.bf16.mxu0 0
    %257 = vmatmul.mubr.bf16.gmra.mxu0 %v213
    %v258 = vpop.f32.mrf.mxu0
    %v259 = vadd.f32 0.0, %v258
    %v260 = vpop.f32.mrf.mxu0
    %v261 = vpop.f32.mrf.mxu0
    %v262 = vadd.f32 0.0, %v261
    %v263 = vpop.f32.mrf.mxu0
    %264 = vmatprep.mubr.bf16.mxu0 0
    %265 = vmatmul.mubr.bf16.gmra.mxu0 %v216
    %v266 = vpop.f32.mrf.mxu0
    %v267 = vadd.f32 0.0, %v266
    %v268 = vpop.f32.mrf.mxu0
    %v269 = vpop.f32.mrf.mxu0
    %v270 = vadd.f32 0.0, %v269
    %v271 = vpop.f32.mrf.mxu0
    %272 = vmatprep.mubr.bf16.mxu0 0
    %273 = vmatmul.mubr.bf16.gmra.mxu0 %v219
    %v274 = vpop.f32.mrf.mxu0
    %v275 = vadd.f32 0.0, %v274
    %v276 = vpop.f32.mrf.mxu0
    %v277 = vpop.f32.mrf.mxu0
    %v278 = vadd.f32 0.0, %v277
    %v279 = vpop.f32.mrf.mxu0
    %280 = vmatprep.mubr.bf16.mxu0 0
    %281 = vmatmul.mubr.bf16.gmra.mxu0 %v222
    %v282 = vpop.f32.mrf.mxu0
    %v283 = vadd.f32 0.0, %v282
    %v284 = vpop.f32.mrf.mxu0
    %v285 = vpop.f32.mrf.mxu0
    %v286 = vadd.f32 0.0, %v285
    %v287 = vpop.f32.mrf.mxu0
    %288 = vdwg.mxu0
    %v290 = vlaneseq
    %v291 = vshrl.u32 %v290, 7
    %v292 = vsub.s32 0, %v291
    %v293 = vrot.slane %v162, %v292
    %v295 = vadd.f32 %v293, %v259
    %v296 = vadd.f32 %v293, %v262
    %v297 = vadd.f32 %v293, %v267
    %v298 = vadd.f32 %v293, %v270
    %v299 = vadd.f32 %v293, %v275
    %v300 = vadd.f32 %v293, %v278
    %v301 = vadd.f32 %v293, %v283
    %v302 = vadd.f32 %v293, %v286
    %303 = vst [vmem:[#allocation2] sm:$0xff] %v295
    %304 = vst [vmem:[#allocation2 + $0x8] sm:$0xff] %v296
    %305 = vst [vmem:[#allocation2 + $0x10] sm:$0xff] %v297
    %306 = vst [vmem:[#allocation2 + $0x18] sm:$0xff] %v298
    %307 = vst [vmem:[#allocation2 + $0x20] sm:$0xff] %v299
    %308 = vst [vmem:[#allocation2 + $0x28] sm:$0xff] %v300
    %309 = vst [vmem:[#allocation2 + $0x30] sm:$0xff] %v301
    %310 = vst [vmem:[#allocation2 + $0x38] sm:$0xff] %v302
    %v311 = vld [vmem:[#allocation7] sm:$0xff]
    %v312 = vld [vmem:[#allocation9] sm:$0xff]
    %v313 = vld [vmem:[#allocation2] sm:$0xff]
    %v315 = vsel %vm211, %v311, 0
    %317 = vmatprep.subr.mxu0 0.0
    %318 = vmatpush1.msra.mxu0 0.0
    %319 = vmatprep.subr.mxu0 0.0
    %320 = vmatpush1.msra.mxu0 0.0
    %321 = vmatprep.subr.mxu0 0.0
    %322 = vmatpush1.msra.mxu0 0.0
    %323 = vmatprep.subr.mxu0 0.0
    %324 = vmatpush1.msra.mxu0 0.0
    %325 = vmatprep.subr.mxu0 0.0
    %326 = vmatpush1.msra.mxu0 0.0
    %327 = vmatprep.subr.mxu0 0.0
    %328 = vmatpush1.msra.mxu0 0.0
    %329 = vmatprep.subr.mxu0 0.0
    %330 = vmatpush1.msra.mxu0 0.0
    %331 = vmatprep.subr.mxu0 0.0
    %332 = vmatpush1.msra.mxu0 0.0
    %333 = vmatprep.subr.mxu0 0.0
    %334 = vmatpush1.msra.mxu0 0.0
    %335 = vmatprep.subr.mxu0 0.0
    %336 = vmatpush1.msra.mxu0 0.0
    %337 = vmatprep.subr.mxu0 0.0
    %338 = vmatpush1.msra.mxu0 0.0
    %339 = vmatprep.subr.mxu0 0.0
    %340 = vmatpush1.msra.mxu0 0.0
    %341 = vmatprep.subr.mxu0 0.0
    %342 = vmatpush1.msra.mxu0 %v166
    %343 = vmatprep.subr.mxu0 0.0
    %344 = vmatpush1.msra.mxu0 %v165
    %345 = vmatprep.subr.mxu0 0.0
    %346 = vmatpush1.msra.mxu0 %v164
    %347 = vmatprep.subr.mxu0 0.0
    %348 = vmatpush1.msra.mxu0 %v163
    %349 = vmatprep.subr.mxu0 0.0
    %350 = vmatpush2.msra.mxu0 0.0
    %351 = vmatprep.subr.mxu0 0.0
    %352 = vmatpush2.msra.mxu0 0.0
    %353 = vmatprep.subr.mxu0 0.0
    %354 = vmatpush2.msra.mxu0 0.0
    %355 = vmatprep.subr.mxu0 0.0
    %356 = vmatpush2.msra.mxu0 0.0
    %357 = vmatprep.subr.mxu0 0.0
    %358 = vmatpush2.msra.mxu0 0.0
    %359 = vmatprep.subr.mxu0 0.0
    %360 = vmatpush2.msra.mxu0 0.0
    %361 = vmatprep.subr.mxu0 0.0
    %362 = vmatpush2.msra.mxu0 0.0
    %363 = vmatprep.subr.mxu0 0.0
    %364 = vmatpush2.msra.mxu0 0.0
    %365 = vmatprep.subr.mxu0 0.0
    %366 = vmatpush2.msra.mxu0 0.0
    %367 = vmatprep.subr.mxu0 0.0
    %368 = vmatpush2.msra.mxu0 0.0
    %369 = vmatprep.subr.mxu0 0.0
    %370 = vmatpush2.msra.mxu0 0.0
    %371 = vmatprep.subr.mxu0 0.0
    %372 = vmatpush2.msra.mxu0 0.0
    %373 = vmatprep.subr.mxu0 0.0
    %374 = vmatpush2.msra.mxu0 0.0
    %375 = vmatprep.subr.mxu0 0.0
    %376 = vmatpush2.msra.mxu0 0.0
    %377 = vmatprep.subr.mxu0 0.0
    %378 = vmatpush2.msra.mxu0 0.0
    %379 = vmatprep.subr.mxu0 0.0
    %380 = vmatpush2.msra.mxu0 0.0
    %381 = vmatprep.mubr.f32.mxu0 0.0
    %382 = vmatmul.mubr.f32.gmra.mxu0 %v315
    %v383 = vpop.f32.mrf.mxu0
    %v384 = vadd.f32 0.0, %v383
    %v385 = vpop.f32.mrf.mxu0
    %386 = vdwg.mxu0
    %v387 = vadd.f32 %v313, %v384
    %v388 = vxor.u32 %v387, 2147483648
    %v389 = vmul.f32 %v388, 1.442695
    %v390 = vpow.pop %v389
    %v391 = vadd.f32 %v390, 1.0
    %v392 = vrcp.pop %v391
    %v393 = vmul.f32 1.0, %v392
    %v394 = vtanh.pop %v387
    %396 = vrot.lane.b32.xlu0 %v312, 32
    %v397 = vpop.permute.xlu0 %396
    %v399 = vmul.f32 %v393, %v397
    %401 = vrot.lane.b32.xlu0 %v394, 32
    %v402 = vpop.permute.xlu0 %401
    %v404 = vmul.f32 %v393, %v402
    %406 = vrot.lane.b32.xlu0 %v404, 32
    %v407 = vpop.permute.xlu0 %406
    %v409 = vadd.f32 %v399, %v407
    %v410 = vtanh.pop %v409
    %412 = vrot.lane.b32.xlu0 %v410, 32
    %v413 = vpop.permute.xlu0 %412
    %v415 = vmul.f32 %v393, %v413
    %v416 = vpack.c.bf16 %v415, %v415
    %v418 = vunpack.c.l.b16 %v416
    %v419 = vpack.c.b16 %v418, %v418
    %420 = vrot.lane.b32.xlu0 %v419, 64
    %v421 = vpop.permute.xlu0 %420
    %vm423 = vcmask 257024
    %424 = vst.msk [vmem:[#allocation3] sm:$0xf] %vm423, %v421
    %s425 = scalar_lea.vmem [#allocation2], 8
    %v426 = vld [vmem:[%s425] sm:$0xff]
    %428 = vrot.lane.b32.xlu0 %v415, 64
    %v429 = vpop.permute.xlu0 %428
    %v430 = vsel %vm211, %v429, 0
    %432 = vmatprep.subr.mxu0 0.0
    %433 = vmatpush1.msra.mxu0 0.0
    %434 = vmatprep.subr.mxu0 0.0
    %435 = vmatpush1.msra.mxu0 0.0
    %436 = vmatprep.subr.mxu0 0.0
    %437 = vmatpush1.msra.mxu0 0.0
    %438 = vmatprep.subr.mxu0 0.0
    %439 = vmatpush1.msra.mxu0 0.0
    %440 = vmatprep.subr.mxu0 0.0
    %441 = vmatpush1.msra.mxu0 0.0
    %442 = vmatprep.subr.mxu0 0.0
    %443 = vmatpush1.msra.mxu0 0.0
    %444 = vmatprep.subr.mxu0 0.0
    %445 = vmatpush1.msra.mxu0 0.0
    %446 = vmatprep.subr.mxu0 0.0
    %447 = vmatpush1.msra.mxu0 0.0
    %448 = vmatprep.subr.mxu0 0.0
    %449 = vmatpush1.msra.mxu0 0.0
    %450 = vmatprep.subr.mxu0 0.0
    %451 = vmatpush1.msra.mxu0 0.0
    %452 = vmatprep.subr.mxu0 0.0
    %453 = vmatpush1.msra.mxu0 0.0
    %454 = vmatprep.subr.mxu0 0.0
    %455 = vmatpush1.msra.mxu0 0.0
    %456 = vmatprep.subr.mxu0 0.0
    %457 = vmatpush1.msra.mxu0 %v166
    %458 = vmatprep.subr.mxu0 0.0
    %459 = vmatpush1.msra.mxu0 %v165
    %460 = vmatprep.subr.mxu0 0.0
    %461 = vmatpush1.msra.mxu0 %v164
    %462 = vmatprep.subr.mxu0 0.0
    %463 = vmatpush1.msra.mxu0 %v163
    %464 = vmatprep.subr.mxu0 0.0
    %465 = vmatpush2.msra.mxu0 0.0
    %466 = vmatprep.subr.mxu0 0.0
    %467 = vmatpush2.msra.mxu0 0.0
    %468 = vmatprep.subr.mxu0 0.0
    %469 = vmatpush2.msra.mxu0 0.0
    %470 = vmatprep.subr.mxu0 0.0
    %471 = vmatpush2.msra.mxu0 0.0
    %472 = vmatprep.subr.mxu0 0.0
    %473 = vmatpush2.msra.mxu0 0.0
    %474 = vmatprep.subr.mxu0 0.0
    %475 = vmatpush2.msra.mxu0 0.0
    %476 = vmatprep.subr.mxu0 0.0
    %477 = vmatpush2.msra.mxu0 0.0
    %478 = vmatprep.subr.mxu0 0.0
    %479 = vmatpush2.msra.mxu0 0.0
    %480 = vmatprep.subr.mxu0 0.0
    %481 = vmatpush2.msra.mxu0 0.0
    %482 = vmatprep.subr.mxu0 0.0
    %483 = vmatpush2.msra.mxu0 0.0
    %484 = vmatprep.subr.mxu0 0.0
    %485 = vmatpush2.msra.mxu0 0.0
    %486 = vmatprep.subr.mxu0 0.0
    %487 = vmatpush2.msra.mxu0 0.0
    %488 = vmatprep.subr.mxu0 0.0
    %489 = vmatpush2.msra.mxu0 0.0
    %490 = vmatprep.subr.mxu0 0.0
    %491 = vmatpush2.msra.mxu0 0.0
    %492 = vmatprep.subr.mxu0 0.0
    %493 = vmatpush2.msra.mxu0 0.0
    %494 = vmatprep.subr.mxu0 0.0
    %495 = vmatpush2.msra.mxu0 0.0
    %496 = vmatprep.mubr.f32.mxu0 0.0
    %497 = vmatmul.mubr.f32.gmra.mxu0 %v430
    %v498 = vpop.f32.mrf.mxu0
    %v499 = vadd.f32 0.0, %v498
    %v500 = vpop.f32.mrf.mxu0
    %501 = vdwg.mxu0
    %v502 = vadd.f32 %v426, %v499
    %v503 = vxor.u32 %v502, 2147483648
    %v504 = vmul.f32 %v503, 1.442695
    %v505 = vpow.pop %v504
    %v506 = vadd.f32 %v505, 1.0
    %v507 = vrcp.pop %v506
    %v508 = vmul.f32 1.0, %v507
    %v509 = vtanh.pop %v502
    %v510 = vmul.f32 %v508, %v409
    %512 = vrot.lane.b32.xlu0 %v509, 32
    %v513 = vpop.permute.xlu0 %512
    %v515 = vmul.f32 %v508, %v513
    %517 = vrot.lane.b32.xlu0 %v515, 32
    %v518 = vpop.permute.xlu0 %517
    %v520 = vadd.f32 %v510, %v518
    %v521 = vtanh.pop %v520
    %523 = vrot.lane.b32.xlu0 %v521, 32
    %v524 = vpop.permute.xlu0 %523
    %v526 = vmul.f32 %v508, %v524
    %v527 = vpack.c.bf16 %v526, %v526
    %v529 = vunpack.c.l.b16 %v527
    %v530 = vpack.c.b16 %v529, %v529
    %531 = vrot.lane.b32.xlu0 %v530, 64
    %v532 = vpop.permute.xlu0 %531
    %s534 = scalar_lea.vmem [#allocation3], 4
    %535 = vst.msk [vmem:[%s534] sm:$0xf] %vm423, %v532
    %s536 = scalar_lea.vmem [#allocation2], 16
    %v537 = vld [vmem:[%s536] sm:$0xff]
    %539 = vrot.lane.b32.xlu0 %v526, 64
    %v540 = vpop.permute.xlu0 %539
    %v541 = vsel %vm211, %v540, 0
    %543 = vmatprep.subr.mxu0 0.0
    %544 = vmatpush1.msra.mxu0 0.0
    %545 = vmatprep.subr.mxu0 0.0
    %546 = vmatpush1.msra.mxu0 0.0
    %547 = vmatprep.subr.mxu0 0.0
    %548 = vmatpush1.msra.mxu0 0.0
    %549 = vmatprep.subr.mxu0 0.0
    %550 = vmatpush1.msra.mxu0 0.0
    %551 = vmatprep.subr.mxu0 0.0
    %552 = vmatpush1.msra.mxu0 0.0
    %553 = vmatprep.subr.mxu0 0.0
    %554 = vmatpush1.msra.mxu0 0.0
    %555 = vmatprep.subr.mxu0 0.0
    %556 = vmatpush1.msra.mxu0 0.0
    %557 = vmatprep.subr.mxu0 0.0
    %558 = vmatpush1.msra.mxu0 0.0
    %559 = vmatprep.subr.mxu0 0.0
    %560 = vmatpush1.msra.mxu0 0.0
    %561 = vmatprep.subr.mxu0 0.0
    %562 = vmatpush1.msra.mxu0 0.0
    %563 = vmatprep.subr.mxu0 0.0
    %564 = vmatpush1.msra.mxu0 0.0
    %565 = vmatprep.subr.mxu0 0.0
    %566 = vmatpush1.msra.mxu0 0.0
    %567 = vmatprep.subr.mxu0 0.0
    %568 = vmatpush1.msra.mxu0 %v166
    %569 = vmatprep.subr.mxu0 0.0
    %570 = vmatpush1.msra.mxu0 %v165
    %571 = vmatprep.subr.mxu0 0.0
    %572 = vmatpush1.msra.mxu0 %v164
    %573 = vmatprep.subr.mxu0 0.0
    %574 = vmatpush1.msra.mxu0 %v163
    %575 = vmatprep.subr.mxu0 0.0
    %576 = vmatpush2.msra.mxu0 0.0
    %577 = vmatprep.subr.mxu0 0.0
    %578 = vmatpush2.msra.mxu0 0.0
    %579 = vmatprep.subr.mxu0 0.0
    %580 = vmatpush2.msra.mxu0 0.0
    %581 = vmatprep.subr.mxu0 0.0
    %582 = vmatpush2.msra.mxu0 0.0
    %583 = vmatprep.subr.mxu0 0.0
    %584 = vmatpush2.msra.mxu0 0.0
    %585 = vmatprep.subr.mxu0 0.0
    %586 = vmatpush2.msra.mxu0 0.0
    %587 = vmatprep.subr.mxu0 0.0
    %588 = vmatpush2.msra.mxu0 0.0
    %589 = vmatprep.subr.mxu0 0.0
    %590 = vmatpush2.msra.mxu0 0.0
    %591 = vmatprep.subr.mxu0 0.0
    %592 = vmatpush2.msra.mxu0 0.0
    %593 = vmatprep.subr.mxu0 0.0
    %594 = vmatpush2.msra.mxu0 0.0
    %595 = vmatprep.subr.mxu0 0.0
    %596 = vmatpush2.msra.mxu0 0.0
    %597 = vmatprep.subr.mxu0 0.0
    %598 = vmatpush2.msra.mxu0 0.0
    %599 = vmatprep.subr.mxu0 0.0
    %600 = vmatpush2.msra.mxu0 0.0
    %601 = vmatprep.subr.mxu0 0.0
    %602 = vmatpush2.msra.mxu0 0.0
    %603 = vmatprep.subr.mxu0 0.0
    %604 = vmatpush2.msra.mxu0 0.0
    %605 = vmatprep.subr.mxu0 0.0
    %606 = vmatpush2.msra.mxu0 0.0
    %607 = vmatprep.mubr.f32.mxu0 0.0
    %608 = vmatmul.mubr.f32.gmra.mxu0 %v541
    %v609 = vpop.f32.mrf.mxu0
    %v610 = vadd.f32 0.0, %v609
    %v611 = vpop.f32.mrf.mxu0
    %612 = vdwg.mxu0
    %v613 = vadd.f32 %v537, %v610
    %v614 = vxor.u32 %v613, 2147483648
    %v615 = vmul.f32 %v614, 1.442695
    %v616 = vpow.pop %v615
    %v617 = vadd.f32 %v616, 1.0
    %v618 = vrcp.pop %v617
    %v619 = vmul.f32 1.0, %v618
    %v620 = vtanh.pop %v613
    %v621 = vmul.f32 %v619, %v520
    %623 = vrot.lane.b32.xlu0 %v620, 32
    %v624 = vpop.permute.xlu0 %623
    %v626 = vmul.f32 %v619, %v624
    %628 = vrot.lane.b32.xlu0 %v626, 32
    %v629 = vpop.permute.xlu0 %628
    %v631 = vadd.f32 %v621, %v629
    %v632 = vtanh.pop %v631
    %634 = vrot.lane.b32.xlu0 %v632, 32
    %v635 = vpop.permute.xlu0 %634
    %v637 = vmul.f32 %v619, %v635
    %v638 = vpack.c.bf16 %v637, %v637
    %v640 = vunpack.c.l.b16 %v638
    %v641 = vpack.c.b16 %v640, %v640
    %642 = vrot.lane.b32.xlu0 %v641, 64
    %v643 = vpop.permute.xlu0 %642
    %s645 = scalar_lea.vmem [#allocation3], 8
    %646 = vst.msk [vmem:[%s645] sm:$0xf] %vm423, %v643
    %s647 = scalar_lea.vmem [#allocation2], 24
    %v648 = vld [vmem:[%s647] sm:$0xff]
    %650 = vrot.lane.b32.xlu0 %v637, 64
    %v651 = vpop.permute.xlu0 %650
    %v652 = vsel %vm211, %v651, 0
    %654 = vmatprep.subr.mxu0 0.0
    %655 = vmatpush1.msra.mxu0 0.0
    %656 = vmatprep.subr.mxu0 0.0
    %657 = vmatpush1.msra.mxu0 0.0
    %658 = vmatprep.subr.mxu0 0.0
    %659 = vmatpush1.msra.mxu0 0.0
    %660 = vmatprep.subr.mxu0 0.0
    %661 = vmatpush1.msra.mxu0 0.0
    %662 = vmatprep.subr.mxu0 0.0
    %663 = vmatpush1.msra.mxu0 0.0
    %664 = vmatprep.subr.mxu0 0.0
    %665 = vmatpush1.msra.mxu0 0.0
    %666 = vmatprep.subr.mxu0 0.0
    %667 = vmatpush1.msra.mxu0 0.0
    %668 = vmatprep.subr.mxu0 0.0
    %669 = vmatpush1.msra.mxu0 0.0
    %670 = vmatprep.subr.mxu0 0.0
    %671 = vmatpush1.msra.mxu0 0.0
    %672 = vmatprep.subr.mxu0 0.0
    %673 = vmatpush1.msra.mxu0 0.0
    %674 = vmatprep.subr.mxu0 0.0
    %675 = vmatpush1.msra.mxu0 0.0
    %676 = vmatprep.subr.mxu0 0.0
    %677 = vmatpush1.msra.mxu0 0.0
    %678 = vmatprep.subr.mxu0 0.0
    %679 = vmatpush1.msra.mxu0 %v166
    %680 = vmatprep.subr.mxu0 0.0
    %681 = vmatpush1.msra.mxu0 %v165
    %682 = vmatprep.subr.mxu0 0.0
    %683 = vmatpush1.msra.mxu0 %v164
    %684 = vmatprep.subr.mxu0 0.0
    %685 = vmatpush1.msra.mxu0 %v163
    %686 = vmatprep.subr.mxu0 0.0
    %687 = vmatpush2.msra.mxu0 0.0
    %688 = vmatprep.subr.mxu0 0.0
    %689 = vmatpush2.msra.mxu0 0.0
    %690 = vmatprep.subr.mxu0 0.0
    %691 = vmatpush2.msra.mxu0 0.0
    %692 = vmatprep.subr.mxu0 0.0
    %693 = vmatpush2.msra.mxu0 0.0
    %694 = vmatprep.subr.mxu0 0.0
    %695 = vmatpush2.msra.mxu0 0.0
    %696 = vmatprep.subr.mxu0 0.0
    %697 = vmatpush2.msra.mxu0 0.0
    %698 = vmatprep.subr.mxu0 0.0
    %699 = vmatpush2.msra.mxu0 0.0
    %700 = vmatprep.subr.mxu0 0.0
    %701 = vmatpush2.msra.mxu0 0.0
    %702 = vmatprep.subr.mxu0 0.0
    %703 = vmatpush2.msra.mxu0 0.0
    %704 = vmatprep.subr.mxu0 0.0
    %705 = vmatpush2.msra.mxu0 0.0
    %706 = vmatprep.subr.mxu0 0.0
    %707 = vmatpush2.msra.mxu0 0.0
    %708 = vmatprep.subr.mxu0 0.0
    %709 = vmatpush2.msra.mxu0 0.0
    %710 = vmatprep.subr.mxu0 0.0
    %711 = vmatpush2.msra.mxu0 0.0
    %712 = vmatprep.subr.mxu0 0.0
    %713 = vmatpush2.msra.mxu0 0.0
    %714 = vmatprep.subr.mxu0 0.0
    %715 = vmatpush2.msra.mxu0 0.0
    %716 = vmatprep.subr.mxu0 0.0
    %717 = vmatpush2.msra.mxu0 0.0
    %718 = vmatprep.mubr.f32.mxu0 0.0
    %719 = vmatmul.mubr.f32.gmra.mxu0 %v652
    %v720 = vpop.f32.mrf.mxu0
    %v721 = vadd.f32 0.0, %v720
    %v722 = vpop.f32.mrf.mxu0
    %723 = vdwg.mxu0
    %v724 = vadd.f32 %v648, %v721
    %v725 = vxor.u32 %v724, 2147483648
    %v726 = vmul.f32 %v725, 1.442695
    %v727 = vpow.pop %v726
    %v728 = vadd.f32 %v727, 1.0
    %v729 = vrcp.pop %v728
    %v730 = vmul.f32 1.0, %v729
    %v731 = vtanh.pop %v724
    %v732 = vmul.f32 %v730, %v631
    %734 = vrot.lane.b32.xlu0 %v731, 32
    %v735 = vpop.permute.xlu0 %734
    %v737 = vmul.f32 %v730, %v735
    %739 = vrot.lane.b32.xlu0 %v737, 32
    %v740 = vpop.permute.xlu0 %739
    %v742 = vadd.f32 %v732, %v740
    %v743 = vtanh.pop %v742
    %745 = vrot.lane.b32.xlu0 %v743, 32
    %v746 = vpop.permute.xlu0 %745
    %v748 = vmul.f32 %v730, %v746
    %v749 = vpack.c.bf16 %v748, %v748
    %v751 = vunpack.c.l.b16 %v749
    %v752 = vpack.c.b16 %v751, %v751
    %753 = vrot.lane.b32.xlu0 %v752, 64
    %v754 = vpop.permute.xlu0 %753
    %s756 = scalar_lea.vmem [#allocation3], 12
    %757 = vst.msk [vmem:[%s756] sm:$0xf] %vm423, %v754
    %s758 = scalar_lea.vmem [#allocation2], 32
    %v759 = vld [vmem:[%s758] sm:$0xff]
    %761 = vrot.lane.b32.xlu0 %v748, 64
    %v762 = vpop.permute.xlu0 %761
    %v763 = vsel %vm211, %v762, 0
    %765 = vmatprep.subr.mxu0 0.0
    %766 = vmatpush1.msra.mxu0 0.0
    %767 = vmatprep.subr.mxu0 0.0
    %768 = vmatpush1.msra.mxu0 0.0
    %769 = vmatprep.subr.mxu0 0.0
    %770 = vmatpush1.msra.mxu0 0.0
    %771 = vmatprep.subr.mxu0 0.0
    %772 = vmatpush1.msra.mxu0 0.0
    %773 = vmatprep.subr.mxu0 0.0
    %774 = vmatpush1.msra.mxu0 0.0
    %775 = vmatprep.subr.mxu0 0.0
    %776 = vmatpush1.msra.mxu0 0.0
    %777 = vmatprep.subr.mxu0 0.0
    %778 = vmatpush1.msra.mxu0 0.0
    %779 = vmatprep.subr.mxu0 0.0
    %780 = vmatpush1.msra.mxu0 0.0
    %781 = vmatprep.subr.mxu0 0.0
    %782 = vmatpush1.msra.mxu0 0.0
    %783 = vmatprep.subr.mxu0 0.0
    %784 = vmatpush1.msra.mxu0 0.0
    %785 = vmatprep.subr.mxu0 0.0
    %786 = vmatpush1.msra.mxu0 0.0
    %787 = vmatprep.subr.mxu0 0.0
    %788 = vmatpush1.msra.mxu0 0.0
    %789 = vmatprep.subr.mxu0 0.0
    %790 = vmatpush1.msra.mxu0 %v166
    %791 = vmatprep.subr.mxu0 0.0
    %792 = vmatpush1.msra.mxu0 %v165
    %793 = vmatprep.subr.mxu0 0.0
    %794 = vmatpush1.msra.mxu0 %v164
    %795 = vmatprep.subr.mxu0 0.0
    %796 = vmatpush1.msra.mxu0 %v163
    %797 = vmatprep.subr.mxu0 0.0
    %798 = vmatpush2.msra.mxu0 0.0
    %799 = vmatprep.subr.mxu0 0.0
    %800 = vmatpush2.msra.mxu0 0.0
    %801 = vmatprep.subr.mxu0 0.0
    %802 = vmatpush2.msra.mxu0 0.0
    %803 = vmatprep.subr.mxu0 0.0
    %804 = vmatpush2.msra.mxu0 0.0
    %805 = vmatprep.subr.mxu0 0.0
    %806 = vmatpush2.msra.mxu0 0.0
    %807 = vmatprep.subr.mxu0 0.0
    %808 = vmatpush2.msra.mxu0 0.0
    %809 = vmatprep.subr.mxu0 0.0
    %810 = vmatpush2.msra.mxu0 0.0
    %811 = vmatprep.subr.mxu0 0.0
    %812 = vmatpush2.msra.mxu0 0.0
    %813 = vmatprep.subr.mxu0 0.0
    %814 = vmatpush2.msra.mxu0 0.0
    %815 = vmatprep.subr.mxu0 0.0
    %816 = vmatpush2.msra.mxu0 0.0
    %817 = vmatprep.subr.mxu0 0.0
    %818 = vmatpush2.msra.mxu0 0.0
    %819 = vmatprep.subr.mxu0 0.0
    %820 = vmatpush2.msra.mxu0 0.0
    %821 = vmatprep.subr.mxu0 0.0
    %822 = vmatpush2.msra.mxu0 0.0
    %823 = vmatprep.subr.mxu0 0.0
    %824 = vmatpush2.msra.mxu0 0.0
    %825 = vmatprep.subr.mxu0 0.0
    %826 = vmatpush2.msra.mxu0 0.0
    %827 = vmatprep.subr.mxu0 0.0
    %828 = vmatpush2.msra.mxu0 0.0
    %829 = vmatprep.mubr.f32.mxu0 0.0
    %830 = vmatmul.mubr.f32.gmra.mxu0 %v763
    %v831 = vpop.f32.mrf.mxu0
    %v832 = vadd.f32 0.0, %v831
    %v833 = vpop.f32.mrf.mxu0
    %834 = vdwg.mxu0
    %v835 = vadd.f32 %v759, %v832
    %v836 = vxor.u32 %v835, 2147483648
    %v837 = vmul.f32 %v836, 1.442695
    %v838 = vpow.pop %v837
    %v839 = vadd.f32 %v838, 1.0
    %v840 = vrcp.pop %v839
    %v841 = vmul.f32 1.0, %v840
    %v842 = vtanh.pop %v835
    %v843 = vmul.f32 %v841, %v742
    %845 = vrot.lane.b32.xlu0 %v842, 32
    %v846 = vpop.permute.xlu0 %845
    %v848 = vmul.f32 %v841, %v846
    %850 = vrot.lane.b32.xlu0 %v848, 32
    %v851 = vpop.permute.xlu0 %850
    %v853 = vadd.f32 %v843, %v851
    %v854 = vtanh.pop %v853
    %856 = vrot.lane.b32.xlu0 %v854, 32
    %v857 = vpop.permute.xlu0 %856
    %v859 = vmul.f32 %v841, %v857
    %v860 = vpack.c.bf16 %v859, %v859
    %v862 = vunpack.c.l.b16 %v860
    %v863 = vpack.c.b16 %v862, %v862
    %864 = vrot.lane.b32.xlu0 %v863, 64
    %v865 = vpop.permute.xlu0 %864
    %s867 = scalar_lea.vmem [#allocation3], 16
    %868 = vst.msk [vmem:[%s867] sm:$0xf] %vm423, %v865
    %s869 = scalar_lea.vmem [#allocation2], 40
    %v870 = vld [vmem:[%s869] sm:$0xff]
    %872 = vrot.lane.b32.xlu0 %v859, 64
    %v873 = vpop.permute.xlu0 %872
    %v874 = vsel %vm211, %v873, 0
    %876 = vmatprep.subr.mxu0 0.0
    %877 = vmatpush1.msra.mxu0 0.0
    %878 = vmatprep.subr.mxu0 0.0
    %879 = vmatpush1.msra.mxu0 0.0
    %880 = vmatprep.subr.mxu0 0.0
    %881 = vmatpush1.msra.mxu0 0.0
    %882 = vmatprep.subr.mxu0 0.0
    %883 = vmatpush1.msra.mxu0 0.0
    %884 = vmatprep.subr.mxu0 0.0
    %885 = vmatpush1.msra.mxu0 0.0
    %886 = vmatprep.subr.mxu0 0.0
    %887 = vmatpush1.msra.mxu0 0.0
    %888 = vmatprep.subr.mxu0 0.0
    %889 = vmatpush1.msra.mxu0 0.0
    %890 = vmatprep.subr.mxu0 0.0
    %891 = vmatpush1.msra.mxu0 0.0
    %892 = vmatprep.subr.mxu0 0.0
    %893 = vmatpush1.msra.mxu0 0.0
    %894 = vmatprep.subr.mxu0 0.0
    %895 = vmatpush1.msra.mxu0 0.0
    %896 = vmatprep.subr.mxu0 0.0
    %897 = vmatpush1.msra.mxu0 0.0
    %898 = vmatprep.subr.mxu0 0.0
    %899 = vmatpush1.msra.mxu0 0.0
    %900 = vmatprep.subr.mxu0 0.0
    %901 = vmatpush1.msra.mxu0 %v166
    %902 = vmatprep.subr.mxu0 0.0
    %903 = vmatpush1.msra.mxu0 %v165
    %904 = vmatprep.subr.mxu0 0.0
    %905 = vmatpush1.msra.mxu0 %v164
    %906 = vmatprep.subr.mxu0 0.0
    %907 = vmatpush1.msra.mxu0 %v163
    %908 = vmatprep.subr.mxu0 0.0
    %909 = vmatpush2.msra.mxu0 0.0
    %910 = vmatprep.subr.mxu0 0.0
    %911 = vmatpush2.msra.mxu0 0.0
    %912 = vmatprep.subr.mxu0 0.0
    %913 = vmatpush2.msra.mxu0 0.0
    %914 = vmatprep.subr.mxu0 0.0
    %915 = vmatpush2.msra.mxu0 0.0
    %916 = vmatprep.subr.mxu0 0.0
    %917 = vmatpush2.msra.mxu0 0.0
    %918 = vmatprep.subr.mxu0 0.0
    %919 = vmatpush2.msra.mxu0 0.0
    %920 = vmatprep.subr.mxu0 0.0
    %921 = vmatpush2.msra.mxu0 0.0
    %922 = vmatprep.subr.mxu0 0.0
    %923 = vmatpush2.msra.mxu0 0.0
    %924 = vmatprep.subr.mxu0 0.0
    %925 = vmatpush2.msra.mxu0 0.0
    %926 = vmatprep.subr.mxu0 0.0
    %927 = vmatpush2.msra.mxu0 0.0
    %928 = vmatprep.subr.mxu0 0.0
    %929 = vmatpush2.msra.mxu0 0.0
    %930 = vmatprep.subr.mxu0 0.0
    %931 = vmatpush2.msra.mxu0 0.0
    %932 = vmatprep.subr.mxu0 0.0
    %933 = vmatpush2.msra.mxu0 0.0
    %934 = vmatprep.subr.mxu0 0.0
    %935 = vmatpush2.msra.mxu0 0.0
    %936 = vmatprep.subr.mxu0 0.0
    %937 = vmatpush2.msra.mxu0 0.0
    %938 = vmatprep.subr.mxu0 0.0
    %939 = vmatpush2.msra.mxu0 0.0
    %940 = vmatprep.mubr.f32.mxu0 0.0
    %941 = vmatmul.mubr.f32.gmra.mxu0 %v874
    %v942 = vpop.f32.mrf.mxu0
    %v943 = vadd.f32 0.0, %v942
    %v944 = vpop.f32.mrf.mxu0
    %945 = vdwg.mxu0
    %v946 = vadd.f32 %v870, %v943
    %v947 = vxor.u32 %v946, 2147483648
    %v948 = vmul.f32 %v947, 1.442695
    %v949 = vpow.pop %v948
    %v950 = vadd.f32 %v949, 1.0
    %v951 = vrcp.pop %v950
    %v952 = vmul.f32 1.0, %v951
    %v953 = vtanh.pop %v946
    %v954 = vmul.f32 %v952, %v853
    %956 = vrot.lane.b32.xlu0 %v953, 32
    %v957 = vpop.permute.xlu0 %956
    %v959 = vmul.f32 %v952, %v957
    %961 = vrot.lane.b32.xlu0 %v959, 32
    %v962 = vpop.permute.xlu0 %961
    %v964 = vadd.f32 %v954, %v962
    %v965 = vtanh.pop %v964
    %967 = vrot.lane.b32.xlu0 %v965, 32
    %v968 = vpop.permute.xlu0 %967
    %v970 = vmul.f32 %v952, %v968
    %v971 = vpack.c.bf16 %v970, %v970
    %v973 = vunpack.c.l.b16 %v971
    %v974 = vpack.c.b16 %v973, %v973
    %975 = vrot.lane.b32.xlu0 %v974, 64
    %v976 = vpop.permute.xlu0 %975
    %s978 = scalar_lea.vmem [#allocation3], 20
    %979 = vst.msk [vmem:[%s978] sm:$0xf] %vm423, %v976
    %s980 = scalar_lea.vmem [#allocation2], 48
    %v981 = vld [vmem:[%s980] sm:$0xff]
    %983 = vrot.lane.b32.xlu0 %v970, 64
    %v984 = vpop.permute.xlu0 %983
    %v985 = vsel %vm211, %v984, 0
    %987 = vmatprep.subr.mxu0 0.0
    %988 = vmatpush1.msra.mxu0 0.0
    %989 = vmatprep.subr.mxu0 0.0
    %990 = vmatpush1.msra.mxu0 0.0
    %991 = vmatprep.subr.mxu0 0.0
    %992 = vmatpush1.msra.mxu0 0.0
    %993 = vmatprep.subr.mxu0 0.0
    %994 = vmatpush1.msra.mxu0 0.0
    %995 = vmatprep.subr.mxu0 0.0
    %996 = vmatpush1.msra.mxu0 0.0
    %997 = vmatprep.subr.mxu0 0.0
    %998 = vmatpush1.msra.mxu0 0.0
    %999 = vmatprep.subr.mxu0 0.0
    %1000 = vmatpush1.msra.mxu0 0.0
    %1001 = vmatprep.subr.mxu0 0.0
    %1002 = vmatpush1.msra.mxu0 0.0
    %1003 = vmatprep.subr.mxu0 0.0
    %1004 = vmatpush1.msra.mxu0 0.0
    %1005 = vmatprep.subr.mxu0 0.0
    %1006 = vmatpush1.msra.mxu0 0.0
    %1007 = vmatprep.subr.mxu0 0.0
    %1008 = vmatpush1.msra.mxu0 0.0
    %1009 = vmatprep.subr.mxu0 0.0
    %1010 = vmatpush1.msra.mxu0 0.0
    %1011 = vmatprep.subr.mxu0 0.0
    %1012 = vmatpush1.msra.mxu0 %v166
    %1013 = vmatprep.subr.mxu0 0.0
    %1014 = vmatpush1.msra.mxu0 %v165
    %1015 = vmatprep.subr.mxu0 0.0
    %1016 = vmatpush1.msra.mxu0 %v164
    %1017 = vmatprep.subr.mxu0 0.0
    %1018 = vmatpush1.msra.mxu0 %v163
    %1019 = vmatprep.subr.mxu0 0.0
    %1020 = vmatpush2.msra.mxu0 0.0
    %1021 = vmatprep.subr.mxu0 0.0
    %1022 = vmatpush2.msra.mxu0 0.0
    %1023 = vmatprep.subr.mxu0 0.0
    %1024 = vmatpush2.msra.mxu0 0.0
    %1025 = vmatprep.subr.mxu0 0.0
    %1026 = vmatpush2.msra.mxu0 0.0
    %1027 = vmatprep.subr.mxu0 0.0
    %1028 = vmatpush2.msra.mxu0 0.0
    %1029 = vmatprep.subr.mxu0 0.0
    %1030 = vmatpush2.msra.mxu0 0.0
    %1031 = vmatprep.subr.mxu0 0.0
    %1032 = vmatpush2.msra.mxu0 0.0
    %1033 = vmatprep.subr.mxu0 0.0
    %1034 = vmatpush2.msra.mxu0 0.0
    %1035 = vmatprep.subr.mxu0 0.0
    %1036 = vmatpush2.msra.mxu0 0.0
    %1037 = vmatprep.subr.mxu0 0.0
    %1038 = vmatpush2.msra.mxu0 0.0
    %1039 = vmatprep.subr.mxu0 0.0
    %1040 = vmatpush2.msra.mxu0 0.0
    %1041 = vmatprep.subr.mxu0 0.0
    %1042 = vmatpush2.msra.mxu0 0.0
    %1043 = vmatprep.subr.mxu0 0.0
    %1044 = vmatpush2.msra.mxu0 0.0
    %1045 = vmatprep.subr.mxu0 0.0
    %1046 = vmatpush2.msra.mxu0 0.0
    %1047 = vmatprep.subr.mxu0 0.0
    %1048 = vmatpush2.msra.mxu0 0.0
    %1049 = vmatprep.subr.mxu0 0.0
    %1050 = vmatpush2.msra.mxu0 0.0
    %1051 = vmatprep.mubr.f32.mxu0 0.0
    %1052 = vmatmul.mubr.f32.gmra.mxu0 %v985
    %v1053 = vpop.f32.mrf.mxu0
    %v1054 = vadd.f32 0.0, %v1053
    %v1055 = vpop.f32.mrf.mxu0
    %1056 = vdwg.mxu0
    %v1057 = vadd.f32 %v981, %v1054
    %v1058 = vxor.u32 %v1057, 2147483648
    %v1059 = vmul.f32 %v1058, 1.442695
    %v1060 = vpow.pop %v1059
    %v1061 = vadd.f32 %v1060, 1.0
    %v1062 = vrcp.pop %v1061
    %v1063 = vmul.f32 1.0, %v1062
    %v1064 = vtanh.pop %v1057
    %v1065 = vmul.f32 %v1063, %v964
    %1067 = vrot.lane.b32.xlu0 %v1064, 32
    %v1068 = vpop.permute.xlu0 %1067
    %v1070 = vmul.f32 %v1063, %v1068
    %1072 = vrot.lane.b32.xlu0 %v1070, 32
    %v1073 = vpop.permute.xlu0 %1072
    %v1075 = vadd.f32 %v1065, %v1073
    %v1076 = vtanh.pop %v1075
    %1078 = vrot.lane.b32.xlu0 %v1076, 32
    %v1079 = vpop.permute.xlu0 %1078
    %v1081 = vmul.f32 %v1063, %v1079
    %v1082 = vpack.c.bf16 %v1081, %v1081
    %v1084 = vunpack.c.l.b16 %v1082
    %v1085 = vpack.c.b16 %v1084, %v1084
    %1086 = vrot.lane.b32.xlu0 %v1085, 64
    %v1087 = vpop.permute.xlu0 %1086
    %s1089 = scalar_lea.vmem [#allocation3], 24
    %1090 = vst.msk [vmem:[%s1089] sm:$0xf] %vm423, %v1087
    %s1091 = scalar_lea.vmem [#allocation2], 56
    %v1092 = vld [vmem:[%s1091] sm:$0xff]
    %1094 = vrot.lane.b32.xlu0 %v1081, 64
    %v1095 = vpop.permute.xlu0 %1094
    %v1096 = vsel %vm211, %v1095, 0
    %1098 = vmatprep.subr.mxu0 0.0
    %1099 = vmatpush1.msra.mxu0 0.0
    %1100 = vmatprep.subr.mxu0 0.0
    %1101 = vmatpush1.msra.mxu0 0.0
    %1102 = vmatprep.subr.mxu0 0.0
    %1103 = vmatpush1.msra.mxu0 0.0
    %1104 = vmatprep.subr.mxu0 0.0
    %1105 = vmatpush1.msra.mxu0 0.0
    %1106 = vmatprep.subr.mxu0 0.0
    %1107 = vmatpush1.msra.mxu0 0.0
    %1108 = vmatprep.subr.mxu0 0.0
    %1109 = vmatpush1.msra.mxu0 0.0
    %1110 = vmatprep.subr.mxu0 0.0
    %1111 = vmatpush1.msra.mxu0 0.0
    %1112 = vmatprep.subr.mxu0 0.0
    %1113 = vmatpush1.msra.mxu0 0.0
    %1114 = vmatprep.subr.mxu0 0.0
    %1115 = vmatpush1.msra.mxu0 0.0
    %1116 = vmatprep.subr.mxu0 0.0
    %1117 = vmatpush1.msra.mxu0 0.0
    %1118 = vmatprep.subr.mxu0 0.0
    %1119 = vmatpush1.msra.mxu0 0.0
    %1120 = vmatprep.subr.mxu0 0.0
    %1121 = vmatpush1.msra.mxu0 0.0
    %1122 = vmatprep.subr.mxu0 0.0
    %1123 = vmatpush1.msra.mxu0 %v166
    %1124 = vmatprep.subr.mxu0 0.0
    %1125 = vmatpush1.msra.mxu0 %v165
    %1126 = vmatprep.subr.mxu0 0.0
    %1127 = vmatpush1.msra.mxu0 %v164
    %1128 = vmatprep.subr.mxu0 0.0
    %1129 = vmatpush1.msra.mxu0 %v163
    %1130 = vmatprep.subr.mxu0 0.0
    %1131 = vmatpush2.msra.mxu0 0.0
    %1132 = vmatprep.subr.mxu0 0.0
    %1133 = vmatpush2.msra.mxu0 0.0
    %1134 = vmatprep.subr.mxu0 0.0
    %1135 = vmatpush2.msra.mxu0 0.0
    %1136 = vmatprep.subr.mxu0 0.0
    %1137 = vmatpush2.msra.mxu0 0.0
    %1138 = vmatprep.subr.mxu0 0.0
    %1139 = vmatpush2.msra.mxu0 0.0
    %1140 = vmatprep.subr.mxu0 0.0
    %1141 = vmatpush2.msra.mxu0 0.0
    %1142 = vmatprep.subr.mxu0 0.0
    %1143 = vmatpush2.msra.mxu0 0.0
    %1144 = vmatprep.subr.mxu0 0.0
    %1145 = vmatpush2.msra.mxu0 0.0
    %1146 = vmatprep.subr.mxu0 0.0
    %1147 = vmatpush2.msra.mxu0 0.0
    %1148 = vmatprep.subr.mxu0 0.0
    %1149 = vmatpush2.msra.mxu0 0.0
    %1150 = vmatprep.subr.mxu0 0.0
    %1151 = vmatpush2.msra.mxu0 0.0
    %1152 = vmatprep.subr.mxu0 0.0
    %1153 = vmatpush2.msra.mxu0 0.0
    %1154 = vmatprep.subr.mxu0 0.0
    %1155 = vmatpush2.msra.mxu0 0.0
    %1156 = vmatprep.subr.mxu0 0.0
    %1157 = vmatpush2.msra.mxu0 0.0
    %1158 = vmatprep.subr.mxu0 0.0
    %1159 = vmatpush2.msra.mxu0 0.0
    %1160 = vmatprep.subr.mxu0 0.0
    %1161 = vmatpush2.msra.mxu0 0.0
    %1162 = vmatprep.mubr.f32.mxu0 0.0
    %1163 = vmatmul.mubr.f32.gmra.mxu0 %v1096
    %v1164 = vpop.f32.mrf.mxu0
    %v1165 = vadd.f32 0.0, %v1164
    %v1166 = vpop.f32.mrf.mxu0
    %1167 = vdwg.mxu0
    %v1168 = vadd.f32 %v1092, %v1165
    %v1169 = vxor.u32 %v1168, 2147483648
    %v1170 = vmul.f32 %v1169, 1.442695
    %v1171 = vpow.pop %v1170
    %v1172 = vadd.f32 %v1171, 1.0
    %v1173 = vrcp.pop %v1172
    %v1174 = vmul.f32 1.0, %v1173
    %v1175 = vtanh.pop %v1168
    %v1176 = vmul.f32 %v1174, %v1075
    %1178 = vrot.lane.b32.xlu0 %v1175, 32
    %v1179 = vpop.permute.xlu0 %1178
    %v1181 = vmul.f32 %v1174, %v1179
    %1183 = vrot.lane.b32.xlu0 %v1181, 32
    %v1184 = vpop.permute.xlu0 %1183
    %v1186 = vadd.f32 %v1176, %v1184
    %v1187 = vtanh.pop %v1186
    %1189 = vrot.lane.b32.xlu0 %v1187, 32
    %v1190 = vpop.permute.xlu0 %1189
    %v1192 = vmul.f32 %v1174, %v1190
    %v1193 = vpack.c.bf16 %v1192, %v1192
    %v1195 = vunpack.c.l.b16 %v1193
    %v1196 = vpack.c.b16 %v1195, %v1195
    %1197 = vrot.lane.b32.xlu0 %v1196, 64
    %v1198 = vpop.permute.xlu0 %1197
    %s1200 = scalar_lea.vmem [#allocation3], 28
    %1201 = vst.msk [vmem:[%s1200] sm:$0xf] %vm423, %v1198
    %1203 = vrot.lane.b32.xlu0 %v1192, 64
    %v1204 = vpop.permute.xlu0 %1203
    %1206 = vst.msk [vmem:[#allocation20] sm:$0xff] %vm211, %v1204
    %1208 = vrot.lane.b32.xlu0 %v1186, 96
    %v1209 = vpop.permute.xlu0 %1208
    %1211 = vst.msk [vmem:[#allocation22] sm:$0xff] %vm211, %v1209
    %v1212 = vld [vmem:[#allocation15] sm:$0xf]
    %v1213 = vld [vmem:[#allocation15 + $0x4] sm:$0xf]
    %v1214 = vld [vmem:[#allocation15 + $0x8] sm:$0xf]
    %v1215 = vld [vmem:[#allocation15 + $0xc] sm:$0xf]
    %v1216 = vld [vmem:[#allocation16] sm:$0x1]
    %v1217 = vld [vmem:[#allocation18] sm:$0xff]
    %v1218 = vld [vmem:[#allocation18 + $0x8] sm:$0xff]
    %v1219 = vld [vmem:[#allocation18 + $0x10] sm:$0xff]
    %v1220 = vld [vmem:[#allocation18 + $0x18] sm:$0xff]
    %v1221 = vld [vmem:[#allocation3] sm:$0xf]
    %v1222 = vld [vmem:[#allocation3 + $0x4] sm:$0xf]
    %v1223 = vld [vmem:[#allocation3 + $0x8] sm:$0xf]
    %v1224 = vld [vmem:[#allocation3 + $0xc] sm:$0xf]
    %v1225 = vld [vmem:[#allocation3 + $0x10] sm:$0xf]
    %v1226 = vld [vmem:[#allocation3 + $0x14] sm:$0xf]
    %v1227 = vld [vmem:[#allocation3 + $0x18] sm:$0xf]
    %v1228 = vld [vmem:[#allocation3 + $0x1c] sm:$0xf]
    %v1230 = vlaneseq
    %v1231 = vshrl.u32 %v1230, 7
    %v1232 = vsub.s32 0, %v1231
    %v1233 = vrot.slane %v1216, %v1232
    %v1243 = vunpack.c.l.b16 %v1221
    %v1244 = vunpack.c.l.b16 %v1222
    %v1245 = vunpack.c.l.b16 %v1223
    %v1246 = vunpack.c.l.b16 %v1224
    %v1247 = vunpack.c.l.b16 %v1225
    %v1248 = vunpack.c.l.b16 %v1226
    %v1249 = vunpack.c.l.b16 %v1227
    %v1250 = vunpack.c.l.b16 %v1228
    %v1251 = vpack.c.b16 %v1244, %v1243
    %v1252 = vpack.c.b16 %v1246, %v1245
    %v1253 = vpack.c.b16 %v1248, %v1247
    %v1254 = vpack.c.b16 %v1250, %v1249
    %v1259 = vunpack.c.l.b16 %v1212
    %v1260 = vunpack.c.l.b16 %v1213
    %v1261 = vunpack.c.l.b16 %v1214
    %v1262 = vunpack.c.l.b16 %v1215
    %v1263 = vpack.c.b16 %v1260, %v1259
    %v1264 = vpack.c.b16 %v1262, %v1261
    %v1268 = vsel %vm211, %v1251, 0
    %v1271 = vsel %vm211, %v1252, 0
    %v1274 = vsel %vm211, %v1253, 0
    %v1277 = vsel %vm211, %v1254, 0
    %1279 = vmatprep.subr.bf16.mxu0 0
    %1280 = vmatpush1.bf16.msra.mxu0 0
    %1281 = vmatprep.subr.bf16.mxu0 0
    %1282 = vmatpush1.bf16.msra.mxu0 0
    %1283 = vmatprep.subr.bf16.mxu0 0
    %1284 = vmatpush1.bf16.msra.mxu0 0
    %1285 = vmatprep.subr.bf16.mxu0 0
    %1286 = vmatpush1.bf16.msra.mxu0 0
    %1287 = vmatprep.subr.bf16.mxu0 0
    %1288 = vmatpush1.bf16.msra.mxu0 0
    %1289 = vmatprep.subr.bf16.mxu0 0
    %1290 = vmatpush1.bf16.msra.mxu0 0
    %1291 = vmatprep.subr.bf16.mxu0 0
    %1292 = vmatpush1.bf16.msra.mxu0 %v1264
    %1293 = vmatprep.subr.bf16.mxu0 0
    %1294 = vmatpush1.bf16.msra.mxu0 %v1263
    %1295 = vmatprep.subr.bf16.mxu0 0
    %1296 = vmatpush2.bf16.msra.mxu0 0
    %1297 = vmatprep.subr.bf16.mxu0 0
    %1298 = vmatpush2.bf16.msra.mxu0 0
    %1299 = vmatprep.subr.bf16.mxu0 0
    %1300 = vmatpush2.bf16.msra.mxu0 0
    %1301 = vmatprep.subr.bf16.mxu0 0
    %1302 = vmatpush2.bf16.msra.mxu0 0
    %1303 = vmatprep.subr.bf16.mxu0 0
    %1304 = vmatpush2.bf16.msra.mxu0 0
    %1305 = vmatprep.subr.bf16.mxu0 0
    %1306 = vmatpush2.bf16.msra.mxu0 0
    %1307 = vmatprep.subr.bf16.mxu0 0
    %1308 = vmatpush2.bf16.msra.mxu0 0
    %1309 = vmatprep.subr.bf16.mxu0 0
    %1310 = vmatpush2.bf16.msra.mxu0 0
    %1311 = vmatprep.mubr.bf16.mxu0 0
    %1312 = vmatmul.mubr.bf16.gmra.mxu0 %v1268
    %v1313 = vpop.f32.mrf.mxu0
    %v1314 = vadd.f32 %v1233, %v1313
    %v1315 = vpop.f32.mrf.mxu0
    %v1316 = vpop.f32.mrf.mxu0
    %v1317 = vadd.f32 %v1233, %v1316
    %v1318 = vpop.f32.mrf.mxu0
    %1319 = vmatprep.mubr.bf16.mxu0 0
    %1320 = vmatmul.mubr.bf16.gmra.mxu0 %v1271
    %v1321 = vpop.f32.mrf.mxu0
    %v1322 = vadd.f32 %v1233, %v1321
    %v1323 = vpop.f32.mrf.mxu0
    %v1324 = vpop.f32.mrf.mxu0
    %v1325 = vadd.f32 %v1233, %v1324
    %v1326 = vpop.f32.mrf.mxu0
    %1327 = vmatprep.mubr.bf16.mxu0 0
    %1328 = vmatmul.mubr.bf16.gmra.mxu0 %v1274
    %v1329 = vpop.f32.mrf.mxu0
    %v1330 = vadd.f32 %v1233, %v1329
    %v1331 = vpop.f32.mrf.mxu0
    %v1332 = vpop.f32.mrf.mxu0
    %v1333 = vadd.f32 %v1233, %v1332
    %v1334 = vpop.f32.mrf.mxu0
    %1335 = vmatprep.mubr.bf16.mxu0 0
    %1336 = vmatmul.mubr.bf16.gmra.mxu0 %v1277
    %v1337 = vpop.f32.mrf.mxu0
    %v1338 = vadd.f32 %v1233, %v1337
    %v1339 = vpop.f32.mrf.mxu0
    %v1340 = vpop.f32.mrf.mxu0
    %v1341 = vadd.f32 %v1233, %v1340
    %v1342 = vpop.f32.mrf.mxu0
    %1343 = vdwg.mxu0
    %1344 = vst [vmem:[#allocation2] sm:$0xff] %v1314
    %1345 = vst [vmem:[#allocation2 + $0x8] sm:$0xff] %v1317
    %1346 = vst [vmem:[#allocation2 + $0x10] sm:$0xff] %v1322
    %1347 = vst [vmem:[#allocation2 + $0x18] sm:$0xff] %v1325
    %1348 = vst [vmem:[#allocation2 + $0x20] sm:$0xff] %v1330
    %1349 = vst [vmem:[#allocation2 + $0x28] sm:$0xff] %v1333
    %1350 = vst [vmem:[#allocation2 + $0x30] sm:$0xff] %v1338
    %1351 = vst [vmem:[#allocation2 + $0x38] sm:$0xff] %v1341
    %s1352 = scalar_lea.vmem [#allocation7], 8
    %v1353 = vld [vmem:[%s1352] sm:$0xff]
    %s1354 = scalar_lea.vmem [#allocation9], 8
    %v1355 = vld [vmem:[%s1354] sm:$0xff]
    %v1356 = vld [vmem:[#allocation2] sm:$0xff]
    %v1358 = vsel %vm211, %v1353, 0
    %1360 = vmatprep.subr.mxu0 0.0
    %1361 = vmatpush1.msra.mxu0 0.0
    %1362 = vmatprep.subr.mxu0 0.0
    %1363 = vmatpush1.msra.mxu0 0.0
    %1364 = vmatprep.subr.mxu0 0.0
    %1365 = vmatpush1.msra.mxu0 0.0
    %1366 = vmatprep.subr.mxu0 0.0
    %1367 = vmatpush1.msra.mxu0 0.0
    %1368 = vmatprep.subr.mxu0 0.0
    %1369 = vmatpush1.msra.mxu0 0.0
    %1370 = vmatprep.subr.mxu0 0.0
    %1371 = vmatpush1.msra.mxu0 0.0
    %1372 = vmatprep.subr.mxu0 0.0
    %1373 = vmatpush1.msra.mxu0 0.0
    %1374 = vmatprep.subr.mxu0 0.0
    %1375 = vmatpush1.msra.mxu0 0.0
    %1376 = vmatprep.subr.mxu0 0.0
    %1377 = vmatpush1.msra.mxu0 0.0
    %1378 = vmatprep.subr.mxu0 0.0
    %1379 = vmatpush1.msra.mxu0 0.0
    %1380 = vmatprep.subr.mxu0 0.0
    %1381 = vmatpush1.msra.mxu0 0.0
    %1382 = vmatprep.subr.mxu0 0.0
    %1383 = vmatpush1.msra.mxu0 0.0
    %1384 = vmatprep.subr.mxu0 0.0
    %1385 = vmatpush1.msra.mxu0 %v1220
    %1386 = vmatprep.subr.mxu0 0.0
    %1387 = vmatpush1.msra.mxu0 %v1219
    %1388 = vmatprep.subr.mxu0 0.0
    %1389 = vmatpush1.msra.mxu0 %v1218
    %1390 = vmatprep.subr.mxu0 0.0
    %1391 = vmatpush1.msra.mxu0 %v1217
    %1392 = vmatprep.subr.mxu0 0.0
    %1393 = vmatpush2.msra.mxu0 0.0
    %1394 = vmatprep.subr.mxu0 0.0
    %1395 = vmatpush2.msra.mxu0 0.0
    %1396 = vmatprep.subr.mxu0 0.0
    %1397 = vmatpush2.msra.mxu0 0.0
    %1398 = vmatprep.subr.mxu0 0.0
    %1399 = vmatpush2.msra.mxu0 0.0
    %1400 = vmatprep.subr.mxu0 0.0
    %1401 = vmatpush2.msra.mxu0 0.0
    %1402 = vmatprep.subr.mxu0 0.0
    %1403 = vmatpush2.msra.mxu0 0.0
    %1404 = vmatprep.subr.mxu0 0.0
    %1405 = vmatpush2.msra.mxu0 0.0
    %1406 = vmatprep.subr.mxu0 0.0
    %1407 = vmatpush2.msra.mxu0 0.0
    %1408 = vmatprep.subr.mxu0 0.0
    %1409 = vmatpush2.msra.mxu0 0.0
    %1410 = vmatprep.subr.mxu0 0.0
    %1411 = vmatpush2.msra.mxu0 0.0
    %1412 = vmatprep.subr.mxu0 0.0
    %1413 = vmatpush2.msra.mxu0 0.0
    %1414 = vmatprep.subr.mxu0 0.0
    %1415 = vmatpush2.msra.mxu0 0.0
    %1416 = vmatprep.subr.mxu0 0.0
    %1417 = vmatpush2.msra.mxu0 0.0
    %1418 = vmatprep.subr.mxu0 0.0
    %1419 = vmatpush2.msra.mxu0 0.0
    %1420 = vmatprep.subr.mxu0 0.0
    %1421 = vmatpush2.msra.mxu0 0.0
    %1422 = vmatprep.subr.mxu0 0.0
    %1423 = vmatpush2.msra.mxu0 0.0
    %1424 = vmatprep.mubr.f32.mxu0 0.0
    %1425 = vmatmul.mubr.f32.gmra.mxu0 %v1358
    %v1426 = vpop.f32.mrf.mxu0
    %v1427 = vadd.f32 0.0, %v1426
    %v1428 = vpop.f32.mrf.mxu0
    %1429 = vdwg.mxu0
    %v1430 = vadd.f32 %v1356, %v1427
    %v1431 = vxor.u32 %v1430, 2147483648
    %v1432 = vmul.f32 %v1431, 1.442695
    %v1433 = vpow.pop %v1432
    %v1434 = vadd.f32 %v1433, 1.0
    %v1435 = vrcp.pop %v1434
    %v1436 = vmul.f32 1.0, %v1435
    %v1437 = vtanh.pop %v1430
    %1439 = vrot.lane.b32.xlu0 %v1355, 32
    %v1440 = vpop.permute.xlu0 %1439
    %v1442 = vmul.f32 %v1436, %v1440
    %1444 = vrot.lane.b32.xlu0 %v1437, 32
    %v1445 = vpop.permute.xlu0 %1444
    %v1447 = vmul.f32 %v1436, %v1445
    %1449 = vrot.lane.b32.xlu0 %v1447, 32
    %v1450 = vpop.permute.xlu0 %1449
    %v1452 = vadd.f32 %v1442, %v1450
    %v1453 = vtanh.pop %v1452
    %1455 = vrot.lane.b32.xlu0 %v1453, 32
    %v1456 = vpop.permute.xlu0 %1455
    %v1458 = vmul.f32 %v1436, %v1456
    %v1459 = vpack.c.bf16 %v1458, %v1458
    %v1461 = vunpack.c.l.b16 %v1459
    %v1462 = vpack.c.b16 %v1461, %v1461
    %1463 = vrot.lane.b32.xlu0 %v1462, 64
    %v1464 = vpop.permute.xlu0 %1463
    %1466 = vst.msk [vmem:[#allocation3] sm:$0xf] %vm423, %v1464
    %v1467 = vld [vmem:[%s425] sm:$0xff]
    %1469 = vrot.lane.b32.xlu0 %v1458, 64
    %v1470 = vpop.permute.xlu0 %1469
    %v1471 = vsel %vm211, %v1470, 0
    %1473 = vmatprep.subr.mxu0 0.0
    %1474 = vmatpush1.msra.mxu0 0.0
    %1475 = vmatprep.subr.mxu0 0.0
    %1476 = vmatpush1.msra.mxu0 0.0
    %1477 = vmatprep.subr.mxu0 0.0
    %1478 = vmatpush1.msra.mxu0 0.0
    %1479 = vmatprep.subr.mxu0 0.0
    %1480 = vmatpush1.msra.mxu0 0.0
    %1481 = vmatprep.subr.mxu0 0.0
    %1482 = vmatpush1.msra.mxu0 0.0
    %1483 = vmatprep.subr.mxu0 0.0
    %1484 = vmatpush1.msra.mxu0 0.0
    %1485 = vmatprep.subr.mxu0 0.0
    %1486 = vmatpush1.msra.mxu0 0.0
    %1487 = vmatprep.subr.mxu0 0.0
    %1488 = vmatpush1.msra.mxu0 0.0
    %1489 = vmatprep.subr.mxu0 0.0
    %1490 = vmatpush1.msra.mxu0 0.0
    %1491 = vmatprep.subr.mxu0 0.0
    %1492 = vmatpush1.msra.mxu0 0.0
    %1493 = vmatprep.subr.mxu0 0.0
    %1494 = vmatpush1.msra.mxu0 0.0
    %1495 = vmatprep.subr.mxu0 0.0
    %1496 = vmatpush1.msra.mxu0 0.0
    %1497 = vmatprep.subr.mxu0 0.0
    %1498 = vmatpush1.msra.mxu0 %v1220
    %1499 = vmatprep.subr.mxu0 0.0
    %1500 = vmatpush1.msra.mxu0 %v1219
    %1501 = vmatprep.subr.mxu0 0.0
    %1502 = vmatpush1.msra.mxu0 %v1218
    %1503 = vmatprep.subr.mxu0 0.0
    %1504 = vmatpush1.msra.mxu0 %v1217
    %1505 = vmatprep.subr.mxu0 0.0
    %1506 = vmatpush2.msra.mxu0 0.0
    %1507 = vmatprep.subr.mxu0 0.0
    %1508 = vmatpush2.msra.mxu0 0.0
    %1509 = vmatprep.subr.mxu0 0.0
    %1510 = vmatpush2.msra.mxu0 0.0
    %1511 = vmatprep.subr.mxu0 0.0
    %1512 = vmatpush2.msra.mxu0 0.0
    %1513 = vmatprep.subr.mxu0 0.0
    %1514 = vmatpush2.msra.mxu0 0.0
    %1515 = vmatprep.subr.mxu0 0.0
    %1516 = vmatpush2.msra.mxu0 0.0
    %1517 = vmatprep.subr.mxu0 0.0
    %1518 = vmatpush2.msra.mxu0 0.0
    %1519 = vmatprep.subr.mxu0 0.0
    %1520 = vmatpush2.msra.mxu0 0.0
    %1521 = vmatprep.subr.mxu0 0.0
    %1522 = vmatpush2.msra.mxu0 0.0
    %1523 = vmatprep.subr.mxu0 0.0
    %1524 = vmatpush2.msra.mxu0 0.0
    %1525 = vmatprep.subr.mxu0 0.0
    %1526 = vmatpush2.msra.mxu0 0.0
    %1527 = vmatprep.subr.mxu0 0.0
    %1528 = vmatpush2.msra.mxu0 0.0
    %1529 = vmatprep.subr.mxu0 0.0
    %1530 = vmatpush2.msra.mxu0 0.0
    %1531 = vmatprep.subr.mxu0 0.0
    %1532 = vmatpush2.msra.mxu0 0.0
    %1533 = vmatprep.subr.mxu0 0.0
    %1534 = vmatpush2.msra.mxu0 0.0
    %1535 = vmatprep.subr.mxu0 0.0
    %1536 = vmatpush2.msra.mxu0 0.0
    %1537 = vmatprep.mubr.f32.mxu0 0.0
    %1538 = vmatmul.mubr.f32.gmra.mxu0 %v1471
    %v1539 = vpop.f32.mrf.mxu0
    %v1540 = vadd.f32 0.0, %v1539
    %v1541 = vpop.f32.mrf.mxu0
    %1542 = vdwg.mxu0
    %v1543 = vadd.f32 %v1467, %v1540
    %v1544 = vxor.u32 %v1543, 2147483648
    %v1545 = vmul.f32 %v1544, 1.442695
    %v1546 = vpow.pop %v1545
    %v1547 = vadd.f32 %v1546, 1.0
    %v1548 = vrcp.pop %v1547
    %v1549 = vmul.f32 1.0, %v1548
    %v1550 = vtanh.pop %v1543
    %v1551 = vmul.f32 %v1549, %v1452
    %1553 = vrot.lane.b32.xlu0 %v1550, 32
    %v1554 = vpop.permute.xlu0 %1553
    %v1556 = vmul.f32 %v1549, %v1554
    %1558 = vrot.lane.b32.xlu0 %v1556, 32
    %v1559 = vpop.permute.xlu0 %1558
    %v1561 = vadd.f32 %v1551, %v1559
    %v1562 = vtanh.pop %v1561
    %1564 = vrot.lane.b32.xlu0 %v1562, 32
    %v1565 = vpop.permute.xlu0 %1564
    %v1567 = vmul.f32 %v1549, %v1565
    %v1568 = vpack.c.bf16 %v1567, %v1567
    %v1570 = vunpack.c.l.b16 %v1568
    %v1571 = vpack.c.b16 %v1570, %v1570
    %1572 = vrot.lane.b32.xlu0 %v1571, 64
    %v1573 = vpop.permute.xlu0 %1572
    %1575 = vst.msk [vmem:[%s534] sm:$0xf] %vm423, %v1573
    %v1576 = vld [vmem:[%s536] sm:$0xff]
    %1578 = vrot.lane.b32.xlu0 %v1567, 64
    %v1579 = vpop.permute.xlu0 %1578
    %v1580 = vsel %vm211, %v1579, 0
    %1582 = vmatprep.subr.mxu0 0.0
    %1583 = vmatpush1.msra.mxu0 0.0
    %1584 = vmatprep.subr.mxu0 0.0
    %1585 = vmatpush1.msra.mxu0 0.0
    %1586 = vmatprep.subr.mxu0 0.0
    %1587 = vmatpush1.msra.mxu0 0.0
    %1588 = vmatprep.subr.mxu0 0.0
    %1589 = vmatpush1.msra.mxu0 0.0
    %1590 = vmatprep.subr.mxu0 0.0
    %1591 = vmatpush1.msra.mxu0 0.0
    %1592 = vmatprep.subr.mxu0 0.0
    %1593 = vmatpush1.msra.mxu0 0.0
    %1594 = vmatprep.subr.mxu0 0.0
    %1595 = vmatpush1.msra.mxu0 0.0
    %1596 = vmatprep.subr.mxu0 0.0
    %1597 = vmatpush1.msra.mxu0 0.0
    %1598 = vmatprep.subr.mxu0 0.0
    %1599 = vmatpush1.msra.mxu0 0.0
    %1600 = vmatprep.subr.mxu0 0.0
    %1601 = vmatpush1.msra.mxu0 0.0
    %1602 = vmatprep.subr.mxu0 0.0
    %1603 = vmatpush1.msra.mxu0 0.0
    %1604 = vmatprep.subr.mxu0 0.0
    %1605 = vmatpush1.msra.mxu0 0.0
    %1606 = vmatprep.subr.mxu0 0.0
    %1607 = vmatpush1.msra.mxu0 %v1220
    %1608 = vmatprep.subr.mxu0 0.0
    %1609 = vmatpush1.msra.mxu0 %v1219
    %1610 = vmatprep.subr.mxu0 0.0
    %1611 = vmatpush1.msra.mxu0 %v1218
    %1612 = vmatprep.subr.mxu0 0.0
    %1613 = vmatpush1.msra.mxu0 %v1217
    %1614 = vmatprep.subr.mxu0 0.0
    %1615 = vmatpush2.msra.mxu0 0.0
    %1616 = vmatprep.subr.mxu0 0.0
    %1617 = vmatpush2.msra.mxu0 0.0
    %1618 = vmatprep.subr.mxu0 0.0
    %1619 = vmatpush2.msra.mxu0 0.0
    %1620 = vmatprep.subr.mxu0 0.0
    %1621 = vmatpush2.msra.mxu0 0.0
    %1622 = vmatprep.subr.mxu0 0.0
    %1623 = vmatpush2.msra.mxu0 0.0
    %1624 = vmatprep.subr.mxu0 0.0
    %1625 = vmatpush2.msra.mxu0 0.0
    %1626 = vmatprep.subr.mxu0 0.0
    %1627 = vmatpush2.msra.mxu0 0.0
    %1628 = vmatprep.subr.mxu0 0.0
    %1629 = vmatpush2.msra.mxu0 0.0
    %1630 = vmatprep.subr.mxu0 0.0
    %1631 = vmatpush2.msra.mxu0 0.0
    %1632 = vmatprep.subr.mxu0 0.0
    %1633 = vmatpush2.msra.mxu0 0.0
    %1634 = vmatprep.subr.mxu0 0.0
    %1635 = vmatpush2.msra.mxu0 0.0
    %1636 = vmatprep.subr.mxu0 0.0
    %1637 = vmatpush2.msra.mxu0 0.0
    %1638 = vmatprep.subr.mxu0 0.0
    %1639 = vmatpush2.msra.mxu0 0.0
    %1640 = vmatprep.subr.mxu0 0.0
    %1641 = vmatpush2.msra.mxu0 0.0
    %1642 = vmatprep.subr.mxu0 0.0
    %1643 = vmatpush2.msra.mxu0 0.0
    %1644 = vmatprep.subr.mxu0 0.0
    %1645 = vmatpush2.msra.mxu0 0.0
    %1646 = vmatprep.mubr.f32.mxu0 0.0
    %1647 = vmatmul.mubr.f32.gmra.mxu0 %v1580
    %v1648 = vpop.f32.mrf.mxu0
    %v1649 = vadd.f32 0.0, %v1648
    %v1650 = vpop.f32.mrf.mxu0
    %1651 = vdwg.mxu0
    %v1652 = vadd.f32 %v1576, %v1649
    %v1653 = vxor.u32 %v1652, 2147483648
    %v1654 = vmul.f32 %v1653, 1.442695
    %v1655 = vpow.pop %v1654
    %v1656 = vadd.f32 %v1655, 1.0
    %v1657 = vrcp.pop %v1656
    %v1658 = vmul.f32 1.0, %v1657
    %v1659 = vtanh.pop %v1652
    %v1660 = vmul.f32 %v1658, %v1561
    %1662 = vrot.lane.b32.xlu0 %v1659, 32
    %v1663 = vpop.permute.xlu0 %1662
    %v1665 = vmul.f32 %v1658, %v1663
    %1667 = vrot.lane.b32.xlu0 %v1665, 32
    %v1668 = vpop.permute.xlu0 %1667
    %v1670 = vadd.f32 %v1660, %v1668
    %v1671 = vtanh.pop %v1670
    %1673 = vrot.lane.b32.xlu0 %v1671, 32
    %v1674 = vpop.permute.xlu0 %1673
    %v1676 = vmul.f32 %v1658, %v1674
    %v1677 = vpack.c.bf16 %v1676, %v1676
    %v1679 = vunpack.c.l.b16 %v1677
    %v1680 = vpack.c.b16 %v1679, %v1679
    %1681 = vrot.lane.b32.xlu0 %v1680, 64
    %v1682 = vpop.permute.xlu0 %1681
    %1684 = vst.msk [vmem:[%s645] sm:$0xf] %vm423, %v1682
    %v1685 = vld [vmem:[%s647] sm:$0xff]
    %1687 = vrot.lane.b32.xlu0 %v1676, 64
    %v1688 = vpop.permute.xlu0 %1687
    %v1689 = vsel %vm211, %v1688, 0
    %1691 = vmatprep.subr.mxu0 0.0
    %1692 = vmatpush1.msra.mxu0 0.0
    %1693 = vmatprep.subr.mxu0 0.0
    %1694 = vmatpush1.msra.mxu0 0.0
    %1695 = vmatprep.subr.mxu0 0.0
    %1696 = vmatpush1.msra.mxu0 0.0
    %1697 = vmatprep.subr.mxu0 0.0
    %1698 = vmatpush1.msra.mxu0 0.0
    %1699 = vmatprep.subr.mxu0 0.0
    %1700 = vmatpush1.msra.mxu0 0.0
    %1701 = vmatprep.subr.mxu0 0.0
    %1702 = vmatpush1.msra.mxu0 0.0
    %1703 = vmatprep.subr.mxu0 0.0
    %1704 = vmatpush1.msra.mxu0 0.0
    %1705 = vmatprep.subr.mxu0 0.0
    %1706 = vmatpush1.msra.mxu0 0.0
    %1707 = vmatprep.subr.mxu0 0.0
    %1708 = vmatpush1.msra.mxu0 0.0
    %1709 = vmatprep.subr.mxu0 0.0
    %1710 = vmatpush1.msra.mxu0 0.0
    %1711 = vmatprep.subr.mxu0 0.0
    %1712 = vmatpush1.msra.mxu0 0.0
    %1713 = vmatprep.subr.mxu0 0.0
    %1714 = vmatpush1.msra.mxu0 0.0
    %1715 = vmatprep.subr.mxu0 0.0
    %1716 = vmatpush1.msra.mxu0 %v1220
    %1717 = vmatprep.subr.mxu0 0.0
    %1718 = vmatpush1.msra.mxu0 %v1219
    %1719 = vmatprep.subr.mxu0 0.0
    %1720 = vmatpush1.msra.mxu0 %v1218
    %1721 = vmatprep.subr.mxu0 0.0
    %1722 = vmatpush1.msra.mxu0 %v1217
    %1723 = vmatprep.subr.mxu0 0.0
    %1724 = vmatpush2.msra.mxu0 0.0
    %1725 = vmatprep.subr.mxu0 0.0
    %1726 = vmatpush2.msra.mxu0 0.0
    %1727 = vmatprep.subr.mxu0 0.0
    %1728 = vmatpush2.msra.mxu0 0.0
    %1729 = vmatprep.subr.mxu0 0.0
    %1730 = vmatpush2.msra.mxu0 0.0
    %1731 = vmatprep.subr.mxu0 0.0
    %1732 = vmatpush2.msra.mxu0 0.0
    %1733 = vmatprep.subr.mxu0 0.0
    %1734 = vmatpush2.msra.mxu0 0.0
    %1735 = vmatprep.subr.mxu0 0.0
    %1736 = vmatpush2.msra.mxu0 0.0
    %1737 = vmatprep.subr.mxu0 0.0
    %1738 = vmatpush2.msra.mxu0 0.0
    %1739 = vmatprep.subr.mxu0 0.0
    %1740 = vmatpush2.msra.mxu0 0.0
    %1741 = vmatprep.subr.mxu0 0.0
    %1742 = vmatpush2.msra.mxu0 0.0
    %1743 = vmatprep.subr.mxu0 0.0
    %1744 = vmatpush2.msra.mxu0 0.0
    %1745 = vmatprep.subr.mxu0 0.0
    %1746 = vmatpush2.msra.mxu0 0.0
    %1747 = vmatprep.subr.mxu0 0.0
    %1748 = vmatpush2.msra.mxu0 0.0
    %1749 = vmatprep.subr.mxu0 0.0
    %1750 = vmatpush2.msra.mxu0 0.0
    %1751 = vmatprep.subr.mxu0 0.0
    %1752 = vmatpush2.msra.mxu0 0.0
    %1753 = vmatprep.subr.mxu0 0.0
    %1754 = vmatpush2.msra.mxu0 0.0
    %1755 = vmatprep.mubr.f32.mxu0 0.0
    %1756 = vmatmul.mubr.f32.gmra.mxu0 %v1689
    %v1757 = vpop.f32.mrf.mxu0
    %v1758 = vadd.f32 0.0, %v1757
    %v1759 = vpop.f32.mrf.mxu0
    %1760 = vdwg.mxu0
    %v1761 = vadd.f32 %v1685, %v1758
    %v1762 = vxor.u32 %v1761, 2147483648
    %v1763 = vmul.f32 %v1762, 1.442695
    %v1764 = vpow.pop %v1763
    %v1765 = vadd.f32 %v1764, 1.0
    %v1766 = vrcp.pop %v1765
    %v1767 = vmul.f32 1.0, %v1766
    %v1768 = vtanh.pop %v1761
    %v1769 = vmul.f32 %v1767, %v1670
    %1771 = vrot.lane.b32.xlu0 %v1768, 32
    %v1772 = vpop.permute.xlu0 %1771
    %v1774 = vmul.f32 %v1767, %v1772
    %1776 = vrot.lane.b32.xlu0 %v1774, 32
    %v1777 = vpop.permute.xlu0 %1776
    %v1779 = vadd.f32 %v1769, %v1777
    %v1780 = vtanh.pop %v1779
    %1782 = vrot.lane.b32.xlu0 %v1780, 32
    %v1783 = vpop.permute.xlu0 %1782
    %v1785 = vmul.f32 %v1767, %v1783
    %v1786 = vpack.c.bf16 %v1785, %v1785
    %v1788 = vunpack.c.l.b16 %v1786
    %v1789 = vpack.c.b16 %v1788, %v1788
    %1790 = vrot.lane.b32.xlu0 %v1789, 64
    %v1791 = vpop.permute.xlu0 %1790
    %1793 = vst.msk [vmem:[%s756] sm:$0xf] %vm423, %v1791
    %v1794 = vld [vmem:[%s758] sm:$0xff]
    %1796 = vrot.lane.b32.xlu0 %v1785, 64
    %v1797 = vpop.permute.xlu0 %1796
    %v1798 = vsel %vm211, %v1797, 0
    %1800 = vmatprep.subr.mxu0 0.0
    %1801 = vmatpush1.msra.mxu0 0.0
    %1802 = vmatprep.subr.mxu0 0.0
    %1803 = vmatpush1.msra.mxu0 0.0
    %1804 = vmatprep.subr.mxu0 0.0
    %1805 = vmatpush1.msra.mxu0 0.0
    %1806 = vmatprep.subr.mxu0 0.0
    %1807 = vmatpush1.msra.mxu0 0.0
    %1808 = vmatprep.subr.mxu0 0.0
    %1809 = vmatpush1.msra.mxu0 0.0
    %1810 = vmatprep.subr.mxu0 0.0
    %1811 = vmatpush1.msra.mxu0 0.0
    %1812 = vmatprep.subr.mxu0 0.0
    %1813 = vmatpush1.msra.mxu0 0.0
    %1814 = vmatprep.subr.mxu0 0.0
    %1815 = vmatpush1.msra.mxu0 0.0
    %1816 = vmatprep.subr.mxu0 0.0
    %1817 = vmatpush1.msra.mxu0 0.0
    %1818 = vmatprep.subr.mxu0 0.0
    %1819 = vmatpush1.msra.mxu0 0.0
    %1820 = vmatprep.subr.mxu0 0.0
    %1821 = vmatpush1.msra.mxu0 0.0
    %1822 = vmatprep.subr.mxu0 0.0
    %1823 = vmatpush1.msra.mxu0 0.0
    %1824 = vmatprep.subr.mxu0 0.0
    %1825 = vmatpush1.msra.mxu0 %v1220
    %1826 = vmatprep.subr.mxu0 0.0
    %1827 = vmatpush1.msra.mxu0 %v1219
    %1828 = vmatprep.subr.mxu0 0.0
    %1829 = vmatpush1.msra.mxu0 %v1218
    %1830 = vmatprep.subr.mxu0 0.0
    %1831 = vmatpush1.msra.mxu0 %v1217
    %1832 = vmatprep.subr.mxu0 0.0
    %1833 = vmatpush2.msra.mxu0 0.0
    %1834 = vmatprep.subr.mxu0 0.0
    %1835 = vmatpush2.msra.mxu0 0.0
    %1836 = vmatprep.subr.mxu0 0.0
    %1837 = vmatpush2.msra.mxu0 0.0
    %1838 = vmatprep.subr.mxu0 0.0
    %1839 = vmatpush2.msra.mxu0 0.0
    %1840 = vmatprep.subr.mxu0 0.0
    %1841 = vmatpush2.msra.mxu0 0.0
    %1842 = vmatprep.subr.mxu0 0.0
    %1843 = vmatpush2.msra.mxu0 0.0
    %1844 = vmatprep.subr.mxu0 0.0
    %1845 = vmatpush2.msra.mxu0 0.0
    %1846 = vmatprep.subr.mxu0 0.0
    %1847 = vmatpush2.msra.mxu0 0.0
    %1848 = vmatprep.subr.mxu0 0.0
    %1849 = vmatpush2.msra.mxu0 0.0
    %1850 = vmatprep.subr.mxu0 0.0
    %1851 = vmatpush2.msra.mxu0 0.0
    %1852 = vmatprep.subr.mxu0 0.0
    %1853 = vmatpush2.msra.mxu0 0.0
    %1854 = vmatprep.subr.mxu0 0.0
    %1855 = vmatpush2.msra.mxu0 0.0
    %1856 = vmatprep.subr.mxu0 0.0
    %1857 = vmatpush2.msra.mxu0 0.0
    %1858 = vmatprep.subr.mxu0 0.0
    %1859 = vmatpush2.msra.mxu0 0.0
    %1860 = vmatprep.subr.mxu0 0.0
    %1861 = vmatpush2.msra.mxu0 0.0
    %1862 = vmatprep.subr.mxu0 0.0
    %1863 = vmatpush2.msra.mxu0 0.0
    %1864 = vmatprep.mubr.f32.mxu0 0.0
    %1865 = vmatmul.mubr.f32.gmra.mxu0 %v1798
    %v1866 = vpop.f32.mrf.mxu0
    %v1867 = vadd.f32 0.0, %v1866
    %v1868 = vpop.f32.mrf.mxu0
    %1869 = vdwg.mxu0
    %v1870 = vadd.f32 %v1794, %v1867
    %v1871 = vxor.u32 %v1870, 2147483648
    %v1872 = vmul.f32 %v1871, 1.442695
    %v1873 = vpow.pop %v1872
    %v1874 = vadd.f32 %v1873, 1.0
    %v1875 = vrcp.pop %v1874
    %v1876 = vmul.f32 1.0, %v1875
    %v1877 = vtanh.pop %v1870
    %v1878 = vmul.f32 %v1876, %v1779
    %1880 = vrot.lane.b32.xlu0 %v1877, 32
    %v1881 = vpop.permute.xlu0 %1880
    %v1883 = vmul.f32 %v1876, %v1881
    %1885 = vrot.lane.b32.xlu0 %v1883, 32
    %v1886 = vpop.permute.xlu0 %1885
    %v1888 = vadd.f32 %v1878, %v1886
    %v1889 = vtanh.pop %v1888
    %1891 = vrot.lane.b32.xlu0 %v1889, 32
    %v1892 = vpop.permute.xlu0 %1891
    %v1894 = vmul.f32 %v1876, %v1892
    %v1895 = vpack.c.bf16 %v1894, %v1894
    %v1897 = vunpack.c.l.b16 %v1895
    %v1898 = vpack.c.b16 %v1897, %v1897
    %1899 = vrot.lane.b32.xlu0 %v1898, 64
    %v1900 = vpop.permute.xlu0 %1899
    %1902 = vst.msk [vmem:[%s867] sm:$0xf] %vm423, %v1900
    %v1903 = vld [vmem:[%s869] sm:$0xff]
    %1905 = vrot.lane.b32.xlu0 %v1894, 64
    %v1906 = vpop.permute.xlu0 %1905
    %v1907 = vsel %vm211, %v1906, 0
    %1909 = vmatprep.subr.mxu0 0.0
    %1910 = vmatpush1.msra.mxu0 0.0
    %1911 = vmatprep.subr.mxu0 0.0
    %1912 = vmatpush1.msra.mxu0 0.0
    %1913 = vmatprep.subr.mxu0 0.0
    %1914 = vmatpush1.msra.mxu0 0.0
    %1915 = vmatprep.subr.mxu0 0.0
    %1916 = vmatpush1.msra.mxu0 0.0
    %1917 = vmatprep.subr.mxu0 0.0
    %1918 = vmatpush1.msra.mxu0 0.0
    %1919 = vmatprep.subr.mxu0 0.0
    %1920 = vmatpush1.msra.mxu0 0.0
    %1921 = vmatprep.subr.mxu0 0.0
    %1922 = vmatpush1.msra.mxu0 0.0
    %1923 = vmatprep.subr.mxu0 0.0
    %1924 = vmatpush1.msra.mxu0 0.0
    %1925 = vmatprep.subr.mxu0 0.0
    %1926 = vmatpush1.msra.mxu0 0.0
    %1927 = vmatprep.subr.mxu0 0.0
    %1928 = vmatpush1.msra.mxu0 0.0
    %1929 = vmatprep.subr.mxu0 0.0
    %1930 = vmatpush1.msra.mxu0 0.0
    %1931 = vmatprep.subr.mxu0 0.0
    %1932 = vmatpush1.msra.mxu0 0.0
    %1933 = vmatprep.subr.mxu0 0.0
    %1934 = vmatpush1.msra.mxu0 %v1220
    %1935 = vmatprep.subr.mxu0 0.0
    %1936 = vmatpush1.msra.mxu0 %v1219
    %1937 = vmatprep.subr.mxu0 0.0
    %1938 = vmatpush1.msra.mxu0 %v1218
    %1939 = vmatprep.subr.mxu0 0.0
    %1940 = vmatpush1.msra.mxu0 %v1217
    %1941 = vmatprep.subr.mxu0 0.0
    %1942 = vmatpush2.msra.mxu0 0.0
    %1943 = vmatprep.subr.mxu0 0.0
    %1944 = vmatpush2.msra.mxu0 0.0
    %1945 = vmatprep.subr.mxu0 0.0
    %1946 = vmatpush2.msra.mxu0 0.0
    %1947 = vmatprep.subr.mxu0 0.0
    %1948 = vmatpush2.msra.mxu0 0.0
    %1949 = vmatprep.subr.mxu0 0.0
    %1950 = vmatpush2.msra.mxu0 0.0
    %1951 = vmatprep.subr.mxu0 0.0
    %1952 = vmatpush2.msra.mxu0 0.0
    %1953 = vmatprep.subr.mxu0 0.0
    %1954 = vmatpush2.msra.mxu0 0.0
    %1955 = vmatprep.subr.mxu0 0.0
    %1956 = vmatpush2.msra.mxu0 0.0
    %1957 = vmatprep.subr.mxu0 0.0
    %1958 = vmatpush2.msra.mxu0 0.0
    %1959 = vmatprep.subr.mxu0 0.0
    %1960 = vmatpush2.msra.mxu0 0.0
    %1961 = vmatprep.subr.mxu0 0.0
    %1962 = vmatpush2.msra.mxu0 0.0
    %1963 = vmatprep.subr.mxu0 0.0
    %1964 = vmatpush2.msra.mxu0 0.0
    %1965 = vmatprep.subr.mxu0 0.0
    %1966 = vmatpush2.msra.mxu0 0.0
    %1967 = vmatprep.subr.mxu0 0.0
    %1968 = vmatpush2.msra.mxu0 0.0
    %1969 = vmatprep.subr.mxu0 0.0
    %1970 = vmatpush2.msra.mxu0 0.0
    %1971 = vmatprep.subr.mxu0 0.0
    %1972 = vmatpush2.msra.mxu0 0.0
    %1973 = vmatprep.mubr.f32.mxu0 0.0
    %1974 = vmatmul.mubr.f32.gmra.mxu0 %v1907
    %v1975 = vpop.f32.mrf.mxu0
    %v1976 = vadd.f32 0.0, %v1975
    %v1977 = vpop.f32.mrf.mxu0
    %1978 = vdwg.mxu0
    %v1979 = vadd.f32 %v1903, %v1976
    %v1980 = vxor.u32 %v1979, 2147483648
    %v1981 = vmul.f32 %v1980, 1.442695
    %v1982 = vpow.pop %v1981
    %v1983 = vadd.f32 %v1982, 1.0
    %v1984 = vrcp.pop %v1983
    %v1985 = vmul.f32 1.0, %v1984
    %v1986 = vtanh.pop %v1979
    %v1987 = vmul.f32 %v1985, %v1888
    %1989 = vrot.lane.b32.xlu0 %v1986, 32
    %v1990 = vpop.permute.xlu0 %1989
    %v1992 = vmul.f32 %v1985, %v1990
    %1994 = vrot.lane.b32.xlu0 %v1992, 32
    %v1995 = vpop.permute.xlu0 %1994
    %v1997 = vadd.f32 %v1987, %v1995
    %v1998 = vtanh.pop %v1997
    %2000 = vrot.lane.b32.xlu0 %v1998, 32
    %v2001 = vpop.permute.xlu0 %2000
    %v2003 = vmul.f32 %v1985, %v2001
    %v2004 = vpack.c.bf16 %v2003, %v2003
    %v2006 = vunpack.c.l.b16 %v2004
    %v2007 = vpack.c.b16 %v2006, %v2006
    %2008 = vrot.lane.b32.xlu0 %v2007, 64
    %v2009 = vpop.permute.xlu0 %2008
    %2011 = vst.msk [vmem:[%s978] sm:$0xf] %vm423, %v2009
    %v2012 = vld [vmem:[%s980] sm:$0xff]
    %2014 = vrot.lane.b32.xlu0 %v2003, 64
    %v2015 = vpop.permute.xlu0 %2014
    %v2016 = vsel %vm211, %v2015, 0
    %2018 = vmatprep.subr.mxu0 0.0
    %2019 = vmatpush1.msra.mxu0 0.0
    %2020 = vmatprep.subr.mxu0 0.0
    %2021 = vmatpush1.msra.mxu0 0.0
    %2022 = vmatprep.subr.mxu0 0.0
    %2023 = vmatpush1.msra.mxu0 0.0
    %2024 = vmatprep.subr.mxu0 0.0
    %2025 = vmatpush1.msra.mxu0 0.0
    %2026 = vmatprep.subr.mxu0 0.0
    %2027 = vmatpush1.msra.mxu0 0.0
    %2028 = vmatprep.subr.mxu0 0.0
    %2029 = vmatpush1.msra.mxu0 0.0
    %2030 = vmatprep.subr.mxu0 0.0
    %2031 = vmatpush1.msra.mxu0 0.0
    %2032 = vmatprep.subr.mxu0 0.0
    %2033 = vmatpush1.msra.mxu0 0.0
    %2034 = vmatprep.subr.mxu0 0.0
    %2035 = vmatpush1.msra.mxu0 0.0
    %2036 = vmatprep.subr.mxu0 0.0
    %2037 = vmatpush1.msra.mxu0 0.0
    %2038 = vmatprep.subr.mxu0 0.0
    %2039 = vmatpush1.msra.mxu0 0.0
    %2040 = vmatprep.subr.mxu0 0.0
    %2041 = vmatpush1.msra.mxu0 0.0
    %2042 = vmatprep.subr.mxu0 0.0
    %2043 = vmatpush1.msra.mxu0 %v1220
    %2044 = vmatprep.subr.mxu0 0.0
    %2045 = vmatpush1.msra.mxu0 %v1219
    %2046 = vmatprep.subr.mxu0 0.0
    %2047 = vmatpush1.msra.mxu0 %v1218
    %2048 = vmatprep.subr.mxu0 0.0
    %2049 = vmatpush1.msra.mxu0 %v1217
    %2050 = vmatprep.subr.mxu0 0.0
    %2051 = vmatpush2.msra.mxu0 0.0
    %2052 = vmatprep.subr.mxu0 0.0
    %2053 = vmatpush2.msra.mxu0 0.0
    %2054 = vmatprep.subr.mxu0 0.0
    %2055 = vmatpush2.msra.mxu0 0.0
    %2056 = vmatprep.subr.mxu0 0.0
    %2057 = vmatpush2.msra.mxu0 0.0
    %2058 = vmatprep.subr.mxu0 0.0
    %2059 = vmatpush2.msra.mxu0 0.0
    %2060 = vmatprep.subr.mxu0 0.0
    %2061 = vmatpush2.msra.mxu0 0.0
    %2062 = vmatprep.subr.mxu0 0.0
    %2063 = vmatpush2.msra.mxu0 0.0
    %2064 = vmatprep.subr.mxu0 0.0
    %2065 = vmatpush2.msra.mxu0 0.0
    %2066 = vmatprep.subr.mxu0 0.0
    %2067 = vmatpush2.msra.mxu0 0.0
    %2068 = vmatprep.subr.mxu0 0.0
    %2069 = vmatpush2.msra.mxu0 0.0
    %2070 = vmatprep.subr.mxu0 0.0
    %2071 = vmatpush2.msra.mxu0 0.0
    %2072 = vmatprep.subr.mxu0 0.0
    %2073 = vmatpush2.msra.mxu0 0.0
    %2074 = vmatprep.subr.mxu0 0.0
    %2075 = vmatpush2.msra.mxu0 0.0
    %2076 = vmatprep.subr.mxu0 0.0
    %2077 = vmatpush2.msra.mxu0 0.0
    %2078 = vmatprep.subr.mxu0 0.0
    %2079 = vmatpush2.msra.mxu0 0.0
    %2080 = vmatprep.subr.mxu0 0.0
    %2081 = vmatpush2.msra.mxu0 0.0
    %2082 = vmatprep.mubr.f32.mxu0 0.0
    %2083 = vmatmul.mubr.f32.gmra.mxu0 %v2016
    %v2084 = vpop.f32.mrf.mxu0
    %v2085 = vadd.f32 0.0, %v2084
    %v2086 = vpop.f32.mrf.mxu0
    %2087 = vdwg.mxu0
    %v2088 = vadd.f32 %v2012, %v2085
    %v2089 = vxor.u32 %v2088, 2147483648
    %v2090 = vmul.f32 %v2089, 1.442695
    %v2091 = vpow.pop %v2090
    %v2092 = vadd.f32 %v2091, 1.0
    %v2093 = vrcp.pop %v2092
    %v2094 = vmul.f32 1.0, %v2093
    %v2095 = vtanh.pop %v2088
    %v2096 = vmul.f32 %v2094, %v1997
    %2098 = vrot.lane.b32.xlu0 %v2095, 32
    %v2099 = vpop.permute.xlu0 %2098
    %v2101 = vmul.f32 %v2094, %v2099
    %2103 = vrot.lane.b32.xlu0 %v2101, 32
    %v2104 = vpop.permute.xlu0 %2103
    %v2106 = vadd.f32 %v2096, %v2104
    %v2107 = vtanh.pop %v2106
    %2109 = vrot.lane.b32.xlu0 %v2107, 32
    %v2110 = vpop.permute.xlu0 %2109
    %v2112 = vmul.f32 %v2094, %v2110
    %v2113 = vpack.c.bf16 %v2112, %v2112
    %v2115 = vunpack.c.l.b16 %v2113
    %v2116 = vpack.c.b16 %v2115, %v2115
    %2117 = vrot.lane.b32.xlu0 %v2116, 64
    %v2118 = vpop.permute.xlu0 %2117
    %2120 = vst.msk [vmem:[%s1089] sm:$0xf] %vm423, %v2118
    %v2121 = vld [vmem:[%s1091] sm:$0xff]
    %2123 = vrot.lane.b32.xlu0 %v2112, 64
    %v2124 = vpop.permute.xlu0 %2123
    %v2125 = vsel %vm211, %v2124, 0
    %2127 = vmatprep.subr.mxu0 0.0
    %2128 = vmatpush1.msra.mxu0 0.0
    %2129 = vmatprep.subr.mxu0 0.0
    %2130 = vmatpush1.msra.mxu0 0.0
    %2131 = vmatprep.subr.mxu0 0.0
    %2132 = vmatpush1.msra.mxu0 0.0
    %2133 = vmatprep.subr.mxu0 0.0
    %2134 = vmatpush1.msra.mxu0 0.0
    %2135 = vmatprep.subr.mxu0 0.0
    %2136 = vmatpush1.msra.mxu0 0.0
    %2137 = vmatprep.subr.mxu0 0.0
    %2138 = vmatpush1.msra.mxu0 0.0
    %2139 = vmatprep.subr.mxu0 0.0
    %2140 = vmatpush1.msra.mxu0 0.0
    %2141 = vmatprep.subr.mxu0 0.0
    %2142 = vmatpush1.msra.mxu0 0.0
    %2143 = vmatprep.subr.mxu0 0.0
    %2144 = vmatpush1.msra.mxu0 0.0
    %2145 = vmatprep.subr.mxu0 0.0
    %2146 = vmatpush1.msra.mxu0 0.0
    %2147 = vmatprep.subr.mxu0 0.0
    %2148 = vmatpush1.msra.mxu0 0.0
    %2149 = vmatprep.subr.mxu0 0.0
    %2150 = vmatpush1.msra.mxu0 0.0
    %2151 = vmatprep.subr.mxu0 0.0
    %2152 = vmatpush1.msra.mxu0 %v1220
    %2153 = vmatprep.subr.mxu0 0.0
    %2154 = vmatpush1.msra.mxu0 %v1219
    %2155 = vmatprep.subr.mxu0 0.0
    %2156 = vmatpush1.msra.mxu0 %v1218
    %2157 = vmatprep.subr.mxu0 0.0
    %2158 = vmatpush1.msra.mxu0 %v1217
    %2159 = vmatprep.subr.mxu0 0.0
    %2160 = vmatpush2.msra.mxu0 0.0
    %2161 = vmatprep.subr.mxu0 0.0
    %2162 = vmatpush2.msra.mxu0 0.0
    %2163 = vmatprep.subr.mxu0 0.0
    %2164 = vmatpush2.msra.mxu0 0.0
    %2165 = vmatprep.subr.mxu0 0.0
    %2166 = vmatpush2.msra.mxu0 0.0
    %2167 = vmatprep.subr.mxu0 0.0
    %2168 = vmatpush2.msra.mxu0 0.0
    %2169 = vmatprep.subr.mxu0 0.0
    %2170 = vmatpush2.msra.mxu0 0.0
    %2171 = vmatprep.subr.mxu0 0.0
    %2172 = vmatpush2.msra.mxu0 0.0
    %2173 = vmatprep.subr.mxu0 0.0
    %2174 = vmatpush2.msra.mxu0 0.0
    %2175 = vmatprep.subr.mxu0 0.0
    %2176 = vmatpush2.msra.mxu0 0.0
    %2177 = vmatprep.subr.mxu0 0.0
    %2178 = vmatpush2.msra.mxu0 0.0
    %2179 = vmatprep.subr.mxu0 0.0
    %2180 = vmatpush2.msra.mxu0 0.0
    %2181 = vmatprep.subr.mxu0 0.0
    %2182 = vmatpush2.msra.mxu0 0.0
    %2183 = vmatprep.subr.mxu0 0.0
    %2184 = vmatpush2.msra.mxu0 0.0
    %2185 = vmatprep.subr.mxu0 0.0
    %2186 = vmatpush2.msra.mxu0 0.0
    %2187 = vmatprep.subr.mxu0 0.0
    %2188 = vmatpush2.msra.mxu0 0.0
    %2189 = vmatprep.subr.mxu0 0.0
    %2190 = vmatpush2.msra.mxu0 0.0
    %2191 = vmatprep.mubr.f32.mxu0 0.0
    %2192 = vmatmul.mubr.f32.gmra.mxu0 %v2125
    %v2193 = vpop.f32.mrf.mxu0
    %v2194 = vadd.f32 0.0, %v2193
    %v2195 = vpop.f32.mrf.mxu0
    %2196 = vdwg.mxu0
    %v2197 = vadd.f32 %v2121, %v2194
    %v2198 = vxor.u32 %v2197, 2147483648
    %v2199 = vmul.f32 %v2198, 1.442695
    %v2200 = vpow.pop %v2199
    %v2201 = vadd.f32 %v2200, 1.0
    %v2202 = vrcp.pop %v2201
    %v2203 = vmul.f32 1.0, %v2202
    %v2204 = vtanh.pop %v2197
    %v2205 = vmul.f32 %v2203, %v2106
    %2207 = vrot.lane.b32.xlu0 %v2204, 32
    %v2208 = vpop.permute.xlu0 %2207
    %v2210 = vmul.f32 %v2203, %v2208
    %2212 = vrot.lane.b32.xlu0 %v2210, 32
    %v2213 = vpop.permute.xlu0 %2212
    %v2215 = vadd.f32 %v2205, %v2213
    %v2216 = vtanh.pop %v2215
    %2218 = vrot.lane.b32.xlu0 %v2216, 32
    %v2219 = vpop.permute.xlu0 %2218
    %v2221 = vmul.f32 %v2203, %v2219
    %v2222 = vpack.c.bf16 %v2221, %v2221
    %v2224 = vunpack.c.l.b16 %v2222
    %v2225 = vpack.c.b16 %v2224, %v2224
    %2226 = vrot.lane.b32.xlu0 %v2225, 64
    %v2227 = vpop.permute.xlu0 %2226
    %2229 = vst.msk [vmem:[%s1200] sm:$0xf] %vm423, %v2227
    %2231 = vrot.lane.b32.xlu0 %v2221, 64
    %v2232 = vpop.permute.xlu0 %2231
    %s2234 = scalar_lea.vmem [#allocation20], 8
    %2235 = vst.msk [vmem:[%s2234] sm:$0xff] %vm211, %v2232
    %2237 = vrot.lane.b32.xlu0 %v2215, 96
    %v2238 = vpop.permute.xlu0 %2237
    %s2240 = scalar_lea.vmem [#allocation22], 8
    %2241 = vst.msk [vmem:[%s2240] sm:$0xff] %vm211, %v2238
    %v2242 = vld [vmem:[%s9] sm:$0xf]
    %v2243 = vld [vmem:[%s9 + $0x4] sm:$0xf]
    %v2244 = vld [vmem:[%s9 + $0x8] sm:$0xf]
    %v2245 = vld [vmem:[%s9 + $0xc] sm:$0xf]
    %v2246 = vld [vmem:[%s10] sm:$0x1]
    %v2247 = vld [vmem:[#allocation3] sm:$0xf]
    %v2248 = vld [vmem:[#allocation3 + $0x4] sm:$0xf]
    %v2249 = vld [vmem:[#allocation3 + $0x8] sm:$0xf]
    %v2250 = vld [vmem:[#allocation3 + $0xc] sm:$0xf]
    %v2251 = vld [vmem:[#allocation3 + $0x10] sm:$0xf]
    %v2252 = vld [vmem:[#allocation3 + $0x14] sm:$0xf]
    %v2253 = vld [vmem:[#allocation3 + $0x18] sm:$0xf]
    %v2254 = vld [vmem:[#allocation3 + $0x1c] sm:$0xf]
    %v2256 = vlaneseq
    %v2257 = vshrl.u32 %v2256, 7
    %v2258 = vsub.s32 0, %v2257
    %v2259 = vrot.slane %v2246, %v2258
    %v2269 = vunpack.c.l.b16 %v2247
    %v2270 = vunpack.c.l.b16 %v2248
    %v2271 = vunpack.c.l.b16 %v2249
    %v2272 = vunpack.c.l.b16 %v2250
    %v2273 = vunpack.c.l.b16 %v2251
    %v2274 = vunpack.c.l.b16 %v2252
    %v2275 = vunpack.c.l.b16 %v2253
    %v2276 = vunpack.c.l.b16 %v2254
    %v2277 = vpack.c.b16 %v2270, %v2269
    %v2278 = vpack.c.b16 %v2272, %v2271
    %v2279 = vpack.c.b16 %v2274, %v2273
    %v2280 = vpack.c.b16 %v2276, %v2275
    %v2285 = vunpack.c.l.b16 %v2242
    %v2286 = vunpack.c.l.b16 %v2243
    %v2287 = vunpack.c.l.b16 %v2244
    %v2288 = vunpack.c.l.b16 %v2245
    %v2289 = vpack.c.b16 %v2286, %v2285
    %v2290 = vpack.c.b16 %v2288, %v2287
    %v2294 = vsel %vm211, %v2277, 0
    %v2297 = vsel %vm211, %v2278, 0
    %v2300 = vsel %vm211, %v2279, 0
    %v2303 = vsel %vm211, %v2280, 0
    %2305 = vmatprep.subr.bf16.mxu0 0
    %2306 = vmatpush1.bf16.msra.mxu0 0
    %2307 = vmatprep.subr.bf16.mxu0 0
    %2308 = vmatpush1.bf16.msra.mxu0 0
    %2309 = vmatprep.subr.bf16.mxu0 0
    %2310 = vmatpush1.bf16.msra.mxu0 0
    %2311 = vmatprep.subr.bf16.mxu0 0
    %2312 = vmatpush1.bf16.msra.mxu0 0
    %2313 = vmatprep.subr.bf16.mxu0 0
    %2314 = vmatpush1.bf16.msra.mxu0 0
    %2315 = vmatprep.subr.bf16.mxu0 0
    %2316 = vmatpush1.bf16.msra.mxu0 0
    %2317 = vmatprep.subr.bf16.mxu0 0
    %2318 = vmatpush1.bf16.msra.mxu0 %v2290
    %2319 = vmatprep.subr.bf16.mxu0 0
    %2320 = vmatpush1.bf16.msra.mxu0 %v2289
    %2321 = vmatprep.subr.bf16.mxu0 0
    %2322 = vmatpush2.bf16.msra.mxu0 0
    %2323 = vmatprep.subr.bf16.mxu0 0
    %2324 = vmatpush2.bf16.msra.mxu0 0
    %2325 = vmatprep.subr.bf16.mxu0 0
    %2326 = vmatpush2.bf16.msra.mxu0 0
    %2327 = vmatprep.subr.bf16.mxu0 0
    %2328 = vmatpush2.bf16.msra.mxu0 0
    %2329 = vmatprep.subr.bf16.mxu0 0
    %2330 = vmatpush2.bf16.msra.mxu0 0
    %2331 = vmatprep.subr.bf16.mxu0 0
    %2332 = vmatpush2.bf16.msra.mxu0 0
    %2333 = vmatprep.subr.bf16.mxu0 0
    %2334 = vmatpush2.bf16.msra.mxu0 0
    %2335 = vmatprep.subr.bf16.mxu0 0
    %2336 = vmatpush2.bf16.msra.mxu0 0
    %2337 = vmatprep.mubr.bf16.mxu0 0
    %2338 = vmatmul.mubr.bf16.gmra.mxu0 %v2294
    %v2339 = vpop.f32.mrf.mxu0
    %v2340 = vadd.f32 %v2259, %v2339
    %v2341 = vpop.f32.mrf.mxu0
    %v2342 = vpop.f32.mrf.mxu0
    %v2343 = vadd.f32 %v2259, %v2342
    %v2344 = vpop.f32.mrf.mxu0
    %2345 = vmatprep.mubr.bf16.mxu0 0
    %2346 = vmatmul.mubr.bf16.gmra.mxu0 %v2297
    %v2347 = vpop.f32.mrf.mxu0
    %v2348 = vadd.f32 %v2259, %v2347
    %v2349 = vpop.f32.mrf.mxu0
    %v2350 = vpop.f32.mrf.mxu0
    %v2351 = vadd.f32 %v2259, %v2350
    %v2352 = vpop.f32.mrf.mxu0
    %2353 = vmatprep.mubr.bf16.mxu0 0
    %2354 = vmatmul.mubr.bf16.gmra.mxu0 %v2300
    %v2355 = vpop.f32.mrf.mxu0
    %v2356 = vadd.f32 %v2259, %v2355
    %v2357 = vpop.f32.mrf.mxu0
    %v2358 = vpop.f32.mrf.mxu0
    %v2359 = vadd.f32 %v2259, %v2358
    %v2360 = vpop.f32.mrf.mxu0
    %2361 = vmatprep.mubr.bf16.mxu0 0
    %2362 = vmatmul.mubr.bf16.gmra.mxu0 %v2303
    %v2363 = vpop.f32.mrf.mxu0
    %v2364 = vadd.f32 %v2259, %v2363
    %v2365 = vpop.f32.mrf.mxu0
    %v2366 = vpop.f32.mrf.mxu0
    %v2367 = vadd.f32 %v2259, %v2366
    %v2368 = vpop.f32.mrf.mxu0
    %2369 = vdwg.mxu0
    %2370 = vst [vmem:[#allocation19] sm:$0xff] %v2340
    %2371 = vst [vmem:[#allocation19 + $0x8] sm:$0xff] %v2343
    %2372 = vst [vmem:[#allocation19 + $0x10] sm:$0xff] %v2348
    %2373 = vst [vmem:[#allocation19 + $0x18] sm:$0xff] %v2351
    %2374 = vst [vmem:[#allocation19 + $0x20] sm:$0xff] %v2356
    %2375 = vst [vmem:[#allocation19 + $0x28] sm:$0xff] %v2359
    %2376 = vst [vmem:[#allocation19 + $0x30] sm:$0xff] %v2364
    %2377 = vst [vmem:[#allocation19 + $0x38] sm:$0xff] %v2367
    // Predicated region
    $region82: #{tpu_custom_call.1} parent=1 // pred_check
      _
    $region83: #{tpu_custom_call.1} parent=1 // pred_check_branch
      %2379 = sbr.rel (0) target = $region85
    $region84: #{tpu_custom_call.1} parent=1 // pred_region
      %s2381 = ssub.s32 1024, 1024
      %2382 = vsyncadd [#allocation6], %s2381
      %s2383 = sshll.u32 [#allocation19], 4
      %s2384 = int_to_ptr.vmem [resolvable:$true] %s2383
      %2389 = dma.vmem_to_hbm [thread:$0]  %s2384, 1024, %s11, [#allocation6], 128, 128, 8
    $region85: #{tpu_custom_call.1} parent=1 // pred_fallthru
      _
    // Predicated region
    $region86: #{tpu_custom_call.1} parent=1 // pred_check
      _
    $region87: #{tpu_custom_call.1} parent=1 // pred_check_branch
      %2391 = sbr.rel (0) target = $region89
    $region88: #{tpu_custom_call.1} parent=1 // pred_region
      %s2393 = ssub.s32 256, 256
      %2394 = vsyncadd [#allocation21], %s2393
      %s2395 = sshll.u32 [#allocation20], 4
      %s2396 = int_to_ptr.vmem [resolvable:$true] %s2395
      %2401 = dma.vmem_to_hbm [thread:$0]  %s2396, 256, %s12, [#allocation21], 128, 128, 8
    $region89: #{tpu_custom_call.1} parent=1 // pred_fallthru
      _
    // Predicated region
    $region90: #{tpu_custom_call.1} parent=1 // pred_check
      _
    $region91: #{tpu_custom_call.1} parent=1 // pred_check_branch
      %2403 = sbr.rel (0) target = $region93
    $region92: #{tpu_custom_call.1} parent=1 // pred_region
      %s2405 = ssub.s32 256, 256
      %2406 = vsyncadd [#allocation21], %s2405
      %s2407 = sshll.u32 [#allocation22], 4
      %s2408 = int_to_ptr.vmem [resolvable:$true] %s2407
      %2413 = dma.vmem_to_hbm [thread:$0]  %s2408, 256, %s13, [#allocation21], 128, 128, 8
    $region93: #{tpu_custom_call.1} parent=1 // pred_fallthru
      _
    // Predicated region
    $region94: #{tpu_custom_call.1} parent=1 // pred_check
      _
    $region95: #{tpu_custom_call.1} parent=1 // pred_check_branch
      %2415 = sbr.rel (0) target = $region97
    $region96: #{tpu_custom_call.1} parent=1 // pred_region
      %2416 = dma.done [#allocation6], 1024
    $region97: #{tpu_custom_call.1} parent=1 // pred_fallthru
      _
    // Predicated region
    $region98: #{tpu_custom_call.1} parent=1 // pred_check
      _
    $region99: #{tpu_custom_call.1} parent=1 // pred_check_branch
      %2418 = sbr.rel (0) target = $region101
    $region100: #{tpu_custom_call.1} parent=1 // pred_region
      %2419 = dma.done [#allocation21], 256
    $region101: #{tpu_custom_call.1} parent=1 // pred_fallthru
      _
    // Predicated region
    $region102: #{tpu_custom_call.1} parent=1 // pred_check
      _
    $region103: #{tpu_custom_call.1} parent=1 // pred_check_branch
      %2421 = sbr.rel (0) target = $region105
    $region104: #{tpu_custom_call.1} parent=1 // pred_region
      %2422 = dma.done [#allocation21], 256
    $region105: #{tpu_custom_call.1} parent=1 // pred_fallthru
      _
    %2423 = vsyncpa [#allocation5], 1
    %2424 = vsyncpa [#allocation8], 1
    %2425 = vsyncpa [#allocation11], 1
    %2426 = vsyncpa [#allocation14], 1
    %2427 = vsyncpa [#allocation17], 1
    %2428 = vsyncpa [#allocation6], 1
    %2429 = vsyncpa [#allocation21], 1

</llo_original>
